<compile_context>
chip_gen: v7x
topology: tpu7x:2x2x1
jax: 0.10.0
libtpu: 0.0.40
codegen_flags: <defaults>
</compile_context>

<pallas_src>
import functools

import numpy as np
import jax
import jax.numpy as jnp
from jax import lax
from jax.experimental import pallas as pl
from jax.experimental.pallas import tpu as pltpu


C1 = 32           # conv1 output channels
C2 = 64           # conv2 output channels
OUT_LANES = 128   # packed head output width (lane-dense output slab)


# ----------------------------------------------------------------------------
# Fused Pallas kernel: entire ActorCritic forward pass for ONE batch element
# ----------------------------------------------------------------------------
def _actor_critic_kernel(
        vis_ref,       # (1, 2*(H+2), (W+2)//2, C1)  parity-split padded vision,
                       #   rows [0:H+2) = even columns, rows [H+2:2H+4) = odd
        status_ref,    # (1, 1, S)
        w1_ref,        # (9, C1)              conv1 weight, tap-major
        b1_ref,        # (1, C1)
        w2_ref,        # (9, C1, C2)          conv2 weight, tap-major
        b2_ref,        # (1, C2)
        ws_ref,        # (S, 64)              status_fc
        bs_ref,        # (1, 64)
        wcv_ref,       # (H4*W4*C2, hidden)   combined_fc vision rows (HWC order)
        wcs_ref,       # (64, hidden)         combined_fc status rows
        bc_ref,        # (1, hidden)
        wh_ref,        # (hidden, 128)        [actor | critic | 0-pad]
        bh_ref,        # (1, 128)
        out_ref,       # (1, 1, 128)          lanes [0:n_actions) probs, lane n_actions value
        *, H, W, n_actions):
    f32 = jnp.float32
    H2, W2 = H // 2, W // 2
    H4, W4 = H // 4, W // 4
    Hp = H + 2                      # rows per parity plane

    # ---- conv1 (1->32, 3x3, pad 1): 9 register-accumulated VPU taps, computed
    #      separately for even / odd output columns (parity-split input) ------
    accE = None
    accO = None
    for k in range(9):
        dy, dx = divmod(k, 3)
        w1k = w1_ref[k:k + 1, :]                                    # (1, C1)
        pe, se = dx % 2, dx // 2                  # phase / offset for even x
        po, so = (dx + 1) % 2, (dx + 1) // 2      # phase / offset for odd  x
        xsE = vis_ref[0, pe * Hp + dy: pe * Hp + dy + H, se:se + W2, :]
        xsO = vis_ref[0, po * Hp + dy: po * Hp + dy + H, so:so + W2, :]
        tE = xsE * w1k
        tO = xsO * w1k
        accE = tE if accE is None else accE + tE
        accO = tO if accO is None else accO + tO
    b1 = b1_ref[...]
    yE = jnp.maximum(accE + b1, 0.0)              # (H, W2, C1) conv1 at even x
    yO = jnp.maximum(accO + b1, 0.0)              # (H, W2, C1) conv1 at odd  x

    # ---- maxpool 2x2 #1: row-pair max (leading-dim reshape) + parity max ----
    rmE = jnp.max(yE.reshape(H2, 2, W2, C1), axis=1)
    rmO = jnp.max(yO.reshape(H2, 2, W2, C1), axis=1)
    pooled1 = jnp.maximum(rmE, rmO)                               # (H2, W2, C1)

    # ---- zero halo built by concatenation (no buffer zero-fill, no stores) --
    zc = jnp.zeros((H2, 1, C1), f32)
    pw = jnp.concatenate([zc, pooled1, zc], axis=1)               # (H2, W2+2, C1)
    zr = jnp.zeros((1, W2 + 2, C1), f32)
    pp = jnp.concatenate([zr, pw, zr], axis=0)                    # (H2+2, W2+2, C1)

    # ---- conv2 (32->64, 3x3, pad 1): 9 accumulating MXU dots in registers ---
    acc2 = None
    for k in range(9):
        dy, dx = divmod(k, 3)
        xs = pp[dy:dy + H2, dx:dx + W2, :].reshape(H2 * W2, C1)   # (H2*W2, C1)
        t = jnp.dot(xs, w2_ref[k], preferred_element_type=f32)
        acc2 = t if acc2 is None else acc2 + t
    y2 = jnp.maximum(acc2 + b2_ref[...], 0.0).reshape(H2, W2, C2)

    # ---- maxpool 2x2 #2: row-pair max, column max fused with flatten --------
    rm2 = jnp.max(y2.reshape(H4, 2, W2, C2), axis=1)              # (H4, W2, C2)
    parts = []
    for i in range(H4):
        for j in range(W4):
            a = rm2[i, 2 * j: 2 * j + 1, :]                       # (1, C2)
            b = rm2[i, 2 * j + 1: 2 * j + 2, :]
            parts.append(jnp.maximum(a, b))
    flat = jnp.concatenate(parts, axis=-1)                        # (1, H4*W4*C2)

    # ---- status_fc + combined_fc (single big vision dot) + ReLU -------------
    sv = status_ref[0]                                            # (1, S)
    sf = jnp.maximum(
        jnp.dot(sv, ws_ref[...], preferred_element_type=f32) + bs_ref[...], 0.0)
    feat = jnp.dot(flat, wcv_ref[...], preferred_element_type=f32)
    feat = feat + jnp.dot(sf, wcs_ref[...], preferred_element_type=f32)
    feat = jnp.maximum(feat + bc_ref[...], 0.0)                   # (1, hidden)

    # ---- heads: build the whole (1,128) slab in registers, ONE store --------
    raw = jnp.dot(feat, wh_ref[...], preferred_element_type=f32) + bh_ref[...]
    lane = lax.broadcasted_iota(jnp.int32, raw.shape, 1)
    amask = lane < n_actions
    logits = jnp.where(amask, raw, -jnp.inf)
    mx = jnp.max(logits, axis=-1, keepdims=True)
    e = jnp.exp(logits - mx)
    s = jnp.sum(e, axis=-1, keepdims=True)
    r = pl.reciprocal(s, approx=True)
    r = r * (2.0 - s * r)                 # one Newton step -> ~f32 accuracy
    out_ref[0] = jnp.where(amask, e * r, raw)


# ----------------------------------------------------------------------------
# Wrapper: layout plumbing (constant-foldable) + single gridded pallas_call
# ----------------------------------------------------------------------------
def actor_critic_forward(vision_nchw, status, params):
    (w1, b1, w2, b2, ws, bs, wcomb, bcomb, wa, ba, wv, bv) = params
    B, _, H, W = vision_nchw.shape
    assert H % 4 == 0 and W % 4 == 0, "fused kernel assumes H%4==0 and W%4==0"
    H4, W4 = H // 4, W // 4
    hidden = wcomb.shape[1]
    n_actions = wa.shape[1]
    S = status.shape[1]
    cnn_dim = C2 * H4 * W4

    # Vision: NCHW -> padded NHWC, broadcast over conv1's 32 output channels
    # (lane-dense tap reads), split into even / odd padded-column phases so the
    # kernel's maxpools need no sublane compaction.
    visp = jnp.pad(jnp.transpose(vision_nchw, (0, 2, 3, 1)),
                   ((0, 0), (1, 1), (1, 1), (0, 0)))              # (B, H+2, W+2, 1)
    visb = jnp.broadcast_to(visp, (B, H + 2, W + 2, C1)).astype(jnp.float32)
    vis2 = jnp.concatenate([visb[:, :, 0::2, :], visb[:, :, 1::2, :]], axis=1)
    # vis2: (B, 2*(H+2), (W+2)//2, C1)

    # Weight massaging (pure layout, done once at the boundary):
    w1m = w1.reshape(9, C1)                                       # tap-major conv1
    w2m = w2.reshape(9, C1, C2)                                   # tap-major conv2
    # combined_fc vision rows permuted from PyTorch's (c,h,w) flatten order to
    # the kernel's (h,w,c) flatten order -> one (1,1024)@(1024,hidden) dot.
    wcv = jnp.transpose(wcomb[:cnn_dim].reshape(C2, H4, W4, hidden),
                        (1, 2, 0, 3)).reshape(H4 * W4 * C2, hidden)
    wcs = wcomb[cnn_dim:]
    padw = OUT_LANES - n_actions - 1
    whead = jnp.concatenate([wa, wv, jnp.zeros((hidden, padw), jnp.float32)], axis=1)
    bhead = jnp.concatenate([ba, bv, jnp.zeros((1, padw), jnp.float32)], axis=1)
    status3 = status[:, None, :]                                  # (B, 1, S)

    kernel = functools.partial(_actor_critic_kernel, H=H, W=W, n_actions=n_actions)

    def full(shape):
        return pl.BlockSpec(shape, lambda b, _s=shape: (0,) * len(_s))

    out = pl.pallas_call(
        kernel,
        out_shape=jax.ShapeDtypeStruct((B, 1, OUT_LANES), jnp.float32),
        grid=(B,),
        in_specs=[
            pl.BlockSpec((1, 2 * (H + 2), (W + 2) // 2, C1),
                         lambda b: (b, 0, 0, 0)),
            pl.BlockSpec((1, 1, S), lambda b: (b, 0, 0)),
            full((9, C1)), full((1, C1)),
            full((9, C1, C2)), full((1, C2)),
            full((S, 64)), full((1, 64)),
            full((H4 * W4 * C2, hidden)), full((64, hidden)), full((1, hidden)),
            full((hidden, OUT_LANES)), full((1, OUT_LANES)),
        ],
        out_specs=pl.BlockSpec((1, 1, OUT_LANES), lambda b: (b, 0, 0)),
        compiler_params=pltpu.CompilerParams(
            dimension_semantics=("parallel",)),
    )(vis2, status3, w1m, b1, w2m, b2, ws, bs, wcv, wcs, bcomb, whead, bhead)

    out2 = out[:, 0, :]
    probs = out2[:, :n_actions]
    value = out2[:, n_actions:n_actions + 1]
    return probs, value


# ----------------------------------------------------------------------------
# Pure-JAX reference (independent check, uses lax.conv)
# ----------------------------------------------------------------------------
def reference_forward(vision_nchw, status, params):
    (w1, b1, w2, b2, ws, bs, wcomb, bcomb, wa, ba, wv, bv) = params
    B = vision_nchw.shape[0]

    def conv(x, w_hwio, b_row):
        w_oihw = jnp.transpose(w_hwio, (3, 2, 0, 1))
        y = lax.conv_general_dilated(x, w_oihw, (1, 1), ((1, 1), (1, 1)),
                                     dimension_numbers=("NCHW", "OIHW", "NCHW"))
        return jnp.maximum(y + b_row.reshape(1, -1, 1, 1), 0.0)

    def pool(x):
        b, c, h, w = x.shape
        return jnp.max(x.reshape(b, c, h // 2, 2, w // 2, 2), axis=(3, 5))

    y = pool(conv(vision_nchw, w1, b1))
    y = pool(conv(y, w2, b2))
    vf = y.reshape(B, -1)
    sf = jnp.maximum(status @ ws + bs, 0.0)
    comb = jnp.concatenate([vf, sf], axis=1)
    feat = jnp.maximum(comb @ wcomb + bcomb, 0.0)
    probs = jax.nn.softmax(feat @ wa + ba, axis=-1)
    value = feat @ wv + bv
    return probs, value


# ----------------------------------------------------------------------------
# Main
# ----------------------------------------------------------------------------
if __name__ == "__main__":
    B = 2
    H = W = 16                     # vision_shape
    STATUS_SIZE = 8
    N_ACTIONS = 6
    HIDDEN = 32
    CNN_DIM = 64 * (H // 4) * (W // 4)   # 1024

    key = jax.random.PRNGKey(0)
    ks = jax.random.split(key, 14)

    def uinit(k, shape, fan_in):
        bound = 1.0 / np.sqrt(fan_in)
        return jax.random.uniform(k, shape, jnp.float32, -bound, bound)

    params = (
        uinit(ks[0], (3, 3, 1, 32), 9 * 1),           # conv1 weight (HWIO)
        uinit(ks[1], (1, 32), 9 * 1),                 # conv1 bias
        uinit(ks[2], (3, 3, 32, 64), 9 * 32),         # conv2 weight (HWIO)
        uinit(ks[3], (1, 64), 9 * 32),                # conv2 bias
        uinit(ks[4], (STATUS_SIZE, 64), STATUS_SIZE), # status_fc
        uinit(ks[5], (1, 64), STATUS_SIZE),
        uinit(ks[6], (CNN_DIM + 64, HIDDEN), CNN_DIM + 64),  # combined_fc
        uinit(ks[7], (1, HIDDEN), CNN_DIM + 64),
        uinit(ks[8], (HIDDEN, N_ACTIONS), HIDDEN),    # actor
        uinit(ks[9], (1, N_ACTIONS), HIDDEN),
        uinit(ks[10], (HIDDEN, 1), HIDDEN),           # critic
        uinit(ks[11], (1, 1), HIDDEN),
    )

    vision = jax.random.normal(ks[12], (B, 1, H, W), jnp.float32)   # NCHW input
    status = jax.random.normal(ks[13], (B, STATUS_SIZE), jnp.float32)

    fwd = jax.jit(functools.partial(actor_critic_forward, params=params))
    probs, value = fwd(vision, status)
    jax.block_until_ready((probs, value))

    # sanity: shapes, softmax normalization, match vs pure-JAX reference
    assert probs.shape == (B, N_ACTIONS) and value.shape == (B, 1)
    np.testing.assert_allclose(np.sum(np.asarray(probs), axis=-1),
                               np.ones(B), rtol=1e-5, atol=1e-5)
    ref_probs, ref_value = reference_forward(vision, status, params)
    np.testing.assert_allclose(np.asarray(probs), np.asarray(ref_probs),
                               rtol=1e-4, atol=1e-5)
    np.testing.assert_allclose(np.asarray(value), np.asarray(ref_value),
                               rtol=1e-4, atol=1e-4)

    print("KERNEL_OK")
</pallas_src>

<mosaic_0001>
module attributes {stable_mosaic.version = 11 : i64} {
  func.func @_actor_critic_kernel(%arg0: i32, %arg1: memref<1x36x9x32xf32, #tpu.memory_space<vmem>>, %arg2: memref<1x1x8xf32, #tpu.memory_space<vmem>>, %arg3: memref<9x32xf32, #tpu.memory_space<vmem>>, %arg4: memref<1x32xf32, #tpu.memory_space<vmem>>, %arg5: memref<9x32x64xf32, #tpu.memory_space<vmem>>, %arg6: memref<1x64xf32, #tpu.memory_space<vmem>>, %arg7: memref<8x64xf32, #tpu.memory_space<vmem>>, %arg8: memref<1x64xf32, #tpu.memory_space<vmem>>, %arg9: memref<1024x32xf32, #tpu.memory_space<vmem>>, %arg10: memref<64x32xf32, #tpu.memory_space<vmem>>, %arg11: memref<1x32xf32, #tpu.memory_space<vmem>>, %arg12: memref<32x128xf32, #tpu.memory_space<vmem>>, %arg13: memref<1x128xf32, #tpu.memory_space<vmem>>, %arg14: memref<1x1x128xf32, #tpu.memory_space<vmem>>) attributes {dimension_semantics = [#tpu.dimension_semantics<parallel>], iteration_bounds = array<i64: 2>, scalar_prefetch = 0 : i64, scratch_operands = 0 : i64, tpu.core_type = #tpu.core_type<tc>, window_params = [{transform_indices = @transform_0, window_bounds = array<i64: 1, 36, 9, 32>}, {transform_indices = @transform_1, window_bounds = array<i64: 1, 1, 8>}, {pipeline_mode = #tpu.pipeline_mode<synchronous>, transform_indices = @transform_2, window_bounds = array<i64: 9, 32>}, {pipeline_mode = #tpu.pipeline_mode<synchronous>, transform_indices = @transform_3, window_bounds = array<i64: 1, 32>}, {pipeline_mode = #tpu.pipeline_mode<synchronous>, transform_indices = @transform_4, window_bounds = array<i64: 9, 32, 64>}, {pipeline_mode = #tpu.pipeline_mode<synchronous>, transform_indices = @transform_5, window_bounds = array<i64: 1, 64>}, {pipeline_mode = #tpu.pipeline_mode<synchronous>, transform_indices = @transform_6, window_bounds = array<i64: 8, 64>}, {pipeline_mode = #tpu.pipeline_mode<synchronous>, transform_indices = @transform_7, window_bounds = array<i64: 1, 64>}, {pipeline_mode = #tpu.pipeline_mode<synchronous>, transform_indices = @transform_8, window_bounds = array<i64: 1024, 32>}, {pipeline_mode = #tpu.pipeline_mode<synchronous>, transform_indices = @transform_9, window_bounds = array<i64: 64, 32>}, {pipeline_mode = #tpu.pipeline_mode<synchronous>, transform_indices = @transform_10, window_bounds = array<i64: 1, 32>}, {pipeline_mode = #tpu.pipeline_mode<synchronous>, transform_indices = @transform_11, window_bounds = array<i64: 32, 128>}, {pipeline_mode = #tpu.pipeline_mode<synchronous>, transform_indices = @transform_12, window_bounds = array<i64: 1, 128>}, {transform_indices = @transform_13, window_bounds = array<i64: 1, 1, 128>}]} {
    %c0 = arith.constant 0 : index
    %c0_0 = arith.constant 0 : index
    %0 = vector.load %arg3[%c0, %c0_0] : memref<9x32xf32, #tpu.memory_space<vmem>>, vector<1x32xf32>
    %c0_1 = arith.constant 0 : index
    %c0_2 = arith.constant 0 : index
    %c0_3 = arith.constant 0 : index
    %c0_4 = arith.constant 0 : index
    %1 = vector.load %arg1[%c0_1, %c0_2, %c0_3, %c0_4] : memref<1x36x9x32xf32, #tpu.memory_space<vmem>>, vector<1x16x8x32xf32>
    %2 = vector.shape_cast %1 : vector<1x16x8x32xf32> to vector<16x8x32xf32>
    %c0_5 = arith.constant 0 : index
    %c18 = arith.constant 18 : index
    %c0_6 = arith.constant 0 : index
    %c0_7 = arith.constant 0 : index
    %3 = vector.load %arg1[%c0_5, %c18, %c0_6, %c0_7] : memref<1x36x9x32xf32, #tpu.memory_space<vmem>>, vector<1x16x8x32xf32>
    %4 = vector.shape_cast %3 : vector<1x16x8x32xf32> to vector<16x8x32xf32>
    %5 = vector.shape_cast %0 : vector<1x32xf32> to vector<1x1x32xf32>
    %6 = vector.broadcast %5 : vector<1x1x32xf32> to vector<16x8x32xf32>
    %7 = arith.mulf %2, %6 : vector<16x8x32xf32>
    %8 = vector.shape_cast %0 : vector<1x32xf32> to vector<1x1x32xf32>
    %9 = vector.broadcast %8 : vector<1x1x32xf32> to vector<16x8x32xf32>
    %10 = arith.mulf %4, %9 : vector<16x8x32xf32>
    %c1 = arith.constant 1 : index
    %c0_8 = arith.constant 0 : index
    %11 = vector.load %arg3[%c1, %c0_8] : memref<9x32xf32, #tpu.memory_space<vmem>>, vector<1x32xf32>
    %c0_9 = arith.constant 0 : index
    %c18_10 = arith.constant 18 : index
    %c0_11 = arith.constant 0 : index
    %c0_12 = arith.constant 0 : index
    %12 = vector.load %arg1[%c0_9, %c18_10, %c0_11, %c0_12] : memref<1x36x9x32xf32, #tpu.memory_space<vmem>>, vector<1x16x8x32xf32>
    %13 = vector.shape_cast %12 : vector<1x16x8x32xf32> to vector<16x8x32xf32>
    %c0_13 = arith.constant 0 : index
    %c0_14 = arith.constant 0 : index
    %c1_15 = arith.constant 1 : index
    %c0_16 = arith.constant 0 : index
    %14 = vector.load %arg1[%c0_13, %c0_14, %c1_15, %c0_16] : memref<1x36x9x32xf32, #tpu.memory_space<vmem>>, vector<1x16x8x32xf32>
    %15 = vector.shape_cast %14 : vector<1x16x8x32xf32> to vector<16x8x32xf32>
    %16 = vector.shape_cast %11 : vector<1x32xf32> to vector<1x1x32xf32>
    %17 = vector.broadcast %16 : vector<1x1x32xf32> to vector<16x8x32xf32>
    %18 = arith.mulf %13, %17 : vector<16x8x32xf32>
    %19 = vector.shape_cast %11 : vector<1x32xf32> to vector<1x1x32xf32>
    %20 = vector.broadcast %19 : vector<1x1x32xf32> to vector<16x8x32xf32>
    %21 = arith.mulf %15, %20 : vector<16x8x32xf32>
    %22 = arith.addf %7, %18 : vector<16x8x32xf32>
    %23 = arith.addf %10, %21 : vector<16x8x32xf32>
    %c2 = arith.constant 2 : index
    %c0_17 = arith.constant 0 : index
    %24 = vector.load %arg3[%c2, %c0_17] : memref<9x32xf32, #tpu.memory_space<vmem>>, vector<1x32xf32>
    %c0_18 = arith.constant 0 : index
    %c0_19 = arith.constant 0 : index
    %c1_20 = arith.constant 1 : index
    %c0_21 = arith.constant 0 : index
    %25 = vector.load %arg1[%c0_18, %c0_19, %c1_20, %c0_21] : memref<1x36x9x32xf32, #tpu.memory_space<vmem>>, vector<1x16x8x32xf32>
    %26 = vector.shape_cast %25 : vector<1x16x8x32xf32> to vector<16x8x32xf32>
    %c0_22 = arith.constant 0 : index
    %c18_23 = arith.constant 18 : index
    %c1_24 = arith.constant 1 : index
    %c0_25 = arith.constant 0 : index
    %27 = vector.load %arg1[%c0_22, %c18_23, %c1_24, %c0_25] : memref<1x36x9x32xf32, #tpu.memory_space<vmem>>, vector<1x16x8x32xf32>
    %28 = vector.shape_cast %27 : vector<1x16x8x32xf32> to vector<16x8x32xf32>
    %29 = vector.shape_cast %24 : vector<1x32xf32> to vector<1x1x32xf32>
    %30 = vector.broadcast %29 : vector<1x1x32xf32> to vector<16x8x32xf32>
    %31 = arith.mulf %26, %30 : vector<16x8x32xf32>
    %32 = vector.shape_cast %24 : vector<1x32xf32> to vector<1x1x32xf32>
    %33 = vector.broadcast %32 : vector<1x1x32xf32> to vector<16x8x32xf32>
    %34 = arith.mulf %28, %33 : vector<16x8x32xf32>
    %35 = arith.addf %22, %31 : vector<16x8x32xf32>
    %36 = arith.addf %23, %34 : vector<16x8x32xf32>
    %c3 = arith.constant 3 : index
    %c0_26 = arith.constant 0 : index
    %37 = vector.load %arg3[%c3, %c0_26] : memref<9x32xf32, #tpu.memory_space<vmem>>, vector<1x32xf32>
    %c0_27 = arith.constant 0 : index
    %c1_28 = arith.constant 1 : index
    %c0_29 = arith.constant 0 : index
    %c0_30 = arith.constant 0 : index
    %38 = vector.load %arg1[%c0_27, %c1_28, %c0_29, %c0_30] : memref<1x36x9x32xf32, #tpu.memory_space<vmem>>, vector<1x16x8x32xf32>
    %39 = vector.shape_cast %38 : vector<1x16x8x32xf32> to vector<16x8x32xf32>
    %c0_31 = arith.constant 0 : index
    %c19 = arith.constant 19 : index
    %c0_32 = arith.constant 0 : index
    %c0_33 = arith.constant 0 : index
    %40 = vector.load %arg1[%c0_31, %c19, %c0_32, %c0_33] : memref<1x36x9x32xf32, #tpu.memory_space<vmem>>, vector<1x16x8x32xf32>
    %41 = vector.shape_cast %40 : vector<1x16x8x32xf32> to vector<16x8x32xf32>
    %42 = vector.shape_cast %37 : vector<1x32xf32> to vector<1x1x32xf32>
    %43 = vector.broadcast %42 : vector<1x1x32xf32> to vector<16x8x32xf32>
    %44 = arith.mulf %39, %43 : vector<16x8x32xf32>
    %45 = vector.shape_cast %37 : vector<1x32xf32> to vector<1x1x32xf32>
    %46 = vector.broadcast %45 : vector<1x1x32xf32> to vector<16x8x32xf32>
    %47 = arith.mulf %41, %46 : vector<16x8x32xf32>
    %48 = arith.addf %35, %44 : vector<16x8x32xf32>
    %49 = arith.addf %36, %47 : vector<16x8x32xf32>
    %c4 = arith.constant 4 : index
    %c0_34 = arith.constant 0 : index
    %50 = vector.load %arg3[%c4, %c0_34] : memref<9x32xf32, #tpu.memory_space<vmem>>, vector<1x32xf32>
    %c0_35 = arith.constant 0 : index
    %c19_36 = arith.constant 19 : index
    %c0_37 = arith.constant 0 : index
    %c0_38 = arith.constant 0 : index
    %51 = vector.load %arg1[%c0_35, %c19_36, %c0_37, %c0_38] : memref<1x36x9x32xf32, #tpu.memory_space<vmem>>, vector<1x16x8x32xf32>
    %52 = vector.shape_cast %51 : vector<1x16x8x32xf32> to vector<16x8x32xf32>
    %c0_39 = arith.constant 0 : index
    %c1_40 = arith.constant 1 : index
    %c1_41 = arith.constant 1 : index
    %c0_42 = arith.constant 0 : index
    %53 = vector.load %arg1[%c0_39, %c1_40, %c1_41, %c0_42] : memref<1x36x9x32xf32, #tpu.memory_space<vmem>>, vector<1x16x8x32xf32>
    %54 = vector.shape_cast %53 : vector<1x16x8x32xf32> to vector<16x8x32xf32>
    %55 = vector.shape_cast %50 : vector<1x32xf32> to vector<1x1x32xf32>
    %56 = vector.broadcast %55 : vector<1x1x32xf32> to vector<16x8x32xf32>
    %57 = arith.mulf %52, %56 : vector<16x8x32xf32>
    %58 = vector.shape_cast %50 : vector<1x32xf32> to vector<1x1x32xf32>
    %59 = vector.broadcast %58 : vector<1x1x32xf32> to vector<16x8x32xf32>
    %60 = arith.mulf %54, %59 : vector<16x8x32xf32>
    %61 = arith.addf %48, %57 : vector<16x8x32xf32>
    %62 = arith.addf %49, %60 : vector<16x8x32xf32>
    %c5 = arith.constant 5 : index
    %c0_43 = arith.constant 0 : index
    %63 = vector.load %arg3[%c5, %c0_43] : memref<9x32xf32, #tpu.memory_space<vmem>>, vector<1x32xf32>
    %c0_44 = arith.constant 0 : index
    %c1_45 = arith.constant 1 : index
    %c1_46 = arith.constant 1 : index
    %c0_47 = arith.constant 0 : index
    %64 = vector.load %arg1[%c0_44, %c1_45, %c1_46, %c0_47] : memref<1x36x9x32xf32, #tpu.memory_space<vmem>>, vector<1x16x8x32xf32>
    %65 = vector.shape_cast %64 : vector<1x16x8x32xf32> to vector<16x8x32xf32>
    %c0_48 = arith.constant 0 : index
    %c19_49 = arith.constant 19 : index
    %c1_50 = arith.constant 1 : index
    %c0_51 = arith.constant 0 : index
    %66 = vector.load %arg1[%c0_48, %c19_49, %c1_50, %c0_51] : memref<1x36x9x32xf32, #tpu.memory_space<vmem>>, vector<1x16x8x32xf32>
    %67 = vector.shape_cast %66 : vector<1x16x8x32xf32> to vector<16x8x32xf32>
    %68 = vector.shape_cast %63 : vector<1x32xf32> to vector<1x1x32xf32>
    %69 = vector.broadcast %68 : vector<1x1x32xf32> to vector<16x8x32xf32>
    %70 = arith.mulf %65, %69 : vector<16x8x32xf32>
    %71 = vector.shape_cast %63 : vector<1x32xf32> to vector<1x1x32xf32>
    %72 = vector.broadcast %71 : vector<1x1x32xf32> to vector<16x8x32xf32>
    %73 = arith.mulf %67, %72 : vector<16x8x32xf32>
    %74 = arith.addf %61, %70 : vector<16x8x32xf32>
    %75 = arith.addf %62, %73 : vector<16x8x32xf32>
    %c6 = arith.constant 6 : index
    %c0_52 = arith.constant 0 : index
    %76 = vector.load %arg3[%c6, %c0_52] : memref<9x32xf32, #tpu.memory_space<vmem>>, vector<1x32xf32>
    %c0_53 = arith.constant 0 : index
    %c2_54 = arith.constant 2 : index
    %c0_55 = arith.constant 0 : index
    %c0_56 = arith.constant 0 : index
    %77 = vector.load %arg1[%c0_53, %c2_54, %c0_55, %c0_56] : memref<1x36x9x32xf32, #tpu.memory_space<vmem>>, vector<1x16x8x32xf32>
    %78 = vector.shape_cast %77 : vector<1x16x8x32xf32> to vector<16x8x32xf32>
    %c0_57 = arith.constant 0 : index
    %c20 = arith.constant 20 : index
    %c0_58 = arith.constant 0 : index
    %c0_59 = arith.constant 0 : index
    %79 = vector.load %arg1[%c0_57, %c20, %c0_58, %c0_59] : memref<1x36x9x32xf32, #tpu.memory_space<vmem>>, vector<1x16x8x32xf32>
    %80 = vector.shape_cast %79 : vector<1x16x8x32xf32> to vector<16x8x32xf32>
    %81 = vector.shape_cast %76 : vector<1x32xf32> to vector<1x1x32xf32>
    %82 = vector.broadcast %81 : vector<1x1x32xf32> to vector<16x8x32xf32>
    %83 = arith.mulf %78, %82 : vector<16x8x32xf32>
    %84 = vector.shape_cast %76 : vector<1x32xf32> to vector<1x1x32xf32>
    %85 = vector.broadcast %84 : vector<1x1x32xf32> to vector<16x8x32xf32>
    %86 = arith.mulf %80, %85 : vector<16x8x32xf32>
    %87 = arith.addf %74, %83 : vector<16x8x32xf32>
    %88 = arith.addf %75, %86 : vector<16x8x32xf32>
    %c7 = arith.constant 7 : index
    %c0_60 = arith.constant 0 : index
    %89 = vector.load %arg3[%c7, %c0_60] : memref<9x32xf32, #tpu.memory_space<vmem>>, vector<1x32xf32>
    %c0_61 = arith.constant 0 : index
    %c20_62 = arith.constant 20 : index
    %c0_63 = arith.constant 0 : index
    %c0_64 = arith.constant 0 : index
    %90 = vector.load %arg1[%c0_61, %c20_62, %c0_63, %c0_64] : memref<1x36x9x32xf32, #tpu.memory_space<vmem>>, vector<1x16x8x32xf32>
    %91 = vector.shape_cast %90 : vector<1x16x8x32xf32> to vector<16x8x32xf32>
    %c0_65 = arith.constant 0 : index
    %c2_66 = arith.constant 2 : index
    %c1_67 = arith.constant 1 : index
    %c0_68 = arith.constant 0 : index
    %92 = vector.load %arg1[%c0_65, %c2_66, %c1_67, %c0_68] : memref<1x36x9x32xf32, #tpu.memory_space<vmem>>, vector<1x16x8x32xf32>
    %93 = vector.shape_cast %92 : vector<1x16x8x32xf32> to vector<16x8x32xf32>
    %94 = vector.shape_cast %89 : vector<1x32xf32> to vector<1x1x32xf32>
    %95 = vector.broadcast %94 : vector<1x1x32xf32> to vector<16x8x32xf32>
    %96 = arith.mulf %91, %95 : vector<16x8x32xf32>
    %97 = vector.shape_cast %89 : vector<1x32xf32> to vector<1x1x32xf32>
    %98 = vector.broadcast %97 : vector<1x1x32xf32> to vector<16x8x32xf32>
    %99 = arith.mulf %93, %98 : vector<16x8x32xf32>
    %100 = arith.addf %87, %96 : vector<16x8x32xf32>
    %101 = arith.addf %88, %99 : vector<16x8x32xf32>
    %c8 = arith.constant 8 : index
    %c0_69 = arith.constant 0 : index
    %102 = vector.load %arg3[%c8, %c0_69] : memref<9x32xf32, #tpu.memory_space<vmem>>, vector<1x32xf32>
    %c0_70 = arith.constant 0 : index
    %c2_71 = arith.constant 2 : index
    %c1_72 = arith.constant 1 : index
    %c0_73 = arith.constant 0 : index
    %103 = vector.load %arg1[%c0_70, %c2_71, %c1_72, %c0_73] : memref<1x36x9x32xf32, #tpu.memory_space<vmem>>, vector<1x16x8x32xf32>
    %104 = vector.shape_cast %103 : vector<1x16x8x32xf32> to vector<16x8x32xf32>
    %c0_74 = arith.constant 0 : index
    %c20_75 = arith.constant 20 : index
    %c1_76 = arith.constant 1 : index
    %c0_77 = arith.constant 0 : index
    %105 = vector.load %arg1[%c0_74, %c20_75, %c1_76, %c0_77] : memref<1x36x9x32xf32, #tpu.memory_space<vmem>>, vector<1x16x8x32xf32>
    %106 = vector.shape_cast %105 : vector<1x16x8x32xf32> to vector<16x8x32xf32>
    %107 = vector.shape_cast %102 : vector<1x32xf32> to vector<1x1x32xf32>
    %108 = vector.broadcast %107 : vector<1x1x32xf32> to vector<16x8x32xf32>
    %109 = arith.mulf %104, %108 : vector<16x8x32xf32>
    %110 = vector.shape_cast %102 : vector<1x32xf32> to vector<1x1x32xf32>
    %111 = vector.broadcast %110 : vector<1x1x32xf32> to vector<16x8x32xf32>
    %112 = arith.mulf %106, %111 : vector<16x8x32xf32>
    %113 = arith.addf %100, %109 : vector<16x8x32xf32>
    %114 = arith.addf %101, %112 : vector<16x8x32xf32>
    %c0_78 = arith.constant 0 : index
    %c0_79 = arith.constant 0 : index
    %115 = vector.load %arg4[%c0_78, %c0_79] : memref<1x32xf32, #tpu.memory_space<vmem>>, vector<1x32xf32>
    %116 = vector.shape_cast %115 : vector<1x32xf32> to vector<1x1x32xf32>
    %117 = vector.broadcast %116 : vector<1x1x32xf32> to vector<16x8x32xf32>
    %118 = arith.addf %113, %117 : vector<16x8x32xf32>
    %cst = arith.constant 0.000000e+00 : f32
    %119 = vector.broadcast %cst : f32 to vector<16x8x32xf32>
    %120 = arith.maximumf %118, %119 : vector<16x8x32xf32>
    %121 = vector.shape_cast %115 : vector<1x32xf32> to vector<1x1x32xf32>
    %122 = vector.broadcast %121 : vector<1x1x32xf32> to vector<16x8x32xf32>
    %123 = arith.addf %114, %122 : vector<16x8x32xf32>
    %cst_80 = arith.constant 0.000000e+00 : f32
    %124 = vector.broadcast %cst_80 : f32 to vector<16x8x32xf32>
    %125 = arith.maximumf %123, %124 : vector<16x8x32xf32>
    %126 = vector.shape_cast %120 : vector<16x8x32xf32> to vector<8x2x8x32xf32>
    %cst_81 = arith.constant dense<0xFF800000> : vector<8x8x32xf32>
    %127 = vector.multi_reduction <maximumf>, %126, %cst_81 [1] : vector<8x2x8x32xf32> to vector<8x8x32xf32>
    %128 = vector.shape_cast %125 : vector<16x8x32xf32> to vector<8x2x8x32xf32>
    %cst_82 = arith.constant dense<0xFF800000> : vector<8x8x32xf32>
    %129 = vector.multi_reduction <maximumf>, %128, %cst_82 [1] : vector<8x2x8x32xf32> to vector<8x8x32xf32>
    %130 = arith.maximumf %127, %129 : vector<8x8x32xf32>
    %cst_83 = arith.constant 0.000000e+00 : f32
    %131 = vector.broadcast %cst_83 : f32 to vector<8x1x32xf32>
    %132 = tpu.concatenate %131, %130, %131 in 1 : vector<8x1x32xf32>, vector<8x8x32xf32>, vector<8x1x32xf32> -> vector<8x10x32xf32>
    %cst_84 = arith.constant 0.000000e+00 : f32
    %133 = vector.broadcast %cst_84 : f32 to vector<1x10x32xf32>
    %134 = tpu.concatenate %133, %132, %133 in 0 : vector<1x10x32xf32>, vector<8x10x32xf32>, vector<1x10x32xf32> -> vector<10x10x32xf32>
    %135 = vector.extract_strided_slice %134 {offsets = [0, 0, 0], sizes = [8, 8, 32], strides = [1, 1, 1]} : vector<10x10x32xf32> to vector<8x8x32xf32>
    %136 = vector.shape_cast %135 : vector<8x8x32xf32> to vector<64x32xf32>
    %c0_85 = arith.constant 0 : index
    %c0_86 = arith.constant 0 : index
    %c0_87 = arith.constant 0 : index
    %137 = vector.load %arg5[%c0_85, %c0_86, %c0_87] : memref<9x32x64xf32, #tpu.memory_space<vmem>>, vector<1x32x64xf32>
    %138 = vector.shape_cast %137 : vector<1x32x64xf32> to vector<32x64xf32>
    %cst_88 = arith.constant dense<0.000000e+00> : vector<64x64xf32>
    %139 = tpu.matmul %136, %138, %cst_88 {dimension_numbers = #tpu.dot_dimension_numbers<[1], [0], [0], [1], [0, 0, 1, 1], [], []>} : vector<64x32xf32>, vector<32x64xf32>, vector<64x64xf32> -> vector<64x64xf32>
    %140 = vector.extract_strided_slice %134 {offsets = [0, 1, 0], sizes = [8, 8, 32], strides = [1, 1, 1]} : vector<10x10x32xf32> to vector<8x8x32xf32>
    %141 = vector.shape_cast %140 : vector<8x8x32xf32> to vector<64x32xf32>
    %c1_89 = arith.constant 1 : index
    %c0_90 = arith.constant 0 : index
    %c0_91 = arith.constant 0 : index
    %142 = vector.load %arg5[%c1_89, %c0_90, %c0_91] : memref<9x32x64xf32, #tpu.memory_space<vmem>>, vector<1x32x64xf32>
    %143 = vector.shape_cast %142 : vector<1x32x64xf32> to vector<32x64xf32>
    %cst_92 = arith.constant dense<0.000000e+00> : vector<64x64xf32>
    %144 = tpu.matmul %141, %143, %cst_92 {dimension_numbers = #tpu.dot_dimension_numbers<[1], [0], [0], [1], [0, 0, 1, 1], [], []>} : vector<64x32xf32>, vector<32x64xf32>, vector<64x64xf32> -> vector<64x64xf32>
    %145 = arith.addf %139, %144 : vector<64x64xf32>
    %146 = vector.extract_strided_slice %134 {offsets = [0, 2, 0], sizes = [8, 8, 32], strides = [1, 1, 1]} : vector<10x10x32xf32> to vector<8x8x32xf32>
    %147 = vector.shape_cast %146 : vector<8x8x32xf32> to vector<64x32xf32>
    %c2_93 = arith.constant 2 : index
    %c0_94 = arith.constant 0 : index
    %c0_95 = arith.constant 0 : index
    %148 = vector.load %arg5[%c2_93, %c0_94, %c0_95] : memref<9x32x64xf32, #tpu.memory_space<vmem>>, vector<1x32x64xf32>
    %149 = vector.shape_cast %148 : vector<1x32x64xf32> to vector<32x64xf32>
    %cst_96 = arith.constant dense<0.000000e+00> : vector<64x64xf32>
    %150 = tpu.matmul %147, %149, %cst_96 {dimension_numbers = #tpu.dot_dimension_numbers<[1], [0], [0], [1], [0, 0, 1, 1], [], []>} : vector<64x32xf32>, vector<32x64xf32>, vector<64x64xf32> -> vector<64x64xf32>
    %151 = arith.addf %145, %150 : vector<64x64xf32>
    %152 = vector.extract_strided_slice %134 {offsets = [1, 0, 0], sizes = [8, 8, 32], strides = [1, 1, 1]} : vector<10x10x32xf32> to vector<8x8x32xf32>
    %153 = vector.shape_cast %152 : vector<8x8x32xf32> to vector<64x32xf32>
    %c3_97 = arith.constant 3 : index
    %c0_98 = arith.constant 0 : index
    %c0_99 = arith.constant 0 : index
    %154 = vector.load %arg5[%c3_97, %c0_98, %c0_99] : memref<9x32x64xf32, #tpu.memory_space<vmem>>, vector<1x32x64xf32>
    %155 = vector.shape_cast %154 : vector<1x32x64xf32> to vector<32x64xf32>
    %cst_100 = arith.constant dense<0.000000e+00> : vector<64x64xf32>
    %156 = tpu.matmul %153, %155, %cst_100 {dimension_numbers = #tpu.dot_dimension_numbers<[1], [0], [0], [1], [0, 0, 1, 1], [], []>} : vector<64x32xf32>, vector<32x64xf32>, vector<64x64xf32> -> vector<64x64xf32>
    %157 = arith.addf %151, %156 : vector<64x64xf32>
    %158 = vector.extract_strided_slice %134 {offsets = [1, 1, 0], sizes = [8, 8, 32], strides = [1, 1, 1]} : vector<10x10x32xf32> to vector<8x8x32xf32>
    %159 = vector.shape_cast %158 : vector<8x8x32xf32> to vector<64x32xf32>
    %c4_101 = arith.constant 4 : index
    %c0_102 = arith.constant 0 : index
    %c0_103 = arith.constant 0 : index
    %160 = vector.load %arg5[%c4_101, %c0_102, %c0_103] : memref<9x32x64xf32, #tpu.memory_space<vmem>>, vector<1x32x64xf32>
    %161 = vector.shape_cast %160 : vector<1x32x64xf32> to vector<32x64xf32>
    %cst_104 = arith.constant dense<0.000000e+00> : vector<64x64xf32>
    %162 = tpu.matmul %159, %161, %cst_104 {dimension_numbers = #tpu.dot_dimension_numbers<[1], [0], [0], [1], [0, 0, 1, 1], [], []>} : vector<64x32xf32>, vector<32x64xf32>, vector<64x64xf32> -> vector<64x64xf32>
    %163 = arith.addf %157, %162 : vector<64x64xf32>
    %164 = vector.extract_strided_slice %134 {offsets = [1, 2, 0], sizes = [8, 8, 32], strides = [1, 1, 1]} : vector<10x10x32xf32> to vector<8x8x32xf32>
    %165 = vector.shape_cast %164 : vector<8x8x32xf32> to vector<64x32xf32>
    %c5_105 = arith.constant 5 : index
    %c0_106 = arith.constant 0 : index
    %c0_107 = arith.constant 0 : index
    %166 = vector.load %arg5[%c5_105, %c0_106, %c0_107] : memref<9x32x64xf32, #tpu.memory_space<vmem>>, vector<1x32x64xf32>
    %167 = vector.shape_cast %166 : vector<1x32x64xf32> to vector<32x64xf32>
    %cst_108 = arith.constant dense<0.000000e+00> : vector<64x64xf32>
    %168 = tpu.matmul %165, %167, %cst_108 {dimension_numbers = #tpu.dot_dimension_numbers<[1], [0], [0], [1], [0, 0, 1, 1], [], []>} : vector<64x32xf32>, vector<32x64xf32>, vector<64x64xf32> -> vector<64x64xf32>
    %169 = arith.addf %163, %168 : vector<64x64xf32>
    %170 = vector.extract_strided_slice %134 {offsets = [2, 0, 0], sizes = [8, 8, 32], strides = [1, 1, 1]} : vector<10x10x32xf32> to vector<8x8x32xf32>
    %171 = vector.shape_cast %170 : vector<8x8x32xf32> to vector<64x32xf32>
    %c6_109 = arith.constant 6 : index
    %c0_110 = arith.constant 0 : index
    %c0_111 = arith.constant 0 : index
    %172 = vector.load %arg5[%c6_109, %c0_110, %c0_111] : memref<9x32x64xf32, #tpu.memory_space<vmem>>, vector<1x32x64xf32>
    %173 = vector.shape_cast %172 : vector<1x32x64xf32> to vector<32x64xf32>
    %cst_112 = arith.constant dense<0.000000e+00> : vector<64x64xf32>
    %174 = tpu.matmul %171, %173, %cst_112 {dimension_numbers = #tpu.dot_dimension_numbers<[1], [0], [0], [1], [0, 0, 1, 1], [], []>} : vector<64x32xf32>, vector<32x64xf32>, vector<64x64xf32> -> vector<64x64xf32>
    %175 = arith.addf %169, %174 : vector<64x64xf32>
    %176 = vector.extract_strided_slice %134 {offsets = [2, 1, 0], sizes = [8, 8, 32], strides = [1, 1, 1]} : vector<10x10x32xf32> to vector<8x8x32xf32>
    %177 = vector.shape_cast %176 : vector<8x8x32xf32> to vector<64x32xf32>
    %c7_113 = arith.constant 7 : index
    %c0_114 = arith.constant 0 : index
    %c0_115 = arith.constant 0 : index
    %178 = vector.load %arg5[%c7_113, %c0_114, %c0_115] : memref<9x32x64xf32, #tpu.memory_space<vmem>>, vector<1x32x64xf32>
    %179 = vector.shape_cast %178 : vector<1x32x64xf32> to vector<32x64xf32>
    %cst_116 = arith.constant dense<0.000000e+00> : vector<64x64xf32>
    %180 = tpu.matmul %177, %179, %cst_116 {dimension_numbers = #tpu.dot_dimension_numbers<[1], [0], [0], [1], [0, 0, 1, 1], [], []>} : vector<64x32xf32>, vector<32x64xf32>, vector<64x64xf32> -> vector<64x64xf32>
    %181 = arith.addf %175, %180 : vector<64x64xf32>
    %182 = vector.extract_strided_slice %134 {offsets = [2, 2, 0], sizes = [8, 8, 32], strides = [1, 1, 1]} : vector<10x10x32xf32> to vector<8x8x32xf32>
    %183 = vector.shape_cast %182 : vector<8x8x32xf32> to vector<64x32xf32>
    %c8_117 = arith.constant 8 : index
    %c0_118 = arith.constant 0 : index
    %c0_119 = arith.constant 0 : index
    %184 = vector.load %arg5[%c8_117, %c0_118, %c0_119] : memref<9x32x64xf32, #tpu.memory_space<vmem>>, vector<1x32x64xf32>
    %185 = vector.shape_cast %184 : vector<1x32x64xf32> to vector<32x64xf32>
    %cst_120 = arith.constant dense<0.000000e+00> : vector<64x64xf32>
    %186 = tpu.matmul %183, %185, %cst_120 {dimension_numbers = #tpu.dot_dimension_numbers<[1], [0], [0], [1], [0, 0, 1, 1], [], []>} : vector<64x32xf32>, vector<32x64xf32>, vector<64x64xf32> -> vector<64x64xf32>
    %187 = arith.addf %181, %186 : vector<64x64xf32>
    %c0_121 = arith.constant 0 : index
    %c0_122 = arith.constant 0 : index
    %188 = vector.load %arg6[%c0_121, %c0_122] : memref<1x64xf32, #tpu.memory_space<vmem>>, vector<1x64xf32>
    %189 = vector.broadcast %188 : vector<1x64xf32> to vector<64x64xf32>
    %190 = arith.addf %187, %189 : vector<64x64xf32>
    %cst_123 = arith.constant 0.000000e+00 : f32
    %191 = vector.broadcast %cst_123 : f32 to vector<64x64xf32>
    %192 = arith.maximumf %190, %191 : vector<64x64xf32>
    %193 = vector.shape_cast %192 : vector<64x64xf32> to vector<8x8x64xf32>
    %194 = vector.shape_cast %193 : vector<8x8x64xf32> to vector<4x2x8x64xf32>
    %cst_124 = arith.constant dense<0xFF800000> : vector<4x8x64xf32>
    %195 = vector.multi_reduction <maximumf>, %194, %cst_124 [1] : vector<4x2x8x64xf32> to vector<4x8x64xf32>
    %196 = vector.extract_strided_slice %195 {offsets = [0, 0, 0], sizes = [1, 1, 64], strides = [1, 1, 1]} : vector<4x8x64xf32> to vector<1x1x64xf32>
    %197 = vector.shape_cast %196 : vector<1x1x64xf32> to vector<1x64xf32>
    %198 = vector.extract_strided_slice %195 {offsets = [0, 1, 0], sizes = [1, 1, 64], strides = [1, 1, 1]} : vector<4x8x64xf32> to vector<1x1x64xf32>
    %199 = vector.shape_cast %198 : vector<1x1x64xf32> to vector<1x64xf32>
    %200 = arith.maximumf %197, %199 : vector<1x64xf32>
    %201 = vector.extract_strided_slice %195 {offsets = [0, 2, 0], sizes = [1, 1, 64], strides = [1, 1, 1]} : vector<4x8x64xf32> to vector<1x1x64xf32>
    %202 = vector.shape_cast %201 : vector<1x1x64xf32> to vector<1x64xf32>
    %203 = vector.extract_strided_slice %195 {offsets = [0, 3, 0], sizes = [1, 1, 64], strides = [1, 1, 1]} : vector<4x8x64xf32> to vector<1x1x64xf32>
    %204 = vector.shape_cast %203 : vector<1x1x64xf32> to vector<1x64xf32>
    %205 = arith.maximumf %202, %204 : vector<1x64xf32>
    %206 = vector.extract_strided_slice %195 {offsets = [0, 4, 0], sizes = [1, 1, 64], strides = [1, 1, 1]} : vector<4x8x64xf32> to vector<1x1x64xf32>
    %207 = vector.shape_cast %206 : vector<1x1x64xf32> to vector<1x64xf32>
    %208 = vector.extract_strided_slice %195 {offsets = [0, 5, 0], sizes = [1, 1, 64], strides = [1, 1, 1]} : vector<4x8x64xf32> to vector<1x1x64xf32>
    %209 = vector.shape_cast %208 : vector<1x1x64xf32> to vector<1x64xf32>
    %210 = arith.maximumf %207, %209 : vector<1x64xf32>
    %211 = vector.extract_strided_slice %195 {offsets = [0, 6, 0], sizes = [1, 1, 64], strides = [1, 1, 1]} : vector<4x8x64xf32> to vector<1x1x64xf32>
    %212 = vector.shape_cast %211 : vector<1x1x64xf32> to vector<1x64xf32>
    %213 = vector.extract_strided_slice %195 {offsets = [0, 7, 0], sizes = [1, 1, 64], strides = [1, 1, 1]} : vector<4x8x64xf32> to vector<1x1x64xf32>
    %214 = vector.shape_cast %213 : vector<1x1x64xf32> to vector<1x64xf32>
    %215 = arith.maximumf %212, %214 : vector<1x64xf32>
    %216 = vector.extract_strided_slice %195 {offsets = [1, 0, 0], sizes = [1, 1, 64], strides = [1, 1, 1]} : vector<4x8x64xf32> to vector<1x1x64xf32>
    %217 = vector.shape_cast %216 : vector<1x1x64xf32> to vector<1x64xf32>
    %218 = vector.extract_strided_slice %195 {offsets = [1, 1, 0], sizes = [1, 1, 64], strides = [1, 1, 1]} : vector<4x8x64xf32> to vector<1x1x64xf32>
    %219 = vector.shape_cast %218 : vector<1x1x64xf32> to vector<1x64xf32>
    %220 = arith.maximumf %217, %219 : vector<1x64xf32>
    %221 = vector.extract_strided_slice %195 {offsets = [1, 2, 0], sizes = [1, 1, 64], strides = [1, 1, 1]} : vector<4x8x64xf32> to vector<1x1x64xf32>
    %222 = vector.shape_cast %221 : vector<1x1x64xf32> to vector<1x64xf32>
    %223 = vector.extract_strided_slice %195 {offsets = [1, 3, 0], sizes = [1, 1, 64], strides = [1, 1, 1]} : vector<4x8x64xf32> to vector<1x1x64xf32>
    %224 = vector.shape_cast %223 : vector<1x1x64xf32> to vector<1x64xf32>
    %225 = arith.maximumf %222, %224 : vector<1x64xf32>
    %226 = vector.extract_strided_slice %195 {offsets = [1, 4, 0], sizes = [1, 1, 64], strides = [1, 1, 1]} : vector<4x8x64xf32> to vector<1x1x64xf32>
    %227 = vector.shape_cast %226 : vector<1x1x64xf32> to vector<1x64xf32>
    %228 = vector.extract_strided_slice %195 {offsets = [1, 5, 0], sizes = [1, 1, 64], strides = [1, 1, 1]} : vector<4x8x64xf32> to vector<1x1x64xf32>
    %229 = vector.shape_cast %228 : vector<1x1x64xf32> to vector<1x64xf32>
    %230 = arith.maximumf %227, %229 : vector<1x64xf32>
    %231 = vector.extract_strided_slice %195 {offsets = [1, 6, 0], sizes = [1, 1, 64], strides = [1, 1, 1]} : vector<4x8x64xf32> to vector<1x1x64xf32>
    %232 = vector.shape_cast %231 : vector<1x1x64xf32> to vector<1x64xf32>
    %233 = vector.extract_strided_slice %195 {offsets = [1, 7, 0], sizes = [1, 1, 64], strides = [1, 1, 1]} : vector<4x8x64xf32> to vector<1x1x64xf32>
    %234 = vector.shape_cast %233 : vector<1x1x64xf32> to vector<1x64xf32>
    %235 = arith.maximumf %232, %234 : vector<1x64xf32>
    %236 = vector.extract_strided_slice %195 {offsets = [2, 0, 0], sizes = [1, 1, 64], strides = [1, 1, 1]} : vector<4x8x64xf32> to vector<1x1x64xf32>
    %237 = vector.shape_cast %236 : vector<1x1x64xf32> to vector<1x64xf32>
    %238 = vector.extract_strided_slice %195 {offsets = [2, 1, 0], sizes = [1, 1, 64], strides = [1, 1, 1]} : vector<4x8x64xf32> to vector<1x1x64xf32>
    %239 = vector.shape_cast %238 : vector<1x1x64xf32> to vector<1x64xf32>
    %240 = arith.maximumf %237, %239 : vector<1x64xf32>
    %241 = vector.extract_strided_slice %195 {offsets = [2, 2, 0], sizes = [1, 1, 64], strides = [1, 1, 1]} : vector<4x8x64xf32> to vector<1x1x64xf32>
    %242 = vector.shape_cast %241 : vector<1x1x64xf32> to vector<1x64xf32>
    %243 = vector.extract_strided_slice %195 {offsets = [2, 3, 0], sizes = [1, 1, 64], strides = [1, 1, 1]} : vector<4x8x64xf32> to vector<1x1x64xf32>
    %244 = vector.shape_cast %243 : vector<1x1x64xf32> to vector<1x64xf32>
    %245 = arith.maximumf %242, %244 : vector<1x64xf32>
    %246 = vector.extract_strided_slice %195 {offsets = [2, 4, 0], sizes = [1, 1, 64], strides = [1, 1, 1]} : vector<4x8x64xf32> to vector<1x1x64xf32>
    %247 = vector.shape_cast %246 : vector<1x1x64xf32> to vector<1x64xf32>
    %248 = vector.extract_strided_slice %195 {offsets = [2, 5, 0], sizes = [1, 1, 64], strides = [1, 1, 1]} : vector<4x8x64xf32> to vector<1x1x64xf32>
    %249 = vector.shape_cast %248 : vector<1x1x64xf32> to vector<1x64xf32>
    %250 = arith.maximumf %247, %249 : vector<1x64xf32>
    %251 = vector.extract_strided_slice %195 {offsets = [2, 6, 0], sizes = [1, 1, 64], strides = [1, 1, 1]} : vector<4x8x64xf32> to vector<1x1x64xf32>
    %252 = vector.shape_cast %251 : vector<1x1x64xf32> to vector<1x64xf32>
    %253 = vector.extract_strided_slice %195 {offsets = [2, 7, 0], sizes = [1, 1, 64], strides = [1, 1, 1]} : vector<4x8x64xf32> to vector<1x1x64xf32>
    %254 = vector.shape_cast %253 : vector<1x1x64xf32> to vector<1x64xf32>
    %255 = arith.maximumf %252, %254 : vector<1x64xf32>
    %256 = vector.extract_strided_slice %195 {offsets = [3, 0, 0], sizes = [1, 1, 64], strides = [1, 1, 1]} : vector<4x8x64xf32> to vector<1x1x64xf32>
    %257 = vector.shape_cast %256 : vector<1x1x64xf32> to vector<1x64xf32>
    %258 = vector.extract_strided_slice %195 {offsets = [3, 1, 0], sizes = [1, 1, 64], strides = [1, 1, 1]} : vector<4x8x64xf32> to vector<1x1x64xf32>
    %259 = vector.shape_cast %258 : vector<1x1x64xf32> to vector<1x64xf32>
    %260 = arith.maximumf %257, %259 : vector<1x64xf32>
    %261 = vector.extract_strided_slice %195 {offsets = [3, 2, 0], sizes = [1, 1, 64], strides = [1, 1, 1]} : vector<4x8x64xf32> to vector<1x1x64xf32>
    %262 = vector.shape_cast %261 : vector<1x1x64xf32> to vector<1x64xf32>
    %263 = vector.extract_strided_slice %195 {offsets = [3, 3, 0], sizes = [1, 1, 64], strides = [1, 1, 1]} : vector<4x8x64xf32> to vector<1x1x64xf32>
    %264 = vector.shape_cast %263 : vector<1x1x64xf32> to vector<1x64xf32>
    %265 = arith.maximumf %262, %264 : vector<1x64xf32>
    %266 = vector.extract_strided_slice %195 {offsets = [3, 4, 0], sizes = [1, 1, 64], strides = [1, 1, 1]} : vector<4x8x64xf32> to vector<1x1x64xf32>
    %267 = vector.shape_cast %266 : vector<1x1x64xf32> to vector<1x64xf32>
    %268 = vector.extract_strided_slice %195 {offsets = [3, 5, 0], sizes = [1, 1, 64], strides = [1, 1, 1]} : vector<4x8x64xf32> to vector<1x1x64xf32>
    %269 = vector.shape_cast %268 : vector<1x1x64xf32> to vector<1x64xf32>
    %270 = arith.maximumf %267, %269 : vector<1x64xf32>
    %271 = vector.extract_strided_slice %195 {offsets = [3, 6, 0], sizes = [1, 1, 64], strides = [1, 1, 1]} : vector<4x8x64xf32> to vector<1x1x64xf32>
    %272 = vector.shape_cast %271 : vector<1x1x64xf32> to vector<1x64xf32>
    %273 = vector.extract_strided_slice %195 {offsets = [3, 7, 0], sizes = [1, 1, 64], strides = [1, 1, 1]} : vector<4x8x64xf32> to vector<1x1x64xf32>
    %274 = vector.shape_cast %273 : vector<1x1x64xf32> to vector<1x64xf32>
    %275 = arith.maximumf %272, %274 : vector<1x64xf32>
    %276 = tpu.concatenate %200, %205, %210, %215, %220, %225, %230, %235, %240, %245, %250, %255, %260, %265, %270, %275 in 1 : vector<1x64xf32>, vector<1x64xf32>, vector<1x64xf32>, vector<1x64xf32>, vector<1x64xf32>, vector<1x64xf32>, vector<1x64xf32>, vector<1x64xf32>, vector<1x64xf32>, vector<1x64xf32>, vector<1x64xf32>, vector<1x64xf32>, vector<1x64xf32>, vector<1x64xf32>, vector<1x64xf32>, vector<1x64xf32> -> vector<1x1024xf32>
    %c0_125 = arith.constant 0 : index
    %c0_126 = arith.constant 0 : index
    %c0_127 = arith.constant 0 : index
    %277 = vector.load %arg2[%c0_125, %c0_126, %c0_127] : memref<1x1x8xf32, #tpu.memory_space<vmem>>, vector<1x1x8xf32>
    %278 = vector.shape_cast %277 : vector<1x1x8xf32> to vector<1x8xf32>
    %c0_128 = arith.constant 0 : index
    %c0_129 = arith.constant 0 : index
    %279 = vector.load %arg7[%c0_128, %c0_129] : memref<8x64xf32, #tpu.memory_space<vmem>>, vector<8x64xf32>
    %cst_130 = arith.constant dense<0.000000e+00> : vector<1x64xf32>
    %280 = tpu.matmul %278, %279, %cst_130 {dimension_numbers = #tpu.dot_dimension_numbers<[1], [0], [0], [1], [0, 0, 1, 1], [], []>} : vector<1x8xf32>, vector<8x64xf32>, vector<1x64xf32> -> vector<1x64xf32>
    %c0_131 = arith.constant 0 : index
    %c0_132 = arith.constant 0 : index
    %281 = vector.load %arg8[%c0_131, %c0_132] : memref<1x64xf32, #tpu.memory_space<vmem>>, vector<1x64xf32>
    %282 = arith.addf %280, %281 : vector<1x64xf32>
    %cst_133 = arith.constant 0.000000e+00 : f32
    %283 = vector.broadcast %cst_133 : f32 to vector<1x64xf32>
    %284 = arith.maximumf %282, %283 : vector<1x64xf32>
    %c0_134 = arith.constant 0 : index
    %c0_135 = arith.constant 0 : index
    %285 = vector.load %arg9[%c0_134, %c0_135] : memref<1024x32xf32, #tpu.memory_space<vmem>>, vector<1024x32xf32>
    %cst_136 = arith.constant dense<0.000000e+00> : vector<1x32xf32>
    %286 = tpu.matmul %276, %285, %cst_136 {dimension_numbers = #tpu.dot_dimension_numbers<[1], [0], [0], [1], [0, 0, 1, 1], [], []>} : vector<1x1024xf32>, vector<1024x32xf32>, vector<1x32xf32> -> vector<1x32xf32>
    %c0_137 = arith.constant 0 : index
    %c0_138 = arith.constant 0 : index
    %287 = vector.load %arg10[%c0_137, %c0_138] : memref<64x32xf32, #tpu.memory_space<vmem>>, vector<64x32xf32>
    %cst_139 = arith.constant dense<0.000000e+00> : vector<1x32xf32>
    %288 = tpu.matmul %284, %287, %cst_139 {dimension_numbers = #tpu.dot_dimension_numbers<[1], [0], [0], [1], [0, 0, 1, 1], [], []>} : vector<1x64xf32>, vector<64x32xf32>, vector<1x32xf32> -> vector<1x32xf32>
    %289 = arith.addf %286, %288 : vector<1x32xf32>
    %c0_140 = arith.constant 0 : index
    %c0_141 = arith.constant 0 : index
    %290 = vector.load %arg11[%c0_140, %c0_141] : memref<1x32xf32, #tpu.memory_space<vmem>>, vector<1x32xf32>
    %291 = arith.addf %289, %290 : vector<1x32xf32>
    %cst_142 = arith.constant 0.000000e+00 : f32
    %292 = vector.broadcast %cst_142 : f32 to vector<1x32xf32>
    %293 = arith.maximumf %291, %292 : vector<1x32xf32>
    %c0_143 = arith.constant 0 : index
    %c0_144 = arith.constant 0 : index
    %294 = vector.load %arg12[%c0_143, %c0_144] : memref<32x128xf32, #tpu.memory_space<vmem>>, vector<32x128xf32>
    %cst_145 = arith.constant dense<0.000000e+00> : vector<1x128xf32>
    %295 = tpu.matmul %293, %294, %cst_145 {dimension_numbers = #tpu.dot_dimension_numbers<[1], [0], [0], [1], [0, 0, 1, 1], [], []>} : vector<1x32xf32>, vector<32x128xf32>, vector<1x128xf32> -> vector<1x128xf32>
    %c0_146 = arith.constant 0 : index
    %c0_147 = arith.constant 0 : index
    %296 = vector.load %arg13[%c0_146, %c0_147] : memref<1x128xf32, #tpu.memory_space<vmem>>, vector<1x128xf32>
    %297 = arith.addf %295, %296 : vector<1x128xf32>
    %298 = tpu.iota {dimensions = array<i32: 1>} : vector<1x128xi32>
    %c6_i32 = arith.constant 6 : i32
    %299 = vector.broadcast %c6_i32 : i32 to vector<1x128xi32>
    %300 = arith.cmpi slt, %298, %299 : vector<1x128xi32>
    %cst_148 = arith.constant 0xFF800000 : f32
    %301 = vector.broadcast %cst_148 : f32 to vector<1x128xf32>
    %302 = arith.select %300, %297, %301 : vector<1x128xi1>, vector<1x128xf32>
    %cst_149 = arith.constant dense<0xFF800000> : vector<1xf32>
    %303 = vector.multi_reduction <maximumf>, %302, %cst_149 [1] : vector<1x128xf32> to vector<1xf32>
    %304 = vector.shape_cast %303 : vector<1xf32> to vector<1x1xf32>
    %305 = vector.broadcast %304 : vector<1x1xf32> to vector<1x128xf32>
    %306 = arith.subf %302, %305 : vector<1x128xf32>
    %307 = math.exp %306 : vector<1x128xf32>
    %cst_150 = arith.constant dense<0.000000e+00> : vector<1xf32>
    %308 = vector.multi_reduction <add>, %307, %cst_150 [1] : vector<1x128xf32> to vector<1xf32>
    %309 = vector.shape_cast %308 : vector<1xf32> to vector<1x1xf32>
    %310 = tpu.reciprocal %309 {approx = true} : vector<1x1xf32> -> vector<1x1xf32>
    %311 = arith.mulf %309, %310 : vector<1x1xf32>
    %cst_151 = arith.constant 2.000000e+00 : f32
    %312 = vector.broadcast %cst_151 : f32 to vector<1x1xf32>
    %313 = arith.subf %312, %311 : vector<1x1xf32>
    %314 = arith.mulf %310, %313 : vector<1x1xf32>
    %315 = vector.broadcast %314 : vector<1x1xf32> to vector<1x128xf32>
    %316 = arith.mulf %307, %315 : vector<1x128xf32>
    %317 = arith.select %300, %316, %297 : vector<1x128xi1>, vector<1x128xf32>
    %c0_152 = arith.constant 0 : index
    %c0_153 = arith.constant 0 : index
    %c0_154 = arith.constant 0 : index
    %318 = vector.load %arg14[%c0_152, %c0_153, %c0_154] : memref<1x1x128xf32, #tpu.memory_space<vmem>>, vector<1x1x128xf32>
    %319 = vector.shape_cast %318 : vector<1x1x128xf32> to vector<1x128xf32>
    %320 = vector.shape_cast %317 : vector<1x128xf32> to vector<1x1x128xf32>
    tpu.vector_store %arg14[%c0_152, %c0_153, %c0_154], %320 {strides = array<i32>} : memref<1x1x128xf32, #tpu.memory_space<vmem>>, vector<1x1x128xf32>,
    return
  }
  func.func @transform_0(%arg0: i32) -> (i32, i32, i32, i32) {
    %c0_i32 = arith.constant 0 : i32
    %c0_i32_0 = arith.constant 0 : i32
    %c0_i32_1 = arith.constant 0 : i32
    %c0_i32_2 = arith.constant 0 : i32
    return %arg0, %c0_i32, %c0_i32_0, %c0_i32_1 : i32, i32, i32, i32
  }
  func.func @transform_1(%arg0: i32) -> (i32, i32, i32) {
    %c0_i32 = arith.constant 0 : i32
    %c0_i32_0 = arith.constant 0 : i32
    %c0_i32_1 = arith.constant 0 : i32
    return %arg0, %c0_i32, %c0_i32_0 : i32, i32, i32
  }
  func.func @transform_2(%arg0: i32) -> (i32, i32) {
    %c0_i32 = arith.constant 0 : i32
    %c0_i32_0 = arith.constant 0 : i32
    %c0_i32_1 = arith.constant 0 : i32
    return %c0_i32, %c0_i32_0 : i32, i32
  }
  func.func @transform_3(%arg0: i32) -> (i32, i32) {
    %c0_i32 = arith.constant 0 : i32
    %c0_i32_0 = arith.constant 0 : i32
    %c0_i32_1 = arith.constant 0 : i32
    return %c0_i32, %c0_i32_0 : i32, i32
  }
  func.func @transform_4(%arg0: i32) -> (i32, i32, i32) {
    %c0_i32 = arith.constant 0 : i32
    %c0_i32_0 = arith.constant 0 : i32
    %c0_i32_1 = arith.constant 0 : i32
    %c0_i32_2 = arith.constant 0 : i32
    return %c0_i32, %c0_i32_0, %c0_i32_1 : i32, i32, i32
  }
  func.func @transform_5(%arg0: i32) -> (i32, i32) {
    %c0_i32 = arith.constant 0 : i32
    %c0_i32_0 = arith.constant 0 : i32
    %c0_i32_1 = arith.constant 0 : i32
    return %c0_i32, %c0_i32_0 : i32, i32
  }
  func.func @transform_6(%arg0: i32) -> (i32, i32) {
    %c0_i32 = arith.constant 0 : i32
    %c0_i32_0 = arith.constant 0 : i32
    %c0_i32_1 = arith.constant 0 : i32
    return %c0_i32, %c0_i32_0 : i32, i32
  }
  func.func @transform_7(%arg0: i32) -> (i32, i32) {
    %c0_i32 = arith.constant 0 : i32
    %c0_i32_0 = arith.constant 0 : i32
    %c0_i32_1 = arith.constant 0 : i32
    return %c0_i32, %c0_i32_0 : i32, i32
  }
  func.func @transform_8(%arg0: i32) -> (i32, i32) {
    %c0_i32 = arith.constant 0 : i32
    %c0_i32_0 = arith.constant 0 : i32
    %c0_i32_1 = arith.constant 0 : i32
    return %c0_i32, %c0_i32_0 : i32, i32
  }
  func.func @transform_9(%arg0: i32) -> (i32, i32) {
    %c0_i32 = arith.constant 0 : i32
    %c0_i32_0 = arith.constant 0 : i32
    %c0_i32_1 = arith.constant 0 : i32
    return %c0_i32, %c0_i32_0 : i32, i32
  }
  func.func @transform_10(%arg0: i32) -> (i32, i32) {
    %c0_i32 = arith.constant 0 : i32
    %c0_i32_0 = arith.constant 0 : i32
    %c0_i32_1 = arith.constant 0 : i32
    return %c0_i32, %c0_i32_0 : i32, i32
  }
  func.func @transform_11(%arg0: i32) -> (i32, i32) {
    %c0_i32 = arith.constant 0 : i32
    %c0_i32_0 = arith.constant 0 : i32
    %c0_i32_1 = arith.constant 0 : i32
    return %c0_i32, %c0_i32_0 : i32, i32
  }
  func.func @transform_12(%arg0: i32) -> (i32, i32) {
    %c0_i32 = arith.constant 0 : i32
    %c0_i32_0 = arith.constant 0 : i32
    %c0_i32_1 = arith.constant 0 : i32
    return %c0_i32, %c0_i32_0 : i32, i32
  }
  func.func @transform_13(%arg0: i32) -> (i32, i32, i32) {
    %c0_i32 = arith.constant 0 : i32
    %c0_i32_0 = arith.constant 0 : i32
    %c0_i32_1 = arith.constant 0 : i32
    return %arg0, %c0_i32, %c0_i32_0 : i32, i32, i32
  }
}

</mosaic_0001>

<llo_original>
// kernel: actor_critic_forward.1
$region0: #{actor_critic_forward.1}
  #allocation0 [shape = 'u32[]', space=smem, size = 0x4, offset = 0x4, fixed_abs, tag = 'smem constant byte address 0x4 - core index']
  #allocation1 [shape = 'u32[144,128]{1,0:T(1,128)}', space=vmem, size = 0x12000, scoped, tag = 'internal scratch']
  %s0 = inlined_call_operand.vmem [shape: f32[2,36,9,32], index: 0, kind: input, shape index: {}]
  %s1 = inlined_call_operand.vmem [shape: f32[2,1,8], index: 1, kind: input, shape index: {}]
  %s2 = inlined_call_operand.vmem [shape: f32[9,32], index: 2, kind: input, shape index: {}]
  %s3 = inlined_call_operand.vmem [shape: f32[1,32], index: 3, kind: input, shape index: {}]
  %s4 = inlined_call_operand.vmem [shape: f32[9,32,64], index: 4, kind: input, shape index: {}]
  %s5 = inlined_call_operand.vmem [shape: f32[1,64], index: 5, kind: input, shape index: {}]
  %s6 = inlined_call_operand.vmem [shape: f32[8,64], index: 6, kind: input, shape index: {}]
  %s7 = inlined_call_operand.vmem [shape: f32[1,64], index: 7, kind: input, shape index: {}]
  %s8 = inlined_call_operand.vmem [shape: f32[1024,32], index: 8, kind: input, shape index: {}]
  %s9 = inlined_call_operand.vmem [shape: f32[64,32], index: 9, kind: input, shape index: {}]
  %s10 = inlined_call_operand.vmem [shape: f32[1,32], index: 10, kind: input, shape index: {}]
  %s11 = inlined_call_operand.vmem [shape: f32[32,128], index: 11, kind: input, shape index: {}]
  %s12 = inlined_call_operand.vmem [shape: f32[1,128], index: 12, kind: input, shape index: {}]
  %s13 = inlined_call_operand.vmem [shape: f32[2,1,128], index: 13, kind: output, shape index: {}]
  %s14 = sld [smem:[#allocation0]]
  $region85: #{actor_critic_forward.1} parent=0
    _
  %s16 = ssub.s32 1, %s14
  %s17 = scalar_select 0, %s16, %s14
  loop: start=0, step=1, limit=4
  $region2: #{actor_critic_forward.1} parent=0 // loop_pre_header
    _
  $region3: #{actor_critic_forward.1} parent=0 // loop_header
    %s19 = sphi 0, %s23
    %p20 = scmp.ge.s32.totalorder %s19, 4
    %s29 = sphi 0, %s31
    %s32 = sphi 0, %s29
    %s33 = sphi 0, %s32
    %s49 = sphi 0, %s33
    %s55 = sphi 0, %s57
    %s58 = sphi 0, %s55
    %s59 = sphi 0, %s58
    %s75 = sphi 0, %s59
    %s79 = sphi 0, %s79
    %s81 = sphi 0, %s79
    %s82 = sphi 0, %s81
    %s96 = sphi 0, %s82
    %s100 = sphi 0, %s100
    %s102 = sphi 0, %s100
    %s103 = sphi 0, %s102
    %s117 = sphi 0, %s103
    %s121 = sphi 0, %s121
    %s123 = sphi 0, %s121
    %s124 = sphi 0, %s123
    %s138 = sphi 0, %s124
    %s142 = sphi 0, %s142
    %s144 = sphi 0, %s142
    %s145 = sphi 0, %s144
    %s159 = sphi 0, %s145
    %s163 = sphi 0, %s163
    %s165 = sphi 0, %s163
    %s166 = sphi 0, %s165
    %s180 = sphi 0, %s166
    %s184 = sphi 0, %s184
    %s186 = sphi 0, %s184
    %s187 = sphi 0, %s186
    %s201 = sphi 0, %s187
    %s205 = sphi 0, %s205
    %s207 = sphi 0, %s205
    %s208 = sphi 0, %s207
    %s222 = sphi 0, %s208
    %s226 = sphi 0, %s226
    %s228 = sphi 0, %s226
    %s229 = sphi 0, %s228
    %s243 = sphi 0, %s229
    %s247 = sphi 0, %s247
    %s249 = sphi 0, %s247
    %s250 = sphi 0, %s249
    %s264 = sphi 0, %s250
    %s268 = sphi 0, %s268
    %s270 = sphi 0, %s268
    %s271 = sphi 0, %s270
    %s285 = sphi 0, %s271
    %s289 = sphi 0, %s289
    %s291 = sphi 0, %s289
    %s292 = sphi 0, %s291
    %s306 = sphi 0, %s292
    %s312 = sphi 0, %s314
    %s315 = sphi 0, %s312
    %s316 = sphi 0, %s315
    %s332 = sphi 0, %s316
  $region4: #{actor_critic_forward.1} parent=0 // loop_header_branch
    %22 = sbr.rel (%p20) target = $region8
  $region5: #{actor_critic_forward.1} parent=0 // loop_body
    %s24 = ssub.s32 %s19, 1
    %s25 = ssub.s32 %s19, 2
    %s26 = sadd.s32 %s19, 1
    %s27 = ssub.s32 %s19, %s26
    %p28 = scmp.eq.s32.totalorder %s27, 0
    %s30 = sadd.s32 %s29, 1
    %s31 = scalar_select %p28, %s29, %s30
    %p34 = pneg %p28
    %p35 = scmp.eq.s32.totalorder %s19, 1
    %p36 = por %p34, %p35
    %p37 = scmp.ne.s32.totalorder %s29, %s32
    %p38 = scmp.eq.s32.totalorder %s19, 0
    %p39 = por %p37, %p38
    %p40 = scmp.ne.s32.totalorder %s29, %s32
    %p41 = scmp.eq.s32.totalorder %s24, 1
    %p42 = por %p40, %p41
    %p43 = scmp.ne.s32.totalorder %s32, %s33
    %p44 = scmp.eq.s32.totalorder %s24, 0
    %p45 = por %p43, %p44
    %p46 = scmp.ne.s32.totalorder %s32, %s33
    %p47 = scmp.eq.s32.totalorder %s25, 1
    %p48 = por %p46, %p47
    %p50 = scmp.ne.s32.totalorder %s33, %s49
    %p51 = scmp.eq.s32.totalorder %s25, 0
    %p52 = por %p50, %p51
    %s53 = ssub.s32 %s19, %s26
    %p54 = scmp.eq.s32.totalorder %s53, 0
    %s56 = sadd.s32 %s55, 1
    %s57 = scalar_select %p54, %s55, %s56
    %p60 = pneg %p54
    %p61 = scmp.eq.s32.totalorder %s19, 1
    %p62 = por %p60, %p61
    %p63 = scmp.ne.s32.totalorder %s55, %s58
    %p64 = scmp.eq.s32.totalorder %s19, 0
    %p65 = por %p63, %p64
    %p66 = scmp.ne.s32.totalorder %s55, %s58
    %p67 = scmp.eq.s32.totalorder %s24, 1
    %p68 = por %p66, %p67
    %p69 = scmp.ne.s32.totalorder %s58, %s59
    %p70 = scmp.eq.s32.totalorder %s24, 0
    %p71 = por %p69, %p70
    %p72 = scmp.ne.s32.totalorder %s58, %s59
    %p73 = scmp.eq.s32.totalorder %s25, 1
    %p74 = por %p72, %p73
    %p76 = scmp.ne.s32.totalorder %s59, %s75
    %p77 = scmp.eq.s32.totalorder %s25, 0
    %p78 = por %p76, %p77
    %s80 = sadd.s32 %s79, 1
    %p83 = scmp.eq.s32.totalorder %s19, 1
    %p84 = scmp.ne.s32.totalorder %s79, %s81
    %p85 = scmp.eq.s32.totalorder %s19, 0
    %p86 = por %p84, %p85
    %p87 = scmp.ne.s32.totalorder %s79, %s81
    %p88 = scmp.eq.s32.totalorder %s24, 1
    %p89 = por %p87, %p88
    %p90 = scmp.ne.s32.totalorder %s81, %s82
    %p91 = scmp.eq.s32.totalorder %s24, 0
    %p92 = por %p90, %p91
    %p93 = scmp.ne.s32.totalorder %s81, %s82
    %p94 = scmp.eq.s32.totalorder %s25, 1
    %p95 = por %p93, %p94
    %p97 = scmp.ne.s32.totalorder %s82, %s96
    %p98 = scmp.eq.s32.totalorder %s25, 0
    %p99 = por %p97, %p98
    %s101 = sadd.s32 %s100, 1
    %p104 = scmp.eq.s32.totalorder %s19, 1
    %p105 = scmp.ne.s32.totalorder %s100, %s102
    %p106 = scmp.eq.s32.totalorder %s19, 0
    %p107 = por %p105, %p106
    %p108 = scmp.ne.s32.totalorder %s100, %s102
    %p109 = scmp.eq.s32.totalorder %s24, 1
    %p110 = por %p108, %p109
    %p111 = scmp.ne.s32.totalorder %s102, %s103
    %p112 = scmp.eq.s32.totalorder %s24, 0
    %p113 = por %p111, %p112
    %p114 = scmp.ne.s32.totalorder %s102, %s103
    %p115 = scmp.eq.s32.totalorder %s25, 1
    %p116 = por %p114, %p115
    %p118 = scmp.ne.s32.totalorder %s103, %s117
    %p119 = scmp.eq.s32.totalorder %s25, 0
    %p120 = por %p118, %p119
    %s122 = sadd.s32 %s121, 1
    %p125 = scmp.eq.s32.totalorder %s19, 1
    %p126 = scmp.ne.s32.totalorder %s121, %s123
    %p127 = scmp.eq.s32.totalorder %s19, 0
    %p128 = por %p126, %p127
    %p129 = scmp.ne.s32.totalorder %s121, %s123
    %p130 = scmp.eq.s32.totalorder %s24, 1
    %p131 = por %p129, %p130
    %p132 = scmp.ne.s32.totalorder %s123, %s124
    %p133 = scmp.eq.s32.totalorder %s24, 0
    %p134 = por %p132, %p133
    %p135 = scmp.ne.s32.totalorder %s123, %s124
    %p136 = scmp.eq.s32.totalorder %s25, 1
    %p137 = por %p135, %p136
    %p139 = scmp.ne.s32.totalorder %s124, %s138
    %p140 = scmp.eq.s32.totalorder %s25, 0
    %p141 = por %p139, %p140
    %s143 = sadd.s32 %s142, 1
    %p146 = scmp.eq.s32.totalorder %s19, 1
    %p147 = scmp.ne.s32.totalorder %s142, %s144
    %p148 = scmp.eq.s32.totalorder %s19, 0
    %p149 = por %p147, %p148
    %p150 = scmp.ne.s32.totalorder %s142, %s144
    %p151 = scmp.eq.s32.totalorder %s24, 1
    %p152 = por %p150, %p151
    %p153 = scmp.ne.s32.totalorder %s144, %s145
    %p154 = scmp.eq.s32.totalorder %s24, 0
    %p155 = por %p153, %p154
    %p156 = scmp.ne.s32.totalorder %s144, %s145
    %p157 = scmp.eq.s32.totalorder %s25, 1
    %p158 = por %p156, %p157
    %p160 = scmp.ne.s32.totalorder %s145, %s159
    %p161 = scmp.eq.s32.totalorder %s25, 0
    %p162 = por %p160, %p161
    %s164 = sadd.s32 %s163, 1
    %p167 = scmp.eq.s32.totalorder %s19, 1
    %p168 = scmp.ne.s32.totalorder %s163, %s165
    %p169 = scmp.eq.s32.totalorder %s19, 0
    %p170 = por %p168, %p169
    %p171 = scmp.ne.s32.totalorder %s163, %s165
    %p172 = scmp.eq.s32.totalorder %s24, 1
    %p173 = por %p171, %p172
    %p174 = scmp.ne.s32.totalorder %s165, %s166
    %p175 = scmp.eq.s32.totalorder %s24, 0
    %p176 = por %p174, %p175
    %p177 = scmp.ne.s32.totalorder %s165, %s166
    %p178 = scmp.eq.s32.totalorder %s25, 1
    %p179 = por %p177, %p178
    %p181 = scmp.ne.s32.totalorder %s166, %s180
    %p182 = scmp.eq.s32.totalorder %s25, 0
    %p183 = por %p181, %p182
    %s185 = sadd.s32 %s184, 1
    %p188 = scmp.eq.s32.totalorder %s19, 1
    %p189 = scmp.ne.s32.totalorder %s184, %s186
    %p190 = scmp.eq.s32.totalorder %s19, 0
    %p191 = por %p189, %p190
    %p192 = scmp.ne.s32.totalorder %s184, %s186
    %p193 = scmp.eq.s32.totalorder %s24, 1
    %p194 = por %p192, %p193
    %p195 = scmp.ne.s32.totalorder %s186, %s187
    %p196 = scmp.eq.s32.totalorder %s24, 0
    %p197 = por %p195, %p196
    %p198 = scmp.ne.s32.totalorder %s186, %s187
    %p199 = scmp.eq.s32.totalorder %s25, 1
    %p200 = por %p198, %p199
    %p202 = scmp.ne.s32.totalorder %s187, %s201
    %p203 = scmp.eq.s32.totalorder %s25, 0
    %p204 = por %p202, %p203
    %s206 = sadd.s32 %s205, 1
    %p209 = scmp.eq.s32.totalorder %s19, 1
    %p210 = scmp.ne.s32.totalorder %s205, %s207
    %p211 = scmp.eq.s32.totalorder %s19, 0
    %p212 = por %p210, %p211
    %p213 = scmp.ne.s32.totalorder %s205, %s207
    %p214 = scmp.eq.s32.totalorder %s24, 1
    %p215 = por %p213, %p214
    %p216 = scmp.ne.s32.totalorder %s207, %s208
    %p217 = scmp.eq.s32.totalorder %s24, 0
    %p218 = por %p216, %p217
    %p219 = scmp.ne.s32.totalorder %s207, %s208
    %p220 = scmp.eq.s32.totalorder %s25, 1
    %p221 = por %p219, %p220
    %p223 = scmp.ne.s32.totalorder %s208, %s222
    %p224 = scmp.eq.s32.totalorder %s25, 0
    %p225 = por %p223, %p224
    %s227 = sadd.s32 %s226, 1
    %p230 = scmp.eq.s32.totalorder %s19, 1
    %p231 = scmp.ne.s32.totalorder %s226, %s228
    %p232 = scmp.eq.s32.totalorder %s19, 0
    %p233 = por %p231, %p232
    %p234 = scmp.ne.s32.totalorder %s226, %s228
    %p235 = scmp.eq.s32.totalorder %s24, 1
    %p236 = por %p234, %p235
    %p237 = scmp.ne.s32.totalorder %s228, %s229
    %p238 = scmp.eq.s32.totalorder %s24, 0
    %p239 = por %p237, %p238
    %p240 = scmp.ne.s32.totalorder %s228, %s229
    %p241 = scmp.eq.s32.totalorder %s25, 1
    %p242 = por %p240, %p241
    %p244 = scmp.ne.s32.totalorder %s229, %s243
    %p245 = scmp.eq.s32.totalorder %s25, 0
    %p246 = por %p244, %p245
    %s248 = sadd.s32 %s247, 1
    %p251 = scmp.eq.s32.totalorder %s19, 1
    %p252 = scmp.ne.s32.totalorder %s247, %s249
    %p253 = scmp.eq.s32.totalorder %s19, 0
    %p254 = por %p252, %p253
    %p255 = scmp.ne.s32.totalorder %s247, %s249
    %p256 = scmp.eq.s32.totalorder %s24, 1
    %p257 = por %p255, %p256
    %p258 = scmp.ne.s32.totalorder %s249, %s250
    %p259 = scmp.eq.s32.totalorder %s24, 0
    %p260 = por %p258, %p259
    %p261 = scmp.ne.s32.totalorder %s249, %s250
    %p262 = scmp.eq.s32.totalorder %s25, 1
    %p263 = por %p261, %p262
    %p265 = scmp.ne.s32.totalorder %s250, %s264
    %p266 = scmp.eq.s32.totalorder %s25, 0
    %p267 = por %p265, %p266
    %s269 = sadd.s32 %s268, 1
    %p272 = scmp.eq.s32.totalorder %s19, 1
    %p273 = scmp.ne.s32.totalorder %s268, %s270
    %p274 = scmp.eq.s32.totalorder %s19, 0
    %p275 = por %p273, %p274
    %p276 = scmp.ne.s32.totalorder %s268, %s270
    %p277 = scmp.eq.s32.totalorder %s24, 1
    %p278 = por %p276, %p277
    %p279 = scmp.ne.s32.totalorder %s270, %s271
    %p280 = scmp.eq.s32.totalorder %s24, 0
    %p281 = por %p279, %p280
    %p282 = scmp.ne.s32.totalorder %s270, %s271
    %p283 = scmp.eq.s32.totalorder %s25, 1
    %p284 = por %p282, %p283
    %p286 = scmp.ne.s32.totalorder %s271, %s285
    %p287 = scmp.eq.s32.totalorder %s25, 0
    %p288 = por %p286, %p287
    %s290 = sadd.s32 %s289, 1
    %p293 = scmp.eq.s32.totalorder %s19, 1
    %p294 = scmp.ne.s32.totalorder %s289, %s291
    %p295 = scmp.eq.s32.totalorder %s19, 0
    %p296 = por %p294, %p295
    %p297 = scmp.ne.s32.totalorder %s289, %s291
    %p298 = scmp.eq.s32.totalorder %s24, 1
    %p299 = por %p297, %p298
    %p300 = scmp.ne.s32.totalorder %s291, %s292
    %p301 = scmp.eq.s32.totalorder %s24, 0
    %p302 = por %p300, %p301
    %p303 = scmp.ne.s32.totalorder %s291, %s292
    %p304 = scmp.eq.s32.totalorder %s25, 1
    %p305 = por %p303, %p304
    %p307 = scmp.ne.s32.totalorder %s292, %s306
    %p308 = scmp.eq.s32.totalorder %s25, 0
    %p309 = por %p307, %p308
    %s310 = ssub.s32 %s19, %s26
    %p311 = scmp.eq.s32.totalorder %s310, 0
    %s313 = sadd.s32 %s312, 1
    %s314 = scalar_select %p311, %s312, %s313
    %p317 = pneg %p311
    %p318 = scmp.eq.s32.totalorder %s19, 1
    %p319 = por %p317, %p318
    %p320 = scmp.ne.s32.totalorder %s312, %s315
    %p321 = scmp.eq.s32.totalorder %s19, 0
    %p322 = por %p320, %p321
    %p323 = scmp.ne.s32.totalorder %s312, %s315
    %p324 = scmp.eq.s32.totalorder %s24, 1
    %p325 = por %p323, %p324
    %p326 = scmp.ne.s32.totalorder %s315, %s316
    %p327 = scmp.eq.s32.totalorder %s24, 0
    %p328 = por %p326, %p327
    %p329 = scmp.ne.s32.totalorder %s315, %s316
    %p330 = scmp.eq.s32.totalorder %s25, 1
    %p331 = por %p329, %p330
    %p333 = scmp.ne.s32.totalorder %s316, %s332
    %p334 = scmp.eq.s32.totalorder %s25, 0
    %p335 = por %p333, %p334
    %p336 = scmp.le.s32.totalorder 1, %s19
    %p337 = scmp.lt.s32.totalorder %s19, 3
    %p338 = pnand %p336, %p337
    %p339 = pneg %p338
    // Predicated region
    $region9: #{actor_critic_forward.1} parent=5 // pred_check
      _
    $region10: #{actor_critic_forward.1} parent=5 // pred_check_branch
      %341 = sbr.rel (%p338) target = $region12
    $region11: #{actor_critic_forward.1} parent=5 // pred_region
      %s342 = ssub.s32 %s19, 1
      // Predicated region
      $region13: #{actor_critic_forward.1} parent=11 // pred_check
        %p343 = pneg %p92
      $region14: #{actor_critic_forward.1} parent=11 // pred_check_branch
        %345 = sbr.rel (%p343) target = $region16
      $region15: #{actor_critic_forward.1} parent=11 // pred_region
        _
      $region16: #{actor_critic_forward.1} parent=11 // pred_fallthru
        _
      // Predicated region
      $region17: #{actor_critic_forward.1} parent=11 // pred_check
        %p346 = pneg %p113
      $region18: #{actor_critic_forward.1} parent=11 // pred_check_branch
        %348 = sbr.rel (%p346) target = $region20
      $region19: #{actor_critic_forward.1} parent=11 // pred_region
        _
      $region20: #{actor_critic_forward.1} parent=11 // pred_fallthru
        _
      // Predicated region
      $region21: #{actor_critic_forward.1} parent=11 // pred_check
        %p349 = pneg %p134
      $region22: #{actor_critic_forward.1} parent=11 // pred_check_branch
        %351 = sbr.rel (%p349) target = $region24
      $region23: #{actor_critic_forward.1} parent=11 // pred_region
        _
      $region24: #{actor_critic_forward.1} parent=11 // pred_fallthru
        _
      // Predicated region
      $region25: #{actor_critic_forward.1} parent=11 // pred_check
        %p352 = pneg %p155
      $region26: #{actor_critic_forward.1} parent=11 // pred_check_branch
        %354 = sbr.rel (%p352) target = $region28
      $region27: #{actor_critic_forward.1} parent=11 // pred_region
        _
      $region28: #{actor_critic_forward.1} parent=11 // pred_fallthru
        _
      // Predicated region
      $region29: #{actor_critic_forward.1} parent=11 // pred_check
        %p355 = pneg %p176
      $region30: #{actor_critic_forward.1} parent=11 // pred_check_branch
        %357 = sbr.rel (%p355) target = $region32
      $region31: #{actor_critic_forward.1} parent=11 // pred_region
        _
      $region32: #{actor_critic_forward.1} parent=11 // pred_fallthru
        _
      // Predicated region
      $region33: #{actor_critic_forward.1} parent=11 // pred_check
        %p358 = pneg %p197
      $region34: #{actor_critic_forward.1} parent=11 // pred_check_branch
        %360 = sbr.rel (%p358) target = $region36
      $region35: #{actor_critic_forward.1} parent=11 // pred_region
        _
      $region36: #{actor_critic_forward.1} parent=11 // pred_fallthru
        _
      // Predicated region
      $region37: #{actor_critic_forward.1} parent=11 // pred_check
        %p361 = pneg %p218
      $region38: #{actor_critic_forward.1} parent=11 // pred_check_branch
        %363 = sbr.rel (%p361) target = $region40
      $region39: #{actor_critic_forward.1} parent=11 // pred_region
        _
      $region40: #{actor_critic_forward.1} parent=11 // pred_fallthru
        _
      // Predicated region
      $region41: #{actor_critic_forward.1} parent=11 // pred_check
        %p364 = pneg %p239
      $region42: #{actor_critic_forward.1} parent=11 // pred_check_branch
        %366 = sbr.rel (%p364) target = $region44
      $region43: #{actor_critic_forward.1} parent=11 // pred_region
        _
      $region44: #{actor_critic_forward.1} parent=11 // pred_fallthru
        _
      // Predicated region
      $region45: #{actor_critic_forward.1} parent=11 // pred_check
        %p367 = pneg %p260
      $region46: #{actor_critic_forward.1} parent=11 // pred_check_branch
        %369 = sbr.rel (%p367) target = $region48
      $region47: #{actor_critic_forward.1} parent=11 // pred_region
        _
      $region48: #{actor_critic_forward.1} parent=11 // pred_fallthru
        _
      // Predicated region
      $region49: #{actor_critic_forward.1} parent=11 // pred_check
        %p370 = pneg %p281
      $region50: #{actor_critic_forward.1} parent=11 // pred_check_branch
        %372 = sbr.rel (%p370) target = $region52
      $region51: #{actor_critic_forward.1} parent=11 // pred_region
        _
      $region52: #{actor_critic_forward.1} parent=11 // pred_fallthru
        _
      // Predicated region
      $region53: #{actor_critic_forward.1} parent=11 // pred_check
        %p373 = pneg %p302
      $region54: #{actor_critic_forward.1} parent=11 // pred_check_branch
        %375 = sbr.rel (%p373) target = $region56
      $region55: #{actor_critic_forward.1} parent=11 // pred_region
        _
      $region56: #{actor_critic_forward.1} parent=11 // pred_fallthru
        _
    $region12: #{actor_critic_forward.1} parent=5 // pred_fallthru
      _
    %p376 = scmp.lt.s32.totalorder %s19, 2
    // Predicated region
    $region57: #{actor_critic_forward.1} parent=5 // pred_check
      %p377 = pneg %p376
    $region58: #{actor_critic_forward.1} parent=5 // pred_check_branch
      %379 = sbr.rel (%p377) target = $region60
    $region59: #{actor_critic_forward.1} parent=5 // pred_region
      // Predicated region
      $region61: #{actor_critic_forward.1} parent=59 // pred_check
        %p380 = pneg %p39
      $region62: #{actor_critic_forward.1} parent=59 // pred_check_branch
        %382 = sbr.rel (%p380) target = $region64
      $region63: #{actor_critic_forward.1} parent=59 // pred_region
        %p383 = scmp.lt.s32.totalorder %s19, 1
        %s384 = scalar_select %p383, %s19, 1
        %s385 = smul.addr %s384, 72
        %s386 = smul.addr %s385, 8
        %s387 = scalar_lea.vmem %s0, %s386
      $region64: #{actor_critic_forward.1} parent=59 // pred_fallthru
        _
      // Predicated region
      $region65: #{actor_critic_forward.1} parent=59 // pred_check
        %p388 = pneg %p65
      $region66: #{actor_critic_forward.1} parent=59 // pred_check_branch
        %390 = sbr.rel (%p388) target = $region68
      $region67: #{actor_critic_forward.1} parent=59 // pred_region
        %p391 = scmp.lt.s32.totalorder %s19, 1
        %s392 = scalar_select %p391, %s19, 1
        %s393 = scalar_lea.vmem %s1, %s392
      $region68: #{actor_critic_forward.1} parent=59 // pred_fallthru
        _
    $region60: #{actor_critic_forward.1} parent=5 // pred_fallthru
      _
    %p394 = scmp.le.s32.totalorder 1, %s19
    %p395 = scmp.lt.s32.totalorder %s19, 3
    %p396 = pnand %p394, %p395
    %p397 = pneg %p396
    // Predicated region
    $region69: #{actor_critic_forward.1} parent=5 // pred_check
      _
    $region70: #{actor_critic_forward.1} parent=5 // pred_check_branch
      %399 = sbr.rel (%p396) target = $region72
    $region71: #{actor_critic_forward.1} parent=5 // pred_region
      %s400 = ssub.s32 %s19, 1
      %p401 = scmp.lt.s32.totalorder %s24, 1
      %s402 = scalar_select %p401, %s24, 1
      %s403 = smul.addr %s402, 72
      %s404 = smul.addr %s403, 8
      %s405 = scalar_lea.vmem %s0, %s404
      %p406 = pneg %p45
      %p407 = pneg %p42
      %p408 = scmp.lt.s32.totalorder %s24, 1
      %s409 = scalar_select %p408, %s24, 1
      %s410 = scalar_lea.vmem %s1, %s409
      %p411 = pneg %p71
      %p412 = pneg %p68
      %p413 = pneg %p92
      %p414 = pneg %p89
      %p415 = pneg %p113
      %p416 = pneg %p110
      %p417 = pneg %p134
      %p418 = pneg %p131
      %p419 = pneg %p155
      %p420 = pneg %p152
      %p421 = pneg %p176
      %p422 = pneg %p173
      %p423 = pneg %p197
      %p424 = pneg %p194
      %p425 = pneg %p218
      %p426 = pneg %p215
      %p427 = pneg %p239
      %p428 = pneg %p236
      %p429 = pneg %p260
      %p430 = pneg %p257
      %p431 = pneg %p281
      %p432 = pneg %p278
      %p433 = pneg %p302
      %p434 = pneg %p299
      %p435 = pneg %p328
      %p436 = pneg %p325
      %p437 = scmp.lt.s32.totalorder %s24, 1
      %s438 = scalar_select %p437, %s24, 1
      %s439 = scalar_lea.vmem %s13, %s438
      %p440 = scmp.lt.s32.totalorder %s24, 1
      %s441 = scalar_select %p440, %s24, 1
      %s442 = smul.addr %s441, 72
      %s443 = smul.addr %s442, 8
      %s444 = scalar_lea.vmem %s0, %s443
      %p445 = scmp.lt.s32.totalorder %s24, 1
      %s446 = scalar_select %p445, %s24, 1
      %s447 = scalar_lea.vmem %s1, %s446
      %p448 = scmp.lt.s32.totalorder %s24, 1
      %s449 = scalar_select %p448, %s24, 1
      %s450 = scalar_lea.vmem %s13, %s449
      %v451 = vld [vmem:[%s2] sm:$0x1]
      %v452 = vld [vmem:[%s444] sm:$0xff]
      %v453 = vld [vmem:[%s444 + $0x10] sm:$0xff]
      %v454 = vld [vmem:[%s444 + $0x20] sm:$0xff]
      %v455 = vld [vmem:[%s444 + $0x30] sm:$0xff]
      %v456 = vld [vmem:[%s444 + $0x40] sm:$0xff]
      %v457 = vld [vmem:[%s444 + $0x50] sm:$0xff]
      %v458 = vld [vmem:[%s444 + $0x60] sm:$0xff]
      %v459 = vld [vmem:[%s444 + $0x70] sm:$0xff]
      %v460 = vld [vmem:[%s444 + $0x80] sm:$0xff]
      %v461 = vld [vmem:[%s444 + $0x90] sm:$0xff]
      %v462 = vld [vmem:[%s444 + $0xa0] sm:$0xff]
      %v463 = vld [vmem:[%s444 + $0xb0] sm:$0xff]
      %v464 = vld [vmem:[%s444 + $0xc0] sm:$0xff]
      %v465 = vld [vmem:[%s444 + $0xd0] sm:$0xff]
      %v466 = vld [vmem:[%s444 + $0xe0] sm:$0xff]
      %v467 = vld [vmem:[%s444 + $0xf0] sm:$0xff]
      %s468 = scalar_lea.vmem %s444, 288
      %v469 = vld [vmem:[%s468] sm:$0xff]
      %v470 = vld [vmem:[%s468 + $0x10] sm:$0xff]
      %v471 = vld [vmem:[%s468 + $0x20] sm:$0xff]
      %v472 = vld [vmem:[%s468 + $0x30] sm:$0xff]
      %v473 = vld [vmem:[%s468 + $0x40] sm:$0xff]
      %v474 = vld [vmem:[%s468 + $0x50] sm:$0xff]
      %v475 = vld [vmem:[%s468 + $0x60] sm:$0xff]
      %v476 = vld [vmem:[%s468 + $0x70] sm:$0xff]
      %v477 = vld [vmem:[%s468 + $0x80] sm:$0xff]
      %v478 = vld [vmem:[%s468 + $0x90] sm:$0xff]
      %v479 = vld [vmem:[%s468 + $0xa0] sm:$0xff]
      %v480 = vld [vmem:[%s468 + $0xb0] sm:$0xff]
      %v481 = vld [vmem:[%s468 + $0xc0] sm:$0xff]
      %v482 = vld [vmem:[%s468 + $0xd0] sm:$0xff]
      %v483 = vld [vmem:[%s468 + $0xe0] sm:$0xff]
      %v484 = vld [vmem:[%s468 + $0xf0] sm:$0xff]
      %v485 = vlaneseq
      %v486 = vshrl.u32 %v485, 7
      %v487 = vsub.s32 0, %v486
      %v488 = vrot.slane %v451, %v487
      %v489 = vmul.f32 %v452, %v488
      %v490 = vmul.f32 %v453, %v488
      %v491 = vmul.f32 %v454, %v488
      %v492 = vmul.f32 %v455, %v488
      %v493 = vmul.f32 %v456, %v488
      %v494 = vmul.f32 %v457, %v488
      %v495 = vmul.f32 %v458, %v488
      %v496 = vmul.f32 %v459, %v488
      %v497 = vmul.f32 %v460, %v488
      %v498 = vmul.f32 %v461, %v488
      %v499 = vmul.f32 %v462, %v488
      %v500 = vmul.f32 %v463, %v488
      %v501 = vmul.f32 %v464, %v488
      %v502 = vmul.f32 %v465, %v488
      %v503 = vmul.f32 %v466, %v488
      %v504 = vmul.f32 %v467, %v488
      %v505 = vmul.f32 %v469, %v488
      %v506 = vmul.f32 %v470, %v488
      %v507 = vmul.f32 %v471, %v488
      %v508 = vmul.f32 %v472, %v488
      %v509 = vmul.f32 %v473, %v488
      %v510 = vmul.f32 %v474, %v488
      %v511 = vmul.f32 %v475, %v488
      %v512 = vmul.f32 %v476, %v488
      %v513 = vmul.f32 %v477, %v488
      %v514 = vmul.f32 %v478, %v488
      %v515 = vmul.f32 %v479, %v488
      %v516 = vmul.f32 %v480, %v488
      %v517 = vmul.f32 %v481, %v488
      %v518 = vmul.f32 %v482, %v488
      %v519 = vmul.f32 %v483, %v488
      %v520 = vmul.f32 %v484, %v488
      %v521 = vld [vmem:[%s2 + $0x1] sm:$0x1]
      %v522 = vld [vmem:[%s444 + $0x1] sm:$0xff]
      %v523 = vld [vmem:[%s444 + $0x11] sm:$0xff]
      %v524 = vld [vmem:[%s444 + $0x21] sm:$0xff]
      %v525 = vld [vmem:[%s444 + $0x31] sm:$0xff]
      %v526 = vld [vmem:[%s444 + $0x41] sm:$0xff]
      %v527 = vld [vmem:[%s444 + $0x51] sm:$0xff]
      %v528 = vld [vmem:[%s444 + $0x61] sm:$0xff]
      %v529 = vld [vmem:[%s444 + $0x71] sm:$0xff]
      %v530 = vld [vmem:[%s444 + $0x81] sm:$0xff]
      %v531 = vld [vmem:[%s444 + $0x91] sm:$0xff]
      %v532 = vld [vmem:[%s444 + $0xa1] sm:$0xff]
      %v533 = vld [vmem:[%s444 + $0xb1] sm:$0xff]
      %v534 = vld [vmem:[%s444 + $0xc1] sm:$0xff]
      %v535 = vld [vmem:[%s444 + $0xd1] sm:$0xff]
      %v536 = vld [vmem:[%s444 + $0xe1] sm:$0xff]
      %v537 = vld [vmem:[%s444 + $0xf1] sm:$0xff]
      %v538 = vlaneseq
      %v539 = vshrl.u32 %v538, 7
      %v540 = vsub.s32 0, %v539
      %v541 = vrot.slane %v521, %v540
      %v542 = vmul.f32 %v469, %v541
      %v543 = vmul.f32 %v470, %v541
      %v544 = vmul.f32 %v471, %v541
      %v545 = vmul.f32 %v472, %v541
      %v546 = vmul.f32 %v473, %v541
      %v547 = vmul.f32 %v474, %v541
      %v548 = vmul.f32 %v475, %v541
      %v549 = vmul.f32 %v476, %v541
      %v550 = vmul.f32 %v477, %v541
      %v551 = vmul.f32 %v478, %v541
      %v552 = vmul.f32 %v479, %v541
      %v553 = vmul.f32 %v480, %v541
      %v554 = vmul.f32 %v481, %v541
      %v555 = vmul.f32 %v482, %v541
      %v556 = vmul.f32 %v483, %v541
      %v557 = vmul.f32 %v484, %v541
      %v558 = vmul.f32 %v522, %v541
      %v559 = vmul.f32 %v523, %v541
      %v560 = vmul.f32 %v524, %v541
      %v561 = vmul.f32 %v525, %v541
      %v562 = vmul.f32 %v526, %v541
      %v563 = vmul.f32 %v527, %v541
      %v564 = vmul.f32 %v528, %v541
      %v565 = vmul.f32 %v529, %v541
      %v566 = vmul.f32 %v530, %v541
      %v567 = vmul.f32 %v531, %v541
      %v568 = vmul.f32 %v532, %v541
      %v569 = vmul.f32 %v533, %v541
      %v570 = vmul.f32 %v534, %v541
      %v571 = vmul.f32 %v535, %v541
      %v572 = vmul.f32 %v536, %v541
      %v573 = vmul.f32 %v537, %v541
      %v574 = vadd.f32 %v489, %v542
      %v575 = vadd.f32 %v490, %v543
      %v576 = vadd.f32 %v491, %v544
      %v577 = vadd.f32 %v492, %v545
      %v578 = vadd.f32 %v493, %v546
      %v579 = vadd.f32 %v494, %v547
      %v580 = vadd.f32 %v495, %v548
      %v581 = vadd.f32 %v496, %v549
      %v582 = vadd.f32 %v497, %v550
      %v583 = vadd.f32 %v498, %v551
      %v584 = vadd.f32 %v499, %v552
      %v585 = vadd.f32 %v500, %v553
      %v586 = vadd.f32 %v501, %v554
      %v587 = vadd.f32 %v502, %v555
      %v588 = vadd.f32 %v503, %v556
      %v589 = vadd.f32 %v504, %v557
      %v590 = vadd.f32 %v505, %v558
      %v591 = vadd.f32 %v506, %v559
      %v592 = vadd.f32 %v507, %v560
      %v593 = vadd.f32 %v508, %v561
      %v594 = vadd.f32 %v509, %v562
      %v595 = vadd.f32 %v510, %v563
      %v596 = vadd.f32 %v511, %v564
      %v597 = vadd.f32 %v512, %v565
      %v598 = vadd.f32 %v513, %v566
      %v599 = vadd.f32 %v514, %v567
      %v600 = vadd.f32 %v515, %v568
      %v601 = vadd.f32 %v516, %v569
      %v602 = vadd.f32 %v517, %v570
      %v603 = vadd.f32 %v518, %v571
      %v604 = vadd.f32 %v519, %v572
      %v605 = vadd.f32 %v520, %v573
      %v606 = vld [vmem:[%s2 + $0x2] sm:$0x1]
      %v607 = vld [vmem:[%s468 + $0x1] sm:$0xff]
      %v608 = vld [vmem:[%s468 + $0x11] sm:$0xff]
      %v609 = vld [vmem:[%s468 + $0x21] sm:$0xff]
      %v610 = vld [vmem:[%s468 + $0x31] sm:$0xff]
      %v611 = vld [vmem:[%s468 + $0x41] sm:$0xff]
      %v612 = vld [vmem:[%s468 + $0x51] sm:$0xff]
      %v613 = vld [vmem:[%s468 + $0x61] sm:$0xff]
      %v614 = vld [vmem:[%s468 + $0x71] sm:$0xff]
      %v615 = vld [vmem:[%s468 + $0x81] sm:$0xff]
      %v616 = vld [vmem:[%s468 + $0x91] sm:$0xff]
      %v617 = vld [vmem:[%s468 + $0xa1] sm:$0xff]
      %v618 = vld [vmem:[%s468 + $0xb1] sm:$0xff]
      %v619 = vld [vmem:[%s468 + $0xc1] sm:$0xff]
      %v620 = vld [vmem:[%s468 + $0xd1] sm:$0xff]
      %v621 = vld [vmem:[%s468 + $0xe1] sm:$0xff]
      %v622 = vld [vmem:[%s468 + $0xf1] sm:$0xff]
      %v623 = vlaneseq
      %v624 = vshrl.u32 %v623, 7
      %v625 = vsub.s32 0, %v624
      %v626 = vrot.slane %v606, %v625
      %v627 = vmul.f32 %v522, %v626
      %v628 = vmul.f32 %v523, %v626
      %v629 = vmul.f32 %v524, %v626
      %v630 = vmul.f32 %v525, %v626
      %v631 = vmul.f32 %v526, %v626
      %v632 = vmul.f32 %v527, %v626
      %v633 = vmul.f32 %v528, %v626
      %v634 = vmul.f32 %v529, %v626
      %v635 = vmul.f32 %v530, %v626
      %v636 = vmul.f32 %v531, %v626
      %v637 = vmul.f32 %v532, %v626
      %v638 = vmul.f32 %v533, %v626
      %v639 = vmul.f32 %v534, %v626
      %v640 = vmul.f32 %v535, %v626
      %v641 = vmul.f32 %v536, %v626
      %v642 = vmul.f32 %v537, %v626
      %v643 = vmul.f32 %v607, %v626
      %v644 = vmul.f32 %v608, %v626
      %v645 = vmul.f32 %v609, %v626
      %v646 = vmul.f32 %v610, %v626
      %v647 = vmul.f32 %v611, %v626
      %v648 = vmul.f32 %v612, %v626
      %v649 = vmul.f32 %v613, %v626
      %v650 = vmul.f32 %v614, %v626
      %v651 = vmul.f32 %v615, %v626
      %v652 = vmul.f32 %v616, %v626
      %v653 = vmul.f32 %v617, %v626
      %v654 = vmul.f32 %v618, %v626
      %v655 = vmul.f32 %v619, %v626
      %v656 = vmul.f32 %v620, %v626
      %v657 = vmul.f32 %v621, %v626
      %v658 = vmul.f32 %v622, %v626
      %v659 = vadd.f32 %v574, %v627
      %v660 = vadd.f32 %v575, %v628
      %v661 = vadd.f32 %v576, %v629
      %v662 = vadd.f32 %v577, %v630
      %v663 = vadd.f32 %v578, %v631
      %v664 = vadd.f32 %v579, %v632
      %v665 = vadd.f32 %v580, %v633
      %v666 = vadd.f32 %v581, %v634
      %v667 = vadd.f32 %v582, %v635
      %v668 = vadd.f32 %v583, %v636
      %v669 = vadd.f32 %v584, %v637
      %v670 = vadd.f32 %v585, %v638
      %v671 = vadd.f32 %v586, %v639
      %v672 = vadd.f32 %v587, %v640
      %v673 = vadd.f32 %v588, %v641
      %v674 = vadd.f32 %v589, %v642
      %v675 = vadd.f32 %v590, %v643
      %v676 = vadd.f32 %v591, %v644
      %v677 = vadd.f32 %v592, %v645
      %v678 = vadd.f32 %v593, %v646
      %v679 = vadd.f32 %v594, %v647
      %v680 = vadd.f32 %v595, %v648
      %v681 = vadd.f32 %v596, %v649
      %v682 = vadd.f32 %v597, %v650
      %v683 = vadd.f32 %v598, %v651
      %v684 = vadd.f32 %v599, %v652
      %v685 = vadd.f32 %v600, %v653
      %v686 = vadd.f32 %v601, %v654
      %v687 = vadd.f32 %v602, %v655
      %v688 = vadd.f32 %v603, %v656
      %v689 = vadd.f32 %v604, %v657
      %v690 = vadd.f32 %v605, %v658
      %v691 = vld [vmem:[%s2 + $0x3] sm:$0x1]
      %s692 = scalar_lea.vmem %s444, 16
      %v693 = vld [vmem:[%s692] sm:$0xff]
      %v694 = vld [vmem:[%s692 + $0x10] sm:$0xff]
      %v695 = vld [vmem:[%s692 + $0x20] sm:$0xff]
      %v696 = vld [vmem:[%s692 + $0x30] sm:$0xff]
      %v697 = vld [vmem:[%s692 + $0x40] sm:$0xff]
      %v698 = vld [vmem:[%s692 + $0x50] sm:$0xff]
      %v699 = vld [vmem:[%s692 + $0x60] sm:$0xff]
      %v700 = vld [vmem:[%s692 + $0x70] sm:$0xff]
      %v701 = vld [vmem:[%s692 + $0x80] sm:$0xff]
      %v702 = vld [vmem:[%s692 + $0x90] sm:$0xff]
      %v703 = vld [vmem:[%s692 + $0xa0] sm:$0xff]
      %v704 = vld [vmem:[%s692 + $0xb0] sm:$0xff]
      %v705 = vld [vmem:[%s692 + $0xc0] sm:$0xff]
      %v706 = vld [vmem:[%s692 + $0xd0] sm:$0xff]
      %v707 = vld [vmem:[%s692 + $0xe0] sm:$0xff]
      %v708 = vld [vmem:[%s692 + $0xf0] sm:$0xff]
      %s709 = scalar_lea.vmem %s444, 304
      %v710 = vld [vmem:[%s709] sm:$0xff]
      %v711 = vld [vmem:[%s709 + $0x10] sm:$0xff]
      %v712 = vld [vmem:[%s709 + $0x20] sm:$0xff]
      %v713 = vld [vmem:[%s709 + $0x30] sm:$0xff]
      %v714 = vld [vmem:[%s709 + $0x40] sm:$0xff]
      %v715 = vld [vmem:[%s709 + $0x50] sm:$0xff]
      %v716 = vld [vmem:[%s709 + $0x60] sm:$0xff]
      %v717 = vld [vmem:[%s709 + $0x70] sm:$0xff]
      %v718 = vld [vmem:[%s709 + $0x80] sm:$0xff]
      %v719 = vld [vmem:[%s709 + $0x90] sm:$0xff]
      %v720 = vld [vmem:[%s709 + $0xa0] sm:$0xff]
      %v721 = vld [vmem:[%s709 + $0xb0] sm:$0xff]
      %v722 = vld [vmem:[%s709 + $0xc0] sm:$0xff]
      %v723 = vld [vmem:[%s709 + $0xd0] sm:$0xff]
      %v724 = vld [vmem:[%s709 + $0xe0] sm:$0xff]
      %v725 = vld [vmem:[%s709 + $0xf0] sm:$0xff]
      %v726 = vlaneseq
      %v727 = vshrl.u32 %v726, 7
      %v728 = vsub.s32 0, %v727
      %v729 = vrot.slane %v691, %v728
      %v730 = vmul.f32 %v693, %v729
      %v731 = vmul.f32 %v694, %v729
      %v732 = vmul.f32 %v695, %v729
      %v733 = vmul.f32 %v696, %v729
      %v734 = vmul.f32 %v697, %v729
      %v735 = vmul.f32 %v698, %v729
      %v736 = vmul.f32 %v699, %v729
      %v737 = vmul.f32 %v700, %v729
      %v738 = vmul.f32 %v701, %v729
      %v739 = vmul.f32 %v702, %v729
      %v740 = vmul.f32 %v703, %v729
      %v741 = vmul.f32 %v704, %v729
      %v742 = vmul.f32 %v705, %v729
      %v743 = vmul.f32 %v706, %v729
      %v744 = vmul.f32 %v707, %v729
      %v745 = vmul.f32 %v708, %v729
      %v746 = vmul.f32 %v710, %v729
      %v747 = vmul.f32 %v711, %v729
      %v748 = vmul.f32 %v712, %v729
      %v749 = vmul.f32 %v713, %v729
      %v750 = vmul.f32 %v714, %v729
      %v751 = vmul.f32 %v715, %v729
      %v752 = vmul.f32 %v716, %v729
      %v753 = vmul.f32 %v717, %v729
      %v754 = vmul.f32 %v718, %v729
      %v755 = vmul.f32 %v719, %v729
      %v756 = vmul.f32 %v720, %v729
      %v757 = vmul.f32 %v721, %v729
      %v758 = vmul.f32 %v722, %v729
      %v759 = vmul.f32 %v723, %v729
      %v760 = vmul.f32 %v724, %v729
      %v761 = vmul.f32 %v725, %v729
      %v762 = vadd.f32 %v659, %v730
      %v763 = vadd.f32 %v660, %v731
      %v764 = vadd.f32 %v661, %v732
      %v765 = vadd.f32 %v662, %v733
      %v766 = vadd.f32 %v663, %v734
      %v767 = vadd.f32 %v664, %v735
      %v768 = vadd.f32 %v665, %v736
      %v769 = vadd.f32 %v666, %v737
      %v770 = vadd.f32 %v667, %v738
      %v771 = vadd.f32 %v668, %v739
      %v772 = vadd.f32 %v669, %v740
      %v773 = vadd.f32 %v670, %v741
      %v774 = vadd.f32 %v671, %v742
      %v775 = vadd.f32 %v672, %v743
      %v776 = vadd.f32 %v673, %v744
      %v777 = vadd.f32 %v674, %v745
      %v778 = vadd.f32 %v675, %v746
      %v779 = vadd.f32 %v676, %v747
      %v780 = vadd.f32 %v677, %v748
      %v781 = vadd.f32 %v678, %v749
      %v782 = vadd.f32 %v679, %v750
      %v783 = vadd.f32 %v680, %v751
      %v784 = vadd.f32 %v681, %v752
      %v785 = vadd.f32 %v682, %v753
      %v786 = vadd.f32 %v683, %v754
      %v787 = vadd.f32 %v684, %v755
      %v788 = vadd.f32 %v685, %v756
      %v789 = vadd.f32 %v686, %v757
      %v790 = vadd.f32 %v687, %v758
      %v791 = vadd.f32 %v688, %v759
      %v792 = vadd.f32 %v689, %v760
      %v793 = vadd.f32 %v690, %v761
      %v794 = vld [vmem:[%s2 + $0x4] sm:$0x1]
      %v795 = vld [vmem:[%s692 + $0x1] sm:$0xff]
      %v796 = vld [vmem:[%s692 + $0x11] sm:$0xff]
      %v797 = vld [vmem:[%s692 + $0x21] sm:$0xff]
      %v798 = vld [vmem:[%s692 + $0x31] sm:$0xff]
      %v799 = vld [vmem:[%s692 + $0x41] sm:$0xff]
      %v800 = vld [vmem:[%s692 + $0x51] sm:$0xff]
      %v801 = vld [vmem:[%s692 + $0x61] sm:$0xff]
      %v802 = vld [vmem:[%s692 + $0x71] sm:$0xff]
      %v803 = vld [vmem:[%s692 + $0x81] sm:$0xff]
      %v804 = vld [vmem:[%s692 + $0x91] sm:$0xff]
      %v805 = vld [vmem:[%s692 + $0xa1] sm:$0xff]
      %v806 = vld [vmem:[%s692 + $0xb1] sm:$0xff]
      %v807 = vld [vmem:[%s692 + $0xc1] sm:$0xff]
      %v808 = vld [vmem:[%s692 + $0xd1] sm:$0xff]
      %v809 = vld [vmem:[%s692 + $0xe1] sm:$0xff]
      %v810 = vld [vmem:[%s692 + $0xf1] sm:$0xff]
      %v811 = vlaneseq
      %v812 = vshrl.u32 %v811, 7
      %v813 = vsub.s32 0, %v812
      %v814 = vrot.slane %v794, %v813
      %v815 = vmul.f32 %v710, %v814
      %v816 = vmul.f32 %v711, %v814
      %v817 = vmul.f32 %v712, %v814
      %v818 = vmul.f32 %v713, %v814
      %v819 = vmul.f32 %v714, %v814
      %v820 = vmul.f32 %v715, %v814
      %v821 = vmul.f32 %v716, %v814
      %v822 = vmul.f32 %v717, %v814
      %v823 = vmul.f32 %v718, %v814
      %v824 = vmul.f32 %v719, %v814
      %v825 = vmul.f32 %v720, %v814
      %v826 = vmul.f32 %v721, %v814
      %v827 = vmul.f32 %v722, %v814
      %v828 = vmul.f32 %v723, %v814
      %v829 = vmul.f32 %v724, %v814
      %v830 = vmul.f32 %v725, %v814
      %v831 = vmul.f32 %v795, %v814
      %v832 = vmul.f32 %v796, %v814
      %v833 = vmul.f32 %v797, %v814
      %v834 = vmul.f32 %v798, %v814
      %v835 = vmul.f32 %v799, %v814
      %v836 = vmul.f32 %v800, %v814
      %v837 = vmul.f32 %v801, %v814
      %v838 = vmul.f32 %v802, %v814
      %v839 = vmul.f32 %v803, %v814
      %v840 = vmul.f32 %v804, %v814
      %v841 = vmul.f32 %v805, %v814
      %v842 = vmul.f32 %v806, %v814
      %v843 = vmul.f32 %v807, %v814
      %v844 = vmul.f32 %v808, %v814
      %v845 = vmul.f32 %v809, %v814
      %v846 = vmul.f32 %v810, %v814
      %v847 = vadd.f32 %v762, %v815
      %v848 = vadd.f32 %v763, %v816
      %v849 = vadd.f32 %v764, %v817
      %v850 = vadd.f32 %v765, %v818
      %v851 = vadd.f32 %v766, %v819
      %v852 = vadd.f32 %v767, %v820
      %v853 = vadd.f32 %v768, %v821
      %v854 = vadd.f32 %v769, %v822
      %v855 = vadd.f32 %v770, %v823
      %v856 = vadd.f32 %v771, %v824
      %v857 = vadd.f32 %v772, %v825
      %v858 = vadd.f32 %v773, %v826
      %v859 = vadd.f32 %v774, %v827
      %v860 = vadd.f32 %v775, %v828
      %v861 = vadd.f32 %v776, %v829
      %v862 = vadd.f32 %v777, %v830
      %v863 = vadd.f32 %v778, %v831
      %v864 = vadd.f32 %v779, %v832
      %v865 = vadd.f32 %v780, %v833
      %v866 = vadd.f32 %v781, %v834
      %v867 = vadd.f32 %v782, %v835
      %v868 = vadd.f32 %v783, %v836
      %v869 = vadd.f32 %v784, %v837
      %v870 = vadd.f32 %v785, %v838
      %v871 = vadd.f32 %v786, %v839
      %v872 = vadd.f32 %v787, %v840
      %v873 = vadd.f32 %v788, %v841
      %v874 = vadd.f32 %v789, %v842
      %v875 = vadd.f32 %v790, %v843
      %v876 = vadd.f32 %v791, %v844
      %v877 = vadd.f32 %v792, %v845
      %v878 = vadd.f32 %v793, %v846
      %v879 = vld [vmem:[%s2 + $0x5] sm:$0x1]
      %v880 = vld [vmem:[%s709 + $0x1] sm:$0xff]
      %v881 = vld [vmem:[%s709 + $0x11] sm:$0xff]
      %v882 = vld [vmem:[%s709 + $0x21] sm:$0xff]
      %v883 = vld [vmem:[%s709 + $0x31] sm:$0xff]
      %v884 = vld [vmem:[%s709 + $0x41] sm:$0xff]
      %v885 = vld [vmem:[%s709 + $0x51] sm:$0xff]
      %v886 = vld [vmem:[%s709 + $0x61] sm:$0xff]
      %v887 = vld [vmem:[%s709 + $0x71] sm:$0xff]
      %v888 = vld [vmem:[%s709 + $0x81] sm:$0xff]
      %v889 = vld [vmem:[%s709 + $0x91] sm:$0xff]
      %v890 = vld [vmem:[%s709 + $0xa1] sm:$0xff]
      %v891 = vld [vmem:[%s709 + $0xb1] sm:$0xff]
      %v892 = vld [vmem:[%s709 + $0xc1] sm:$0xff]
      %v893 = vld [vmem:[%s709 + $0xd1] sm:$0xff]
      %v894 = vld [vmem:[%s709 + $0xe1] sm:$0xff]
      %v895 = vld [vmem:[%s709 + $0xf1] sm:$0xff]
      %v896 = vlaneseq
      %v897 = vshrl.u32 %v896, 7
      %v898 = vsub.s32 0, %v897
      %v899 = vrot.slane %v879, %v898
      %v900 = vmul.f32 %v795, %v899
      %v901 = vmul.f32 %v796, %v899
      %v902 = vmul.f32 %v797, %v899
      %v903 = vmul.f32 %v798, %v899
      %v904 = vmul.f32 %v799, %v899
      %v905 = vmul.f32 %v800, %v899
      %v906 = vmul.f32 %v801, %v899
      %v907 = vmul.f32 %v802, %v899
      %v908 = vmul.f32 %v803, %v899
      %v909 = vmul.f32 %v804, %v899
      %v910 = vmul.f32 %v805, %v899
      %v911 = vmul.f32 %v806, %v899
      %v912 = vmul.f32 %v807, %v899
      %v913 = vmul.f32 %v808, %v899
      %v914 = vmul.f32 %v809, %v899
      %v915 = vmul.f32 %v810, %v899
      %v916 = vmul.f32 %v880, %v899
      %v917 = vmul.f32 %v881, %v899
      %v918 = vmul.f32 %v882, %v899
      %v919 = vmul.f32 %v883, %v899
      %v920 = vmul.f32 %v884, %v899
      %v921 = vmul.f32 %v885, %v899
      %v922 = vmul.f32 %v886, %v899
      %v923 = vmul.f32 %v887, %v899
      %v924 = vmul.f32 %v888, %v899
      %v925 = vmul.f32 %v889, %v899
      %v926 = vmul.f32 %v890, %v899
      %v927 = vmul.f32 %v891, %v899
      %v928 = vmul.f32 %v892, %v899
      %v929 = vmul.f32 %v893, %v899
      %v930 = vmul.f32 %v894, %v899
      %v931 = vmul.f32 %v895, %v899
      %v932 = vadd.f32 %v847, %v900
      %v933 = vadd.f32 %v848, %v901
      %v934 = vadd.f32 %v849, %v902
      %v935 = vadd.f32 %v850, %v903
      %v936 = vadd.f32 %v851, %v904
      %v937 = vadd.f32 %v852, %v905
      %v938 = vadd.f32 %v853, %v906
      %v939 = vadd.f32 %v854, %v907
      %v940 = vadd.f32 %v855, %v908
      %v941 = vadd.f32 %v856, %v909
      %v942 = vadd.f32 %v857, %v910
      %v943 = vadd.f32 %v858, %v911
      %v944 = vadd.f32 %v859, %v912
      %v945 = vadd.f32 %v860, %v913
      %v946 = vadd.f32 %v861, %v914
      %v947 = vadd.f32 %v862, %v915
      %v948 = vadd.f32 %v863, %v916
      %v949 = vadd.f32 %v864, %v917
      %v950 = vadd.f32 %v865, %v918
      %v951 = vadd.f32 %v866, %v919
      %v952 = vadd.f32 %v867, %v920
      %v953 = vadd.f32 %v868, %v921
      %v954 = vadd.f32 %v869, %v922
      %v955 = vadd.f32 %v870, %v923
      %v956 = vadd.f32 %v871, %v924
      %v957 = vadd.f32 %v872, %v925
      %v958 = vadd.f32 %v873, %v926
      %v959 = vadd.f32 %v874, %v927
      %v960 = vadd.f32 %v875, %v928
      %v961 = vadd.f32 %v876, %v929
      %v962 = vadd.f32 %v877, %v930
      %v963 = vadd.f32 %v878, %v931
      %v964 = vld [vmem:[%s2 + $0x6] sm:$0x1]
      %s965 = scalar_lea.vmem %s444, 32
      %v966 = vld [vmem:[%s965] sm:$0xff]
      %v967 = vld [vmem:[%s965 + $0x10] sm:$0xff]
      %v968 = vld [vmem:[%s965 + $0x20] sm:$0xff]
      %v969 = vld [vmem:[%s965 + $0x30] sm:$0xff]
      %v970 = vld [vmem:[%s965 + $0x40] sm:$0xff]
      %v971 = vld [vmem:[%s965 + $0x50] sm:$0xff]
      %v972 = vld [vmem:[%s965 + $0x60] sm:$0xff]
      %v973 = vld [vmem:[%s965 + $0x70] sm:$0xff]
      %v974 = vld [vmem:[%s965 + $0x80] sm:$0xff]
      %v975 = vld [vmem:[%s965 + $0x90] sm:$0xff]
      %v976 = vld [vmem:[%s965 + $0xa0] sm:$0xff]
      %v977 = vld [vmem:[%s965 + $0xb0] sm:$0xff]
      %v978 = vld [vmem:[%s965 + $0xc0] sm:$0xff]
      %v979 = vld [vmem:[%s965 + $0xd0] sm:$0xff]
      %v980 = vld [vmem:[%s965 + $0xe0] sm:$0xff]
      %v981 = vld [vmem:[%s965 + $0xf0] sm:$0xff]
      %s982 = scalar_lea.vmem %s444, 320
      %v983 = vld [vmem:[%s982] sm:$0xff]
      %v984 = vld [vmem:[%s982 + $0x10] sm:$0xff]
      %v985 = vld [vmem:[%s982 + $0x20] sm:$0xff]
      %v986 = vld [vmem:[%s982 + $0x30] sm:$0xff]
      %v987 = vld [vmem:[%s982 + $0x40] sm:$0xff]
      %v988 = vld [vmem:[%s982 + $0x50] sm:$0xff]
      %v989 = vld [vmem:[%s982 + $0x60] sm:$0xff]
      %v990 = vld [vmem:[%s982 + $0x70] sm:$0xff]
      %v991 = vld [vmem:[%s982 + $0x80] sm:$0xff]
      %v992 = vld [vmem:[%s982 + $0x90] sm:$0xff]
      %v993 = vld [vmem:[%s982 + $0xa0] sm:$0xff]
      %v994 = vld [vmem:[%s982 + $0xb0] sm:$0xff]
      %v995 = vld [vmem:[%s982 + $0xc0] sm:$0xff]
      %v996 = vld [vmem:[%s982 + $0xd0] sm:$0xff]
      %v997 = vld [vmem:[%s982 + $0xe0] sm:$0xff]
      %v998 = vld [vmem:[%s982 + $0xf0] sm:$0xff]
      %v999 = vlaneseq
      %v1000 = vshrl.u32 %v999, 7
      %v1001 = vsub.s32 0, %v1000
      %v1002 = vrot.slane %v964, %v1001
      %v1003 = vmul.f32 %v966, %v1002
      %v1004 = vmul.f32 %v967, %v1002
      %v1005 = vmul.f32 %v968, %v1002
      %v1006 = vmul.f32 %v969, %v1002
      %v1007 = vmul.f32 %v970, %v1002
      %v1008 = vmul.f32 %v971, %v1002
      %v1009 = vmul.f32 %v972, %v1002
      %v1010 = vmul.f32 %v973, %v1002
      %v1011 = vmul.f32 %v974, %v1002
      %v1012 = vmul.f32 %v975, %v1002
      %v1013 = vmul.f32 %v976, %v1002
      %v1014 = vmul.f32 %v977, %v1002
      %v1015 = vmul.f32 %v978, %v1002
      %v1016 = vmul.f32 %v979, %v1002
      %v1017 = vmul.f32 %v980, %v1002
      %v1018 = vmul.f32 %v981, %v1002
      %v1019 = vmul.f32 %v983, %v1002
      %v1020 = vmul.f32 %v984, %v1002
      %v1021 = vmul.f32 %v985, %v1002
      %v1022 = vmul.f32 %v986, %v1002
      %v1023 = vmul.f32 %v987, %v1002
      %v1024 = vmul.f32 %v988, %v1002
      %v1025 = vmul.f32 %v989, %v1002
      %v1026 = vmul.f32 %v990, %v1002
      %v1027 = vmul.f32 %v991, %v1002
      %v1028 = vmul.f32 %v992, %v1002
      %v1029 = vmul.f32 %v993, %v1002
      %v1030 = vmul.f32 %v994, %v1002
      %v1031 = vmul.f32 %v995, %v1002
      %v1032 = vmul.f32 %v996, %v1002
      %v1033 = vmul.f32 %v997, %v1002
      %v1034 = vmul.f32 %v998, %v1002
      %v1035 = vadd.f32 %v932, %v1003
      %v1036 = vadd.f32 %v933, %v1004
      %v1037 = vadd.f32 %v934, %v1005
      %v1038 = vadd.f32 %v935, %v1006
      %v1039 = vadd.f32 %v936, %v1007
      %v1040 = vadd.f32 %v937, %v1008
      %v1041 = vadd.f32 %v938, %v1009
      %v1042 = vadd.f32 %v939, %v1010
      %v1043 = vadd.f32 %v940, %v1011
      %v1044 = vadd.f32 %v941, %v1012
      %v1045 = vadd.f32 %v942, %v1013
      %v1046 = vadd.f32 %v943, %v1014
      %v1047 = vadd.f32 %v944, %v1015
      %v1048 = vadd.f32 %v945, %v1016
      %v1049 = vadd.f32 %v946, %v1017
      %v1050 = vadd.f32 %v947, %v1018
      %v1051 = vadd.f32 %v948, %v1019
      %v1052 = vadd.f32 %v949, %v1020
      %v1053 = vadd.f32 %v950, %v1021
      %v1054 = vadd.f32 %v951, %v1022
      %v1055 = vadd.f32 %v952, %v1023
      %v1056 = vadd.f32 %v953, %v1024
      %v1057 = vadd.f32 %v954, %v1025
      %v1058 = vadd.f32 %v955, %v1026
      %v1059 = vadd.f32 %v956, %v1027
      %v1060 = vadd.f32 %v957, %v1028
      %v1061 = vadd.f32 %v958, %v1029
      %v1062 = vadd.f32 %v959, %v1030
      %v1063 = vadd.f32 %v960, %v1031
      %v1064 = vadd.f32 %v961, %v1032
      %v1065 = vadd.f32 %v962, %v1033
      %v1066 = vadd.f32 %v963, %v1034
      %v1067 = vld [vmem:[%s2 + $0x7] sm:$0x1]
      %v1068 = vld [vmem:[%s965 + $0x1] sm:$0xff]
      %v1069 = vld [vmem:[%s965 + $0x11] sm:$0xff]
      %v1070 = vld [vmem:[%s965 + $0x21] sm:$0xff]
      %v1071 = vld [vmem:[%s965 + $0x31] sm:$0xff]
      %v1072 = vld [vmem:[%s965 + $0x41] sm:$0xff]
      %v1073 = vld [vmem:[%s965 + $0x51] sm:$0xff]
      %v1074 = vld [vmem:[%s965 + $0x61] sm:$0xff]
      %v1075 = vld [vmem:[%s965 + $0x71] sm:$0xff]
      %v1076 = vld [vmem:[%s965 + $0x81] sm:$0xff]
      %v1077 = vld [vmem:[%s965 + $0x91] sm:$0xff]
      %v1078 = vld [vmem:[%s965 + $0xa1] sm:$0xff]
      %v1079 = vld [vmem:[%s965 + $0xb1] sm:$0xff]
      %v1080 = vld [vmem:[%s965 + $0xc1] sm:$0xff]
      %v1081 = vld [vmem:[%s965 + $0xd1] sm:$0xff]
      %v1082 = vld [vmem:[%s965 + $0xe1] sm:$0xff]
      %v1083 = vld [vmem:[%s965 + $0xf1] sm:$0xff]
      %v1084 = vlaneseq
      %v1085 = vshrl.u32 %v1084, 7
      %v1086 = vsub.s32 0, %v1085
      %v1087 = vrot.slane %v1067, %v1086
      %v1088 = vmul.f32 %v983, %v1087
      %v1089 = vmul.f32 %v984, %v1087
      %v1090 = vmul.f32 %v985, %v1087
      %v1091 = vmul.f32 %v986, %v1087
      %v1092 = vmul.f32 %v987, %v1087
      %v1093 = vmul.f32 %v988, %v1087
      %v1094 = vmul.f32 %v989, %v1087
      %v1095 = vmul.f32 %v990, %v1087
      %v1096 = vmul.f32 %v991, %v1087
      %v1097 = vmul.f32 %v992, %v1087
      %v1098 = vmul.f32 %v993, %v1087
      %v1099 = vmul.f32 %v994, %v1087
      %v1100 = vmul.f32 %v995, %v1087
      %v1101 = vmul.f32 %v996, %v1087
      %v1102 = vmul.f32 %v997, %v1087
      %v1103 = vmul.f32 %v998, %v1087
      %v1104 = vmul.f32 %v1068, %v1087
      %v1105 = vmul.f32 %v1069, %v1087
      %v1106 = vmul.f32 %v1070, %v1087
      %v1107 = vmul.f32 %v1071, %v1087
      %v1108 = vmul.f32 %v1072, %v1087
      %v1109 = vmul.f32 %v1073, %v1087
      %v1110 = vmul.f32 %v1074, %v1087
      %v1111 = vmul.f32 %v1075, %v1087
      %v1112 = vmul.f32 %v1076, %v1087
      %v1113 = vmul.f32 %v1077, %v1087
      %v1114 = vmul.f32 %v1078, %v1087
      %v1115 = vmul.f32 %v1079, %v1087
      %v1116 = vmul.f32 %v1080, %v1087
      %v1117 = vmul.f32 %v1081, %v1087
      %v1118 = vmul.f32 %v1082, %v1087
      %v1119 = vmul.f32 %v1083, %v1087
      %v1120 = vadd.f32 %v1035, %v1088
      %v1121 = vadd.f32 %v1036, %v1089
      %v1122 = vadd.f32 %v1037, %v1090
      %v1123 = vadd.f32 %v1038, %v1091
      %v1124 = vadd.f32 %v1039, %v1092
      %v1125 = vadd.f32 %v1040, %v1093
      %v1126 = vadd.f32 %v1041, %v1094
      %v1127 = vadd.f32 %v1042, %v1095
      %v1128 = vadd.f32 %v1043, %v1096
      %v1129 = vadd.f32 %v1044, %v1097
      %v1130 = vadd.f32 %v1045, %v1098
      %v1131 = vadd.f32 %v1046, %v1099
      %v1132 = vadd.f32 %v1047, %v1100
      %v1133 = vadd.f32 %v1048, %v1101
      %v1134 = vadd.f32 %v1049, %v1102
      %v1135 = vadd.f32 %v1050, %v1103
      %v1136 = vadd.f32 %v1051, %v1104
      %v1137 = vadd.f32 %v1052, %v1105
      %v1138 = vadd.f32 %v1053, %v1106
      %v1139 = vadd.f32 %v1054, %v1107
      %v1140 = vadd.f32 %v1055, %v1108
      %v1141 = vadd.f32 %v1056, %v1109
      %v1142 = vadd.f32 %v1057, %v1110
      %v1143 = vadd.f32 %v1058, %v1111
      %v1144 = vadd.f32 %v1059, %v1112
      %v1145 = vadd.f32 %v1060, %v1113
      %v1146 = vadd.f32 %v1061, %v1114
      %v1147 = vadd.f32 %v1062, %v1115
      %v1148 = vadd.f32 %v1063, %v1116
      %v1149 = vadd.f32 %v1064, %v1117
      %v1150 = vadd.f32 %v1065, %v1118
      %v1151 = vadd.f32 %v1066, %v1119
      %v1152 = vld [vmem:[%s2 + $0x8] sm:$0x1]
      %v1153 = vld [vmem:[%s982 + $0x1] sm:$0xff]
      %v1154 = vld [vmem:[%s982 + $0x11] sm:$0xff]
      %v1155 = vld [vmem:[%s982 + $0x21] sm:$0xff]
      %v1156 = vld [vmem:[%s982 + $0x31] sm:$0xff]
      %v1157 = vld [vmem:[%s982 + $0x41] sm:$0xff]
      %v1158 = vld [vmem:[%s982 + $0x51] sm:$0xff]
      %v1159 = vld [vmem:[%s982 + $0x61] sm:$0xff]
      %v1160 = vld [vmem:[%s982 + $0x71] sm:$0xff]
      %v1161 = vld [vmem:[%s982 + $0x81] sm:$0xff]
      %v1162 = vld [vmem:[%s982 + $0x91] sm:$0xff]
      %v1163 = vld [vmem:[%s982 + $0xa1] sm:$0xff]
      %v1164 = vld [vmem:[%s982 + $0xb1] sm:$0xff]
      %v1165 = vld [vmem:[%s982 + $0xc1] sm:$0xff]
      %v1166 = vld [vmem:[%s982 + $0xd1] sm:$0xff]
      %v1167 = vld [vmem:[%s982 + $0xe1] sm:$0xff]
      %v1168 = vld [vmem:[%s982 + $0xf1] sm:$0xff]
      %v1169 = vlaneseq
      %v1170 = vshrl.u32 %v1169, 7
      %v1171 = vsub.s32 0, %v1170
      %v1172 = vrot.slane %v1152, %v1171
      %v1173 = vmul.f32 %v1068, %v1172
      %v1174 = vmul.f32 %v1069, %v1172
      %v1175 = vmul.f32 %v1070, %v1172
      %v1176 = vmul.f32 %v1071, %v1172
      %v1177 = vmul.f32 %v1072, %v1172
      %v1178 = vmul.f32 %v1073, %v1172
      %v1179 = vmul.f32 %v1074, %v1172
      %v1180 = vmul.f32 %v1075, %v1172
      %v1181 = vmul.f32 %v1076, %v1172
      %v1182 = vmul.f32 %v1077, %v1172
      %v1183 = vmul.f32 %v1078, %v1172
      %v1184 = vmul.f32 %v1079, %v1172
      %v1185 = vmul.f32 %v1080, %v1172
      %v1186 = vmul.f32 %v1081, %v1172
      %v1187 = vmul.f32 %v1082, %v1172
      %v1188 = vmul.f32 %v1083, %v1172
      %v1189 = vmul.f32 %v1153, %v1172
      %v1190 = vmul.f32 %v1154, %v1172
      %v1191 = vmul.f32 %v1155, %v1172
      %v1192 = vmul.f32 %v1156, %v1172
      %v1193 = vmul.f32 %v1157, %v1172
      %v1194 = vmul.f32 %v1158, %v1172
      %v1195 = vmul.f32 %v1159, %v1172
      %v1196 = vmul.f32 %v1160, %v1172
      %v1197 = vmul.f32 %v1161, %v1172
      %v1198 = vmul.f32 %v1162, %v1172
      %v1199 = vmul.f32 %v1163, %v1172
      %v1200 = vmul.f32 %v1164, %v1172
      %v1201 = vmul.f32 %v1165, %v1172
      %v1202 = vmul.f32 %v1166, %v1172
      %v1203 = vmul.f32 %v1167, %v1172
      %v1204 = vmul.f32 %v1168, %v1172
      %v1205 = vadd.f32 %v1120, %v1173
      %v1206 = vadd.f32 %v1121, %v1174
      %v1207 = vadd.f32 %v1122, %v1175
      %v1208 = vadd.f32 %v1123, %v1176
      %v1209 = vadd.f32 %v1124, %v1177
      %v1210 = vadd.f32 %v1125, %v1178
      %v1211 = vadd.f32 %v1126, %v1179
      %v1212 = vadd.f32 %v1127, %v1180
      %v1213 = vadd.f32 %v1128, %v1181
      %v1214 = vadd.f32 %v1129, %v1182
      %v1215 = vadd.f32 %v1130, %v1183
      %v1216 = vadd.f32 %v1131, %v1184
      %v1217 = vadd.f32 %v1132, %v1185
      %v1218 = vadd.f32 %v1133, %v1186
      %v1219 = vadd.f32 %v1134, %v1187
      %v1220 = vadd.f32 %v1135, %v1188
      %v1221 = vadd.f32 %v1136, %v1189
      %v1222 = vadd.f32 %v1137, %v1190
      %v1223 = vadd.f32 %v1138, %v1191
      %v1224 = vadd.f32 %v1139, %v1192
      %v1225 = vadd.f32 %v1140, %v1193
      %v1226 = vadd.f32 %v1141, %v1194
      %v1227 = vadd.f32 %v1142, %v1195
      %v1228 = vadd.f32 %v1143, %v1196
      %v1229 = vadd.f32 %v1144, %v1197
      %v1230 = vadd.f32 %v1145, %v1198
      %v1231 = vadd.f32 %v1146, %v1199
      %v1232 = vadd.f32 %v1147, %v1200
      %v1233 = vadd.f32 %v1148, %v1201
      %v1234 = vadd.f32 %v1149, %v1202
      %v1235 = vadd.f32 %v1150, %v1203
      %v1236 = vadd.f32 %v1151, %v1204
      %v1237 = vld [vmem:[%s3] sm:$0x1]
      %v1239 = vlaneseq
      %v1240 = vshrl.u32 %v1239, 7
      %v1241 = vsub.s32 0, %v1240
      %v1242 = vrot.slane %v1237, %v1241
      %v1244 = vadd.f32 %v1205, %v1242
      %v1245 = vadd.f32 %v1206, %v1242
      %v1246 = vadd.f32 %v1207, %v1242
      %v1247 = vadd.f32 %v1208, %v1242
      %v1248 = vadd.f32 %v1209, %v1242
      %v1249 = vadd.f32 %v1210, %v1242
      %v1250 = vadd.f32 %v1211, %v1242
      %v1251 = vadd.f32 %v1212, %v1242
      %v1252 = vadd.f32 %v1213, %v1242
      %v1253 = vadd.f32 %v1214, %v1242
      %v1254 = vadd.f32 %v1215, %v1242
      %v1255 = vadd.f32 %v1216, %v1242
      %v1256 = vadd.f32 %v1217, %v1242
      %v1257 = vadd.f32 %v1218, %v1242
      %v1258 = vadd.f32 %v1219, %v1242
      %v1259 = vadd.f32 %v1220, %v1242
      %v1260 = vmax.f32 %v1244, 0.0
      %v1261 = vmax.f32 %v1245, 0.0
      %v1262 = vmax.f32 %v1246, 0.0
      %v1263 = vmax.f32 %v1247, 0.0
      %v1264 = vmax.f32 %v1248, 0.0
      %v1265 = vmax.f32 %v1249, 0.0
      %v1266 = vmax.f32 %v1250, 0.0
      %v1267 = vmax.f32 %v1251, 0.0
      %v1268 = vmax.f32 %v1252, 0.0
      %v1269 = vmax.f32 %v1253, 0.0
      %v1270 = vmax.f32 %v1254, 0.0
      %v1271 = vmax.f32 %v1255, 0.0
      %v1272 = vmax.f32 %v1256, 0.0
      %v1273 = vmax.f32 %v1257, 0.0
      %v1274 = vmax.f32 %v1258, 0.0
      %v1275 = vmax.f32 %v1259, 0.0
      %v1276 = vadd.f32 %v1221, %v1242
      %v1277 = vadd.f32 %v1222, %v1242
      %v1278 = vadd.f32 %v1223, %v1242
      %v1279 = vadd.f32 %v1224, %v1242
      %v1280 = vadd.f32 %v1225, %v1242
      %v1281 = vadd.f32 %v1226, %v1242
      %v1282 = vadd.f32 %v1227, %v1242
      %v1283 = vadd.f32 %v1228, %v1242
      %v1284 = vadd.f32 %v1229, %v1242
      %v1285 = vadd.f32 %v1230, %v1242
      %v1286 = vadd.f32 %v1231, %v1242
      %v1287 = vadd.f32 %v1232, %v1242
      %v1288 = vadd.f32 %v1233, %v1242
      %v1289 = vadd.f32 %v1234, %v1242
      %v1290 = vadd.f32 %v1235, %v1242
      %v1291 = vadd.f32 %v1236, %v1242
      %v1292 = vmax.f32 %v1276, 0.0
      %v1293 = vmax.f32 %v1277, 0.0
      %v1294 = vmax.f32 %v1278, 0.0
      %v1295 = vmax.f32 %v1279, 0.0
      %v1296 = vmax.f32 %v1280, 0.0
      %v1297 = vmax.f32 %v1281, 0.0
      %v1298 = vmax.f32 %v1282, 0.0
      %v1299 = vmax.f32 %v1283, 0.0
      %v1300 = vmax.f32 %v1284, 0.0
      %v1301 = vmax.f32 %v1285, 0.0
      %v1302 = vmax.f32 %v1286, 0.0
      %v1303 = vmax.f32 %v1287, 0.0
      %v1304 = vmax.f32 %v1288, 0.0
      %v1305 = vmax.f32 %v1289, 0.0
      %v1306 = vmax.f32 %v1290, 0.0
      %v1307 = vmax.f32 %v1291, 0.0
      %vm1308 = vcmask 261120
      %v1309 = vsel %vm1308, %v1260, -inf
      %v1310 = vsel %vm1308, %v1261, -inf
      %v1311 = vmax.f32 %v1309, %v1310
      %v1312 = vsel %vm1308, %v1262, -inf
      %v1313 = vsel %vm1308, %v1263, -inf
      %v1314 = vmax.f32 %v1312, %v1313
      %v1315 = vsel %vm1308, %v1264, -inf
      %v1316 = vsel %vm1308, %v1265, -inf
      %v1317 = vmax.f32 %v1315, %v1316
      %v1318 = vsel %vm1308, %v1266, -inf
      %v1319 = vsel %vm1308, %v1267, -inf
      %v1320 = vmax.f32 %v1318, %v1319
      %v1321 = vsel %vm1308, %v1268, -inf
      %v1322 = vsel %vm1308, %v1269, -inf
      %v1323 = vmax.f32 %v1321, %v1322
      %v1324 = vsel %vm1308, %v1270, -inf
      %v1325 = vsel %vm1308, %v1271, -inf
      %v1326 = vmax.f32 %v1324, %v1325
      %v1327 = vsel %vm1308, %v1272, -inf
      %v1328 = vsel %vm1308, %v1273, -inf
      %v1329 = vmax.f32 %v1327, %v1328
      %v1330 = vsel %vm1308, %v1274, -inf
      %v1331 = vsel %vm1308, %v1275, -inf
      %v1332 = vmax.f32 %v1330, %v1331
      %v1333 = vsel %vm1308, %v1292, -inf
      %v1334 = vsel %vm1308, %v1293, -inf
      %v1335 = vmax.f32 %v1333, %v1334
      %v1336 = vsel %vm1308, %v1294, -inf
      %v1337 = vsel %vm1308, %v1295, -inf
      %v1338 = vmax.f32 %v1336, %v1337
      %v1339 = vsel %vm1308, %v1296, -inf
      %v1340 = vsel %vm1308, %v1297, -inf
      %v1341 = vmax.f32 %v1339, %v1340
      %v1342 = vsel %vm1308, %v1298, -inf
      %v1343 = vsel %vm1308, %v1299, -inf
      %v1344 = vmax.f32 %v1342, %v1343
      %v1345 = vsel %vm1308, %v1300, -inf
      %v1346 = vsel %vm1308, %v1301, -inf
      %v1347 = vmax.f32 %v1345, %v1346
      %v1348 = vsel %vm1308, %v1302, -inf
      %v1349 = vsel %vm1308, %v1303, -inf
      %v1350 = vmax.f32 %v1348, %v1349
      %v1351 = vsel %vm1308, %v1304, -inf
      %v1352 = vsel %vm1308, %v1305, -inf
      %v1353 = vmax.f32 %v1351, %v1352
      %v1354 = vsel %vm1308, %v1306, -inf
      %v1355 = vsel %vm1308, %v1307, -inf
      %v1356 = vmax.f32 %v1354, %v1355
      %v1357 = vmax.f32 %v1311, %v1335
      %v1358 = vmax.f32 %v1314, %v1338
      %v1359 = vmax.f32 %v1317, %v1341
      %v1360 = vmax.f32 %v1320, %v1344
      %v1361 = vmax.f32 %v1323, %v1347
      %v1362 = vmax.f32 %v1326, %v1350
      %v1363 = vmax.f32 %v1329, %v1353
      %v1364 = vmax.f32 %v1332, %v1356
      %v1373 = vrot.slane %v1357, 7
      %v1374 = vrot.slane %v1358, 7
      %v1375 = vrot.slane %v1359, 7
      %v1376 = vrot.slane %v1360, 7
      %v1377 = vrot.slane %v1361, 7
      %v1378 = vrot.slane %v1362, 7
      %v1379 = vrot.slane %v1363, 7
      %v1380 = vrot.slane %v1364, 7
      %vm1389 = vcmask 1040384
      %v1390 = vsel %vm1389, 0.0, %v1373
      %v1391 = vsel %vm1389, 0.0, %v1374
      %v1392 = vsel %vm1389, 0.0, %v1375
      %v1393 = vsel %vm1389, 0.0, %v1376
      %v1394 = vsel %vm1389, 0.0, %v1377
      %v1395 = vsel %vm1389, 0.0, %v1378
      %v1396 = vsel %vm1389, 0.0, %v1379
      %v1397 = vsel %vm1389, 0.0, %v1380
      %v1398 = vsel %vm1389, %v1373, 0.0
      %v1399 = vsel %vm1389, %v1374, 0.0
      %v1400 = vsel %vm1389, %v1375, 0.0
      %v1401 = vsel %vm1389, %v1376, 0.0
      %v1402 = vsel %vm1389, %v1377, 0.0
      %v1403 = vsel %vm1389, %v1378, 0.0
      %v1404 = vsel %vm1389, %v1379, 0.0
      %v1405 = vsel %vm1389, %v1380, 0.0
      %v1406 = vld [vmem:[%s4] sm:$0xff]
      %v1407 = vld [vmem:[%s4 + $0x8] sm:$0xff]
      %v1408 = vld [vmem:[%s4 + $0x10] sm:$0xff]
      %v1409 = vld [vmem:[%s4 + $0x18] sm:$0xff]
      %vm1425 = vcmask 1046528
      %v1426 = vrot.slane 0.0, 1
      %v1427 = vsel %vm1425, %v1426, %v1426
      %v1428 = vrot.slane %v1390, 1
      %v1429 = vrot.slane %v1398, 1
      %v1430 = vsel %vm1425, %v1428, %v1429
      %v1431 = vrot.slane %v1391, 1
      %v1432 = vrot.slane %v1399, 1
      %v1433 = vsel %vm1425, %v1431, %v1432
      %v1434 = vrot.slane %v1392, 1
      %v1435 = vrot.slane %v1400, 1
      %v1436 = vsel %vm1425, %v1434, %v1435
      %v1437 = vrot.slane %v1393, 1
      %v1438 = vrot.slane %v1401, 1
      %v1439 = vsel %vm1425, %v1437, %v1438
      %v1440 = vrot.slane %v1394, 1
      %v1441 = vrot.slane %v1402, 1
      %v1442 = vsel %vm1425, %v1440, %v1441
      %v1443 = vrot.slane %v1395, 1
      %v1444 = vrot.slane %v1403, 1
      %v1445 = vsel %vm1425, %v1443, %v1444
      %v1446 = vrot.slane %v1396, 1
      %v1447 = vrot.slane %v1404, 1
      %v1448 = vsel %vm1425, %v1446, %v1447
      %s1449 = scalar_lea.vmem %s4, 32
      %v1450 = vld [vmem:[%s1449] sm:$0xff]
      %v1451 = vld [vmem:[%s1449 + $0x8] sm:$0xff]
      %v1452 = vld [vmem:[%s1449 + $0x10] sm:$0xff]
      %v1453 = vld [vmem:[%s1449 + $0x18] sm:$0xff]
      %v1454 = vsel %vm1308, %v1427, 0
      %v1456 = vsel %vm1308, %v1430, 0
      %v1458 = vsel %vm1308, %v1433, 0
      %v1460 = vsel %vm1308, %v1436, 0
      %v1462 = vsel %vm1308, %v1439, 0
      %v1464 = vsel %vm1308, %v1442, 0
      %v1466 = vsel %vm1308, %v1445, 0
      %v1468 = vsel %vm1308, %v1448, 0
      %1470 = vmatprep.subr.mxu0 0.0
      %1471 = vmatpush1.msra.mxu0 %v1450
      %1472 = vmatprep.subr.mxu0 0.0
      %1473 = vmatpush1.msra.mxu0 %v1451
      %1474 = vmatprep.subr.mxu0 0.0
      %1475 = vmatpush1.msra.mxu0 %v1452
      %1476 = vmatprep.subr.mxu0 0.0
      %1477 = vmatpush1.msra.mxu0 %v1453
      %1478 = vmatprep.subr.mxu0 0.0
      %1479 = vmatpush1.msra.mxu0 0.0
      %1480 = vmatprep.subr.mxu0 0.0
      %1481 = vmatpush1.msra.mxu0 0.0
      %1482 = vmatprep.subr.mxu0 0.0
      %1483 = vmatpush1.msra.mxu0 0.0
      %1484 = vmatprep.subr.mxu0 0.0
      %1485 = vmatpush1.msra.mxu0 0.0
      %1486 = vmatprep.subr.mxu0 0.0
      %1487 = vmatpush1.msra.mxu0 0.0
      %1488 = vmatprep.subr.mxu0 0.0
      %1489 = vmatpush1.msra.mxu0 0.0
      %1490 = vmatprep.subr.mxu0 0.0
      %1491 = vmatpush1.msra.mxu0 0.0
      %1492 = vmatprep.subr.mxu0 0.0
      %1493 = vmatpush1.msra.mxu0 0.0
      %1494 = vmatprep.subr.mxu0 0.0
      %1495 = vmatpush1.msra.mxu0 0.0
      %1496 = vmatprep.subr.mxu0 0.0
      %1497 = vmatpush1.msra.mxu0 0.0
      %1498 = vmatprep.subr.mxu0 0.0
      %1499 = vmatpush1.msra.mxu0 0.0
      %1500 = vmatprep.subr.mxu0 0.0
      %1501 = vmatpush1.msra.mxu0 0.0
      %1502 = vmatprep.subr.mxu0 0.0
      %1503 = vmatpush1.msra.mxu0 0.0
      %1504 = vmatprep.subr.mxu0 0.0
      %1505 = vmatpush1.msra.mxu0 0.0
      %1506 = vmatprep.subr.mxu0 0.0
      %1507 = vmatpush1.msra.mxu0 0.0
      %1508 = vmatprep.subr.mxu0 0.0
      %1509 = vmatpush1.msra.mxu0 0.0
      %1510 = vmatprep.subr.mxu0 0.0
      %1511 = vmatpush1.msra.mxu0 0.0
      %1512 = vmatprep.subr.mxu0 0.0
      %1513 = vmatpush1.msra.mxu0 0.0
      %1514 = vmatprep.subr.mxu0 0.0
      %1515 = vmatpush1.msra.mxu0 0.0
      %1516 = vmatprep.subr.mxu0 0.0
      %1517 = vmatpush1.msra.mxu0 0.0
      %1518 = vmatprep.subr.mxu0 0.0
      %1519 = vmatpush1.msra.mxu0 0.0
      %1520 = vmatprep.subr.mxu0 0.0
      %1521 = vmatpush1.msra.mxu0 0.0
      %1522 = vmatprep.subr.mxu0 0.0
      %1523 = vmatpush1.msra.mxu0 0.0
      %1524 = vmatprep.subr.mxu0 0.0
      %1525 = vmatpush1.msra.mxu0 0.0
      %1526 = vmatprep.subr.mxu0 0.0
      %1527 = vmatpush1.msra.mxu0 0.0
      %1528 = vmatprep.subr.mxu0 0.0
      %1529 = vmatpush1.msra.mxu0 0.0
      %1530 = vmatprep.subr.mxu0 0.0
      %1531 = vmatpush1.msra.mxu0 0.0
      %1532 = vmatprep.subr.mxu0 0.0
      %1533 = vmatpush1.msra.mxu0 0.0
      %1534 = vmatprep.mubr.f32.mxu0 0.0
      %1535 = vmatmul.mubr.f32.gmra.mrb[0].mxu0 %v1454
      %v1536 = vpop.f32.mrb[0].mxu0
      %v1537 = vadd.f32 0.0, %v1536
      %v1538 = vpop.f32.mrb[0].mxu0
      %1539 = vmatprep.mubr.f32.mxu0 0.0
      %1540 = vmatmul.mubr.f32.gmra.mrb[0].mxu0 %v1456
      %v1541 = vpop.f32.mrb[0].mxu0
      %v1542 = vadd.f32 0.0, %v1541
      %v1543 = vpop.f32.mrb[0].mxu0
      %1544 = vmatprep.mubr.f32.mxu0 0.0
      %1545 = vmatmul.mubr.f32.gmra.mrb[0].mxu0 %v1458
      %v1546 = vpop.f32.mrb[0].mxu0
      %v1547 = vadd.f32 0.0, %v1546
      %v1548 = vpop.f32.mrb[0].mxu0
      %1549 = vmatprep.mubr.f32.mxu0 0.0
      %1550 = vmatmul.mubr.f32.gmra.mrb[0].mxu0 %v1460
      %v1551 = vpop.f32.mrb[0].mxu0
      %v1552 = vadd.f32 0.0, %v1551
      %v1553 = vpop.f32.mrb[0].mxu0
      %1554 = vmatprep.mubr.f32.mxu0 0.0
      %1555 = vmatmul.mubr.f32.gmra.mrb[0].mxu0 %v1462
      %v1556 = vpop.f32.mrb[0].mxu0
      %v1557 = vadd.f32 0.0, %v1556
      %v1558 = vpop.f32.mrb[0].mxu0
      %1559 = vmatprep.mubr.f32.mxu0 0.0
      %1560 = vmatmul.mubr.f32.gmra.mrb[0].mxu0 %v1464
      %v1561 = vpop.f32.mrb[0].mxu0
      %v1562 = vadd.f32 0.0, %v1561
      %v1563 = vpop.f32.mrb[0].mxu0
      %1564 = vmatprep.mubr.f32.mxu0 0.0
      %1565 = vmatmul.mubr.f32.gmra.mrb[0].mxu0 %v1466
      %v1566 = vpop.f32.mrb[0].mxu0
      %v1567 = vadd.f32 0.0, %v1566
      %v1568 = vpop.f32.mrb[0].mxu0
      %1569 = vmatprep.mubr.f32.mxu0 0.0
      %1570 = vmatmul.mubr.f32.gmra.mrb[0].mxu0 %v1468
      %v1571 = vpop.f32.mrb[0].mxu0
      %v1572 = vadd.f32 0.0, %v1571
      %v1573 = vpop.f32.mrb[0].mxu0
      %1574 = vdwg.mxu0
      %v1575 = vsel %vm1308, 0.0, 0
      %v1577 = vsel %vm1308, %v1390, 0
      %v1579 = vsel %vm1308, %v1391, 0
      %v1581 = vsel %vm1308, %v1392, 0
      %v1583 = vsel %vm1308, %v1393, 0
      %v1585 = vsel %vm1308, %v1394, 0
      %v1587 = vsel %vm1308, %v1395, 0
      %v1589 = vsel %vm1308, %v1396, 0
      %1591 = vmatprep.subr.mxu0 0.0
      %1592 = vmatpush1.msra.mxu0 %v1406
      %1593 = vmatprep.subr.mxu0 0.0
      %1594 = vmatpush1.msra.mxu0 %v1407
      %1595 = vmatprep.subr.mxu0 0.0
      %1596 = vmatpush1.msra.mxu0 %v1408
      %1597 = vmatprep.subr.mxu0 0.0
      %1598 = vmatpush1.msra.mxu0 %v1409
      %1599 = vmatprep.subr.mxu0 0.0
      %1600 = vmatpush1.msra.mxu0 0.0
      %1601 = vmatprep.subr.mxu0 0.0
      %1602 = vmatpush1.msra.mxu0 0.0
      %1603 = vmatprep.subr.mxu0 0.0
      %1604 = vmatpush1.msra.mxu0 0.0
      %1605 = vmatprep.subr.mxu0 0.0
      %1606 = vmatpush1.msra.mxu0 0.0
      %1607 = vmatprep.subr.mxu0 0.0
      %1608 = vmatpush1.msra.mxu0 0.0
      %1609 = vmatprep.subr.mxu0 0.0
      %1610 = vmatpush1.msra.mxu0 0.0
      %1611 = vmatprep.subr.mxu0 0.0
      %1612 = vmatpush1.msra.mxu0 0.0
      %1613 = vmatprep.subr.mxu0 0.0
      %1614 = vmatpush1.msra.mxu0 0.0
      %1615 = vmatprep.subr.mxu0 0.0
      %1616 = vmatpush1.msra.mxu0 0.0
      %1617 = vmatprep.subr.mxu0 0.0
      %1618 = vmatpush1.msra.mxu0 0.0
      %1619 = vmatprep.subr.mxu0 0.0
      %1620 = vmatpush1.msra.mxu0 0.0
      %1621 = vmatprep.subr.mxu0 0.0
      %1622 = vmatpush1.msra.mxu0 0.0
      %1623 = vmatprep.subr.mxu0 0.0
      %1624 = vmatpush1.msra.mxu0 0.0
      %1625 = vmatprep.subr.mxu0 0.0
      %1626 = vmatpush1.msra.mxu0 0.0
      %1627 = vmatprep.subr.mxu0 0.0
      %1628 = vmatpush1.msra.mxu0 0.0
      %1629 = vmatprep.subr.mxu0 0.0
      %1630 = vmatpush1.msra.mxu0 0.0
      %1631 = vmatprep.subr.mxu0 0.0
      %1632 = vmatpush1.msra.mxu0 0.0
      %1633 = vmatprep.subr.mxu0 0.0
      %1634 = vmatpush1.msra.mxu0 0.0
      %1635 = vmatprep.subr.mxu0 0.0
      %1636 = vmatpush1.msra.mxu0 0.0
      %1637 = vmatprep.subr.mxu0 0.0
      %1638 = vmatpush1.msra.mxu0 0.0
      %1639 = vmatprep.subr.mxu0 0.0
      %1640 = vmatpush1.msra.mxu0 0.0
      %1641 = vmatprep.subr.mxu0 0.0
      %1642 = vmatpush1.msra.mxu0 0.0
      %1643 = vmatprep.subr.mxu0 0.0
      %1644 = vmatpush1.msra.mxu0 0.0
      %1645 = vmatprep.subr.mxu0 0.0
      %1646 = vmatpush1.msra.mxu0 0.0
      %1647 = vmatprep.subr.mxu0 0.0
      %1648 = vmatpush1.msra.mxu0 0.0
      %1649 = vmatprep.subr.mxu0 0.0
      %1650 = vmatpush1.msra.mxu0 0.0
      %1651 = vmatprep.subr.mxu0 0.0
      %1652 = vmatpush1.msra.mxu0 0.0
      %1653 = vmatprep.subr.mxu0 0.0
      %1654 = vmatpush1.msra.mxu0 0.0
      %1655 = vmatprep.mubr.f32.mxu0 0.0
      %1656 = vmatmul.mubr.f32.gmra.mrb[0].mxu0 %v1575
      %v1657 = vpop.f32.mrb[0].mxu0
      %v1658 = vadd.f32 %v1537, %v1657
      %v1659 = vpop.f32.mrb[0].mxu0
      %1660 = vmatprep.mubr.f32.mxu0 0.0
      %1661 = vmatmul.mubr.f32.gmra.mrb[0].mxu0 %v1577
      %v1662 = vpop.f32.mrb[0].mxu0
      %v1663 = vadd.f32 %v1542, %v1662
      %v1664 = vpop.f32.mrb[0].mxu0
      %1665 = vmatprep.mubr.f32.mxu0 0.0
      %1666 = vmatmul.mubr.f32.gmra.mrb[0].mxu0 %v1579
      %v1667 = vpop.f32.mrb[0].mxu0
      %v1668 = vadd.f32 %v1547, %v1667
      %v1669 = vpop.f32.mrb[0].mxu0
      %1670 = vmatprep.mubr.f32.mxu0 0.0
      %1671 = vmatmul.mubr.f32.gmra.mrb[0].mxu0 %v1581
      %v1672 = vpop.f32.mrb[0].mxu0
      %v1673 = vadd.f32 %v1552, %v1672
      %v1674 = vpop.f32.mrb[0].mxu0
      %1675 = vmatprep.mubr.f32.mxu0 0.0
      %1676 = vmatmul.mubr.f32.gmra.mrb[0].mxu0 %v1583
      %v1677 = vpop.f32.mrb[0].mxu0
      %v1678 = vadd.f32 %v1557, %v1677
      %v1679 = vpop.f32.mrb[0].mxu0
      %1680 = vmatprep.mubr.f32.mxu0 0.0
      %1681 = vmatmul.mubr.f32.gmra.mrb[0].mxu0 %v1585
      %v1682 = vpop.f32.mrb[0].mxu0
      %v1683 = vadd.f32 %v1562, %v1682
      %v1684 = vpop.f32.mrb[0].mxu0
      %1685 = vmatprep.mubr.f32.mxu0 0.0
      %1686 = vmatmul.mubr.f32.gmra.mrb[0].mxu0 %v1587
      %v1687 = vpop.f32.mrb[0].mxu0
      %v1688 = vadd.f32 %v1567, %v1687
      %v1689 = vpop.f32.mrb[0].mxu0
      %1690 = vmatprep.mubr.f32.mxu0 0.0
      %1691 = vmatmul.mubr.f32.gmra.mrb[0].mxu0 %v1589
      %v1692 = vpop.f32.mrb[0].mxu0
      %v1693 = vadd.f32 %v1572, %v1692
      %v1694 = vpop.f32.mrb[0].mxu0
      %1695 = vdwg.mxu0
      %vm1696 = vcmask 1045504
      %v1697 = vrot.slane 0.0, 2
      %v1698 = vsel %vm1696, %v1697, %v1697
      %v1699 = vrot.slane %v1390, 2
      %v1700 = vrot.slane %v1398, 2
      %v1701 = vsel %vm1696, %v1699, %v1700
      %v1702 = vrot.slane %v1391, 2
      %v1703 = vrot.slane %v1399, 2
      %v1704 = vsel %vm1696, %v1702, %v1703
      %v1705 = vrot.slane %v1392, 2
      %v1706 = vrot.slane %v1400, 2
      %v1707 = vsel %vm1696, %v1705, %v1706
      %v1708 = vrot.slane %v1393, 2
      %v1709 = vrot.slane %v1401, 2
      %v1710 = vsel %vm1696, %v1708, %v1709
      %v1711 = vrot.slane %v1394, 2
      %v1712 = vrot.slane %v1402, 2
      %v1713 = vsel %vm1696, %v1711, %v1712
      %v1714 = vrot.slane %v1395, 2
      %v1715 = vrot.slane %v1403, 2
      %v1716 = vsel %vm1696, %v1714, %v1715
      %v1717 = vrot.slane %v1396, 2
      %v1718 = vrot.slane %v1404, 2
      %v1719 = vsel %vm1696, %v1717, %v1718
      %s1720 = scalar_lea.vmem %s4, 64
      %v1721 = vld [vmem:[%s1720] sm:$0xff]
      %v1722 = vld [vmem:[%s1720 + $0x8] sm:$0xff]
      %v1723 = vld [vmem:[%s1720 + $0x10] sm:$0xff]
      %v1724 = vld [vmem:[%s1720 + $0x18] sm:$0xff]
      %v1725 = vsel %vm1308, %v1698, 0
      %v1727 = vsel %vm1308, %v1701, 0
      %v1729 = vsel %vm1308, %v1704, 0
      %v1731 = vsel %vm1308, %v1707, 0
      %v1733 = vsel %vm1308, %v1710, 0
      %v1735 = vsel %vm1308, %v1713, 0
      %v1737 = vsel %vm1308, %v1716, 0
      %v1739 = vsel %vm1308, %v1719, 0
      %1741 = vmatprep.subr.mxu0 0.0
      %1742 = vmatpush1.msra.mxu0 %v1721
      %1743 = vmatprep.subr.mxu0 0.0
      %1744 = vmatpush1.msra.mxu0 %v1722
      %1745 = vmatprep.subr.mxu0 0.0
      %1746 = vmatpush1.msra.mxu0 %v1723
      %1747 = vmatprep.subr.mxu0 0.0
      %1748 = vmatpush1.msra.mxu0 %v1724
      %1749 = vmatprep.subr.mxu0 0.0
      %1750 = vmatpush1.msra.mxu0 0.0
      %1751 = vmatprep.subr.mxu0 0.0
      %1752 = vmatpush1.msra.mxu0 0.0
      %1753 = vmatprep.subr.mxu0 0.0
      %1754 = vmatpush1.msra.mxu0 0.0
      %1755 = vmatprep.subr.mxu0 0.0
      %1756 = vmatpush1.msra.mxu0 0.0
      %1757 = vmatprep.subr.mxu0 0.0
      %1758 = vmatpush1.msra.mxu0 0.0
      %1759 = vmatprep.subr.mxu0 0.0
      %1760 = vmatpush1.msra.mxu0 0.0
      %1761 = vmatprep.subr.mxu0 0.0
      %1762 = vmatpush1.msra.mxu0 0.0
      %1763 = vmatprep.subr.mxu0 0.0
      %1764 = vmatpush1.msra.mxu0 0.0
      %1765 = vmatprep.subr.mxu0 0.0
      %1766 = vmatpush1.msra.mxu0 0.0
      %1767 = vmatprep.subr.mxu0 0.0
      %1768 = vmatpush1.msra.mxu0 0.0
      %1769 = vmatprep.subr.mxu0 0.0
      %1770 = vmatpush1.msra.mxu0 0.0
      %1771 = vmatprep.subr.mxu0 0.0
      %1772 = vmatpush1.msra.mxu0 0.0
      %1773 = vmatprep.subr.mxu0 0.0
      %1774 = vmatpush1.msra.mxu0 0.0
      %1775 = vmatprep.subr.mxu0 0.0
      %1776 = vmatpush1.msra.mxu0 0.0
      %1777 = vmatprep.subr.mxu0 0.0
      %1778 = vmatpush1.msra.mxu0 0.0
      %1779 = vmatprep.subr.mxu0 0.0
      %1780 = vmatpush1.msra.mxu0 0.0
      %1781 = vmatprep.subr.mxu0 0.0
      %1782 = vmatpush1.msra.mxu0 0.0
      %1783 = vmatprep.subr.mxu0 0.0
      %1784 = vmatpush1.msra.mxu0 0.0
      %1785 = vmatprep.subr.mxu0 0.0
      %1786 = vmatpush1.msra.mxu0 0.0
      %1787 = vmatprep.subr.mxu0 0.0
      %1788 = vmatpush1.msra.mxu0 0.0
      %1789 = vmatprep.subr.mxu0 0.0
      %1790 = vmatpush1.msra.mxu0 0.0
      %1791 = vmatprep.subr.mxu0 0.0
      %1792 = vmatpush1.msra.mxu0 0.0
      %1793 = vmatprep.subr.mxu0 0.0
      %1794 = vmatpush1.msra.mxu0 0.0
      %1795 = vmatprep.subr.mxu0 0.0
      %1796 = vmatpush1.msra.mxu0 0.0
      %1797 = vmatprep.subr.mxu0 0.0
      %1798 = vmatpush1.msra.mxu0 0.0
      %1799 = vmatprep.subr.mxu0 0.0
      %1800 = vmatpush1.msra.mxu0 0.0
      %1801 = vmatprep.subr.mxu0 0.0
      %1802 = vmatpush1.msra.mxu0 0.0
      %1803 = vmatprep.subr.mxu0 0.0
      %1804 = vmatpush1.msra.mxu0 0.0
      %1805 = vmatprep.mubr.f32.mxu0 0.0
      %1806 = vmatmul.mubr.f32.gmra.mrb[0].mxu0 %v1725
      %v1807 = vpop.f32.mrb[0].mxu0
      %v1808 = vadd.f32 0.0, %v1807
      %v1809 = vpop.f32.mrb[0].mxu0
      %1810 = vmatprep.mubr.f32.mxu0 0.0
      %1811 = vmatmul.mubr.f32.gmra.mrb[0].mxu0 %v1727
      %v1812 = vpop.f32.mrb[0].mxu0
      %v1813 = vadd.f32 0.0, %v1812
      %v1814 = vpop.f32.mrb[0].mxu0
      %1815 = vmatprep.mubr.f32.mxu0 0.0
      %1816 = vmatmul.mubr.f32.gmra.mrb[0].mxu0 %v1729
      %v1817 = vpop.f32.mrb[0].mxu0
      %v1818 = vadd.f32 0.0, %v1817
      %v1819 = vpop.f32.mrb[0].mxu0
      %1820 = vmatprep.mubr.f32.mxu0 0.0
      %1821 = vmatmul.mubr.f32.gmra.mrb[0].mxu0 %v1731
      %v1822 = vpop.f32.mrb[0].mxu0
      %v1823 = vadd.f32 0.0, %v1822
      %v1824 = vpop.f32.mrb[0].mxu0
      %1825 = vmatprep.mubr.f32.mxu0 0.0
      %1826 = vmatmul.mubr.f32.gmra.mrb[0].mxu0 %v1733
      %v1827 = vpop.f32.mrb[0].mxu0
      %v1828 = vadd.f32 0.0, %v1827
      %v1829 = vpop.f32.mrb[0].mxu0
      %1830 = vmatprep.mubr.f32.mxu0 0.0
      %1831 = vmatmul.mubr.f32.gmra.mrb[0].mxu0 %v1735
      %v1832 = vpop.f32.mrb[0].mxu0
      %v1833 = vadd.f32 0.0, %v1832
      %v1834 = vpop.f32.mrb[0].mxu0
      %1835 = vmatprep.mubr.f32.mxu0 0.0
      %1836 = vmatmul.mubr.f32.gmra.mrb[0].mxu0 %v1737
      %v1837 = vpop.f32.mrb[0].mxu0
      %v1838 = vadd.f32 0.0, %v1837
      %v1839 = vpop.f32.mrb[0].mxu0
      %1840 = vmatprep.mubr.f32.mxu0 0.0
      %1841 = vmatmul.mubr.f32.gmra.mrb[0].mxu0 %v1739
      %v1842 = vpop.f32.mrb[0].mxu0
      %v1843 = vadd.f32 0.0, %v1842
      %v1844 = vpop.f32.mrb[0].mxu0
      %1845 = vdwg.mxu0
      %v1846 = vadd.f32 %v1658, %v1808
      %v1847 = vadd.f32 %v1663, %v1813
      %v1848 = vadd.f32 %v1668, %v1818
      %v1849 = vadd.f32 %v1673, %v1823
      %v1850 = vadd.f32 %v1678, %v1828
      %v1851 = vadd.f32 %v1683, %v1833
      %v1852 = vadd.f32 %v1688, %v1838
      %v1853 = vadd.f32 %v1693, %v1843
      %s1854 = scalar_lea.vmem %s4, 96
      %v1855 = vld [vmem:[%s1854] sm:$0xff]
      %v1856 = vld [vmem:[%s1854 + $0x8] sm:$0xff]
      %v1857 = vld [vmem:[%s1854 + $0x10] sm:$0xff]
      %v1858 = vld [vmem:[%s1854 + $0x18] sm:$0xff]
      %v1860 = vsel %vm1308, %v1397, 0
      %1862 = vmatprep.subr.mxu0 0.0
      %1863 = vmatpush1.msra.mxu0 %v1855
      %1864 = vmatprep.subr.mxu0 0.0
      %1865 = vmatpush1.msra.mxu0 %v1856
      %1866 = vmatprep.subr.mxu0 0.0
      %1867 = vmatpush1.msra.mxu0 %v1857
      %1868 = vmatprep.subr.mxu0 0.0
      %1869 = vmatpush1.msra.mxu0 %v1858
      %1870 = vmatprep.subr.mxu0 0.0
      %1871 = vmatpush1.msra.mxu0 0.0
      %1872 = vmatprep.subr.mxu0 0.0
      %1873 = vmatpush1.msra.mxu0 0.0
      %1874 = vmatprep.subr.mxu0 0.0
      %1875 = vmatpush1.msra.mxu0 0.0
      %1876 = vmatprep.subr.mxu0 0.0
      %1877 = vmatpush1.msra.mxu0 0.0
      %1878 = vmatprep.subr.mxu0 0.0
      %1879 = vmatpush1.msra.mxu0 0.0
      %1880 = vmatprep.subr.mxu0 0.0
      %1881 = vmatpush1.msra.mxu0 0.0
      %1882 = vmatprep.subr.mxu0 0.0
      %1883 = vmatpush1.msra.mxu0 0.0
      %1884 = vmatprep.subr.mxu0 0.0
      %1885 = vmatpush1.msra.mxu0 0.0
      %1886 = vmatprep.subr.mxu0 0.0
      %1887 = vmatpush1.msra.mxu0 0.0
      %1888 = vmatprep.subr.mxu0 0.0
      %1889 = vmatpush1.msra.mxu0 0.0
      %1890 = vmatprep.subr.mxu0 0.0
      %1891 = vmatpush1.msra.mxu0 0.0
      %1892 = vmatprep.subr.mxu0 0.0
      %1893 = vmatpush1.msra.mxu0 0.0
      %1894 = vmatprep.subr.mxu0 0.0
      %1895 = vmatpush1.msra.mxu0 0.0
      %1896 = vmatprep.subr.mxu0 0.0
      %1897 = vmatpush1.msra.mxu0 0.0
      %1898 = vmatprep.subr.mxu0 0.0
      %1899 = vmatpush1.msra.mxu0 0.0
      %1900 = vmatprep.subr.mxu0 0.0
      %1901 = vmatpush1.msra.mxu0 0.0
      %1902 = vmatprep.subr.mxu0 0.0
      %1903 = vmatpush1.msra.mxu0 0.0
      %1904 = vmatprep.subr.mxu0 0.0
      %1905 = vmatpush1.msra.mxu0 0.0
      %1906 = vmatprep.subr.mxu0 0.0
      %1907 = vmatpush1.msra.mxu0 0.0
      %1908 = vmatprep.subr.mxu0 0.0
      %1909 = vmatpush1.msra.mxu0 0.0
      %1910 = vmatprep.subr.mxu0 0.0
      %1911 = vmatpush1.msra.mxu0 0.0
      %1912 = vmatprep.subr.mxu0 0.0
      %1913 = vmatpush1.msra.mxu0 0.0
      %1914 = vmatprep.subr.mxu0 0.0
      %1915 = vmatpush1.msra.mxu0 0.0
      %1916 = vmatprep.subr.mxu0 0.0
      %1917 = vmatpush1.msra.mxu0 0.0
      %1918 = vmatprep.subr.mxu0 0.0
      %1919 = vmatpush1.msra.mxu0 0.0
      %1920 = vmatprep.subr.mxu0 0.0
      %1921 = vmatpush1.msra.mxu0 0.0
      %1922 = vmatprep.subr.mxu0 0.0
      %1923 = vmatpush1.msra.mxu0 0.0
      %1924 = vmatprep.subr.mxu0 0.0
      %1925 = vmatpush1.msra.mxu0 0.0
      %1926 = vmatprep.mubr.f32.mxu0 0.0
      %1927 = vmatmul.mubr.f32.gmra.mrb[0].mxu0 %v1577
      %v1928 = vpop.f32.mrb[0].mxu0
      %v1929 = vadd.f32 0.0, %v1928
      %v1930 = vpop.f32.mrb[0].mxu0
      %1931 = vmatprep.mubr.f32.mxu0 0.0
      %1932 = vmatmul.mubr.f32.gmra.mrb[0].mxu0 %v1579
      %v1933 = vpop.f32.mrb[0].mxu0
      %v1934 = vadd.f32 0.0, %v1933
      %v1935 = vpop.f32.mrb[0].mxu0
      %1936 = vmatprep.mubr.f32.mxu0 0.0
      %1937 = vmatmul.mubr.f32.gmra.mrb[0].mxu0 %v1581
      %v1938 = vpop.f32.mrb[0].mxu0
      %v1939 = vadd.f32 0.0, %v1938
      %v1940 = vpop.f32.mrb[0].mxu0
      %1941 = vmatprep.mubr.f32.mxu0 0.0
      %1942 = vmatmul.mubr.f32.gmra.mrb[0].mxu0 %v1583
      %v1943 = vpop.f32.mrb[0].mxu0
      %v1944 = vadd.f32 0.0, %v1943
      %v1945 = vpop.f32.mrb[0].mxu0
      %1946 = vmatprep.mubr.f32.mxu0 0.0
      %1947 = vmatmul.mubr.f32.gmra.mrb[0].mxu0 %v1585
      %v1948 = vpop.f32.mrb[0].mxu0
      %v1949 = vadd.f32 0.0, %v1948
      %v1950 = vpop.f32.mrb[0].mxu0
      %1951 = vmatprep.mubr.f32.mxu0 0.0
      %1952 = vmatmul.mubr.f32.gmra.mrb[0].mxu0 %v1587
      %v1953 = vpop.f32.mrb[0].mxu0
      %v1954 = vadd.f32 0.0, %v1953
      %v1955 = vpop.f32.mrb[0].mxu0
      %1956 = vmatprep.mubr.f32.mxu0 0.0
      %1957 = vmatmul.mubr.f32.gmra.mrb[0].mxu0 %v1589
      %v1958 = vpop.f32.mrb[0].mxu0
      %v1959 = vadd.f32 0.0, %v1958
      %v1960 = vpop.f32.mrb[0].mxu0
      %1961 = vmatprep.mubr.f32.mxu0 0.0
      %1962 = vmatmul.mubr.f32.gmra.mrb[0].mxu0 %v1860
      %v1963 = vpop.f32.mrb[0].mxu0
      %v1964 = vadd.f32 0.0, %v1963
      %v1965 = vpop.f32.mrb[0].mxu0
      %1966 = vdwg.mxu0
      %v1967 = vadd.f32 %v1846, %v1929
      %v1968 = vadd.f32 %v1847, %v1934
      %v1969 = vadd.f32 %v1848, %v1939
      %v1970 = vadd.f32 %v1849, %v1944
      %v1971 = vadd.f32 %v1850, %v1949
      %v1972 = vadd.f32 %v1851, %v1954
      %v1973 = vadd.f32 %v1852, %v1959
      %v1974 = vadd.f32 %v1853, %v1964
      %v1976 = vrot.slane %v1397, 1
      %v1977 = vrot.slane %v1405, 1
      %v1978 = vsel %vm1425, %v1976, %v1977
      %s1979 = scalar_lea.vmem %s4, 128
      %v1980 = vld [vmem:[%s1979] sm:$0xff]
      %v1981 = vld [vmem:[%s1979 + $0x8] sm:$0xff]
      %v1982 = vld [vmem:[%s1979 + $0x10] sm:$0xff]
      %v1983 = vld [vmem:[%s1979 + $0x18] sm:$0xff]
      %v1984 = vsel %vm1308, %v1978, 0
      %1986 = vmatprep.subr.mxu0 0.0
      %1987 = vmatpush1.msra.mxu0 %v1980
      %1988 = vmatprep.subr.mxu0 0.0
      %1989 = vmatpush1.msra.mxu0 %v1981
      %1990 = vmatprep.subr.mxu0 0.0
      %1991 = vmatpush1.msra.mxu0 %v1982
      %1992 = vmatprep.subr.mxu0 0.0
      %1993 = vmatpush1.msra.mxu0 %v1983
      %1994 = vmatprep.subr.mxu0 0.0
      %1995 = vmatpush1.msra.mxu0 0.0
      %1996 = vmatprep.subr.mxu0 0.0
      %1997 = vmatpush1.msra.mxu0 0.0
      %1998 = vmatprep.subr.mxu0 0.0
      %1999 = vmatpush1.msra.mxu0 0.0
      %2000 = vmatprep.subr.mxu0 0.0
      %2001 = vmatpush1.msra.mxu0 0.0
      %2002 = vmatprep.subr.mxu0 0.0
      %2003 = vmatpush1.msra.mxu0 0.0
      %2004 = vmatprep.subr.mxu0 0.0
      %2005 = vmatpush1.msra.mxu0 0.0
      %2006 = vmatprep.subr.mxu0 0.0
      %2007 = vmatpush1.msra.mxu0 0.0
      %2008 = vmatprep.subr.mxu0 0.0
      %2009 = vmatpush1.msra.mxu0 0.0
      %2010 = vmatprep.subr.mxu0 0.0
      %2011 = vmatpush1.msra.mxu0 0.0
      %2012 = vmatprep.subr.mxu0 0.0
      %2013 = vmatpush1.msra.mxu0 0.0
      %2014 = vmatprep.subr.mxu0 0.0
      %2015 = vmatpush1.msra.mxu0 0.0
      %2016 = vmatprep.subr.mxu0 0.0
      %2017 = vmatpush1.msra.mxu0 0.0
      %2018 = vmatprep.subr.mxu0 0.0
      %2019 = vmatpush1.msra.mxu0 0.0
      %2020 = vmatprep.subr.mxu0 0.0
      %2021 = vmatpush1.msra.mxu0 0.0
      %2022 = vmatprep.subr.mxu0 0.0
      %2023 = vmatpush1.msra.mxu0 0.0
      %2024 = vmatprep.subr.mxu0 0.0
      %2025 = vmatpush1.msra.mxu0 0.0
      %2026 = vmatprep.subr.mxu0 0.0
      %2027 = vmatpush1.msra.mxu0 0.0
      %2028 = vmatprep.subr.mxu0 0.0
      %2029 = vmatpush1.msra.mxu0 0.0
      %2030 = vmatprep.subr.mxu0 0.0
      %2031 = vmatpush1.msra.mxu0 0.0
      %2032 = vmatprep.subr.mxu0 0.0
      %2033 = vmatpush1.msra.mxu0 0.0
      %2034 = vmatprep.subr.mxu0 0.0
      %2035 = vmatpush1.msra.mxu0 0.0
      %2036 = vmatprep.subr.mxu0 0.0
      %2037 = vmatpush1.msra.mxu0 0.0
      %2038 = vmatprep.subr.mxu0 0.0
      %2039 = vmatpush1.msra.mxu0 0.0
      %2040 = vmatprep.subr.mxu0 0.0
      %2041 = vmatpush1.msra.mxu0 0.0
      %2042 = vmatprep.subr.mxu0 0.0
      %2043 = vmatpush1.msra.mxu0 0.0
      %2044 = vmatprep.subr.mxu0 0.0
      %2045 = vmatpush1.msra.mxu0 0.0
      %2046 = vmatprep.subr.mxu0 0.0
      %2047 = vmatpush1.msra.mxu0 0.0
      %2048 = vmatprep.subr.mxu0 0.0
      %2049 = vmatpush1.msra.mxu0 0.0
      %2050 = vmatprep.mubr.f32.mxu0 0.0
      %2051 = vmatmul.mubr.f32.gmra.mrb[0].mxu0 %v1456
      %v2052 = vpop.f32.mrb[0].mxu0
      %v2053 = vadd.f32 0.0, %v2052
      %v2054 = vpop.f32.mrb[0].mxu0
      %2055 = vmatprep.mubr.f32.mxu0 0.0
      %2056 = vmatmul.mubr.f32.gmra.mrb[0].mxu0 %v1458
      %v2057 = vpop.f32.mrb[0].mxu0
      %v2058 = vadd.f32 0.0, %v2057
      %v2059 = vpop.f32.mrb[0].mxu0
      %2060 = vmatprep.mubr.f32.mxu0 0.0
      %2061 = vmatmul.mubr.f32.gmra.mrb[0].mxu0 %v1460
      %v2062 = vpop.f32.mrb[0].mxu0
      %v2063 = vadd.f32 0.0, %v2062
      %v2064 = vpop.f32.mrb[0].mxu0
      %2065 = vmatprep.mubr.f32.mxu0 0.0
      %2066 = vmatmul.mubr.f32.gmra.mrb[0].mxu0 %v1462
      %v2067 = vpop.f32.mrb[0].mxu0
      %v2068 = vadd.f32 0.0, %v2067
      %v2069 = vpop.f32.mrb[0].mxu0
      %2070 = vmatprep.mubr.f32.mxu0 0.0
      %2071 = vmatmul.mubr.f32.gmra.mrb[0].mxu0 %v1464
      %v2072 = vpop.f32.mrb[0].mxu0
      %v2073 = vadd.f32 0.0, %v2072
      %v2074 = vpop.f32.mrb[0].mxu0
      %2075 = vmatprep.mubr.f32.mxu0 0.0
      %2076 = vmatmul.mubr.f32.gmra.mrb[0].mxu0 %v1466
      %v2077 = vpop.f32.mrb[0].mxu0
      %v2078 = vadd.f32 0.0, %v2077
      %v2079 = vpop.f32.mrb[0].mxu0
      %2080 = vmatprep.mubr.f32.mxu0 0.0
      %2081 = vmatmul.mubr.f32.gmra.mrb[0].mxu0 %v1468
      %v2082 = vpop.f32.mrb[0].mxu0
      %v2083 = vadd.f32 0.0, %v2082
      %v2084 = vpop.f32.mrb[0].mxu0
      %2085 = vmatprep.mubr.f32.mxu0 0.0
      %2086 = vmatmul.mubr.f32.gmra.mrb[0].mxu0 %v1984
      %v2087 = vpop.f32.mrb[0].mxu0
      %v2088 = vadd.f32 0.0, %v2087
      %v2089 = vpop.f32.mrb[0].mxu0
      %2090 = vdwg.mxu0
      %v2091 = vadd.f32 %v1967, %v2053
      %v2092 = vadd.f32 %v1968, %v2058
      %v2093 = vadd.f32 %v1969, %v2063
      %v2094 = vadd.f32 %v1970, %v2068
      %v2095 = vadd.f32 %v1971, %v2073
      %v2096 = vadd.f32 %v1972, %v2078
      %v2097 = vadd.f32 %v1973, %v2083
      %v2098 = vadd.f32 %v1974, %v2088
      %v2099 = vrot.slane %v1397, 2
      %v2100 = vrot.slane %v1405, 2
      %v2101 = vsel %vm1696, %v2099, %v2100
      %s2102 = scalar_lea.vmem %s4, 160
      %v2103 = vld [vmem:[%s2102] sm:$0xff]
      %v2104 = vld [vmem:[%s2102 + $0x8] sm:$0xff]
      %v2105 = vld [vmem:[%s2102 + $0x10] sm:$0xff]
      %v2106 = vld [vmem:[%s2102 + $0x18] sm:$0xff]
      %v2107 = vsel %vm1308, %v2101, 0
      %2109 = vmatprep.subr.mxu0 0.0
      %2110 = vmatpush1.msra.mxu0 %v2103
      %2111 = vmatprep.subr.mxu0 0.0
      %2112 = vmatpush1.msra.mxu0 %v2104
      %2113 = vmatprep.subr.mxu0 0.0
      %2114 = vmatpush1.msra.mxu0 %v2105
      %2115 = vmatprep.subr.mxu0 0.0
      %2116 = vmatpush1.msra.mxu0 %v2106
      %2117 = vmatprep.subr.mxu0 0.0
      %2118 = vmatpush1.msra.mxu0 0.0
      %2119 = vmatprep.subr.mxu0 0.0
      %2120 = vmatpush1.msra.mxu0 0.0
      %2121 = vmatprep.subr.mxu0 0.0
      %2122 = vmatpush1.msra.mxu0 0.0
      %2123 = vmatprep.subr.mxu0 0.0
      %2124 = vmatpush1.msra.mxu0 0.0
      %2125 = vmatprep.subr.mxu0 0.0
      %2126 = vmatpush1.msra.mxu0 0.0
      %2127 = vmatprep.subr.mxu0 0.0
      %2128 = vmatpush1.msra.mxu0 0.0
      %2129 = vmatprep.subr.mxu0 0.0
      %2130 = vmatpush1.msra.mxu0 0.0
      %2131 = vmatprep.subr.mxu0 0.0
      %2132 = vmatpush1.msra.mxu0 0.0
      %2133 = vmatprep.subr.mxu0 0.0
      %2134 = vmatpush1.msra.mxu0 0.0
      %2135 = vmatprep.subr.mxu0 0.0
      %2136 = vmatpush1.msra.mxu0 0.0
      %2137 = vmatprep.subr.mxu0 0.0
      %2138 = vmatpush1.msra.mxu0 0.0
      %2139 = vmatprep.subr.mxu0 0.0
      %2140 = vmatpush1.msra.mxu0 0.0
      %2141 = vmatprep.subr.mxu0 0.0
      %2142 = vmatpush1.msra.mxu0 0.0
      %2143 = vmatprep.subr.mxu0 0.0
      %2144 = vmatpush1.msra.mxu0 0.0
      %2145 = vmatprep.subr.mxu0 0.0
      %2146 = vmatpush1.msra.mxu0 0.0
      %2147 = vmatprep.subr.mxu0 0.0
      %2148 = vmatpush1.msra.mxu0 0.0
      %2149 = vmatprep.subr.mxu0 0.0
      %2150 = vmatpush1.msra.mxu0 0.0
      %2151 = vmatprep.subr.mxu0 0.0
      %2152 = vmatpush1.msra.mxu0 0.0
      %2153 = vmatprep.subr.mxu0 0.0
      %2154 = vmatpush1.msra.mxu0 0.0
      %2155 = vmatprep.subr.mxu0 0.0
      %2156 = vmatpush1.msra.mxu0 0.0
      %2157 = vmatprep.subr.mxu0 0.0
      %2158 = vmatpush1.msra.mxu0 0.0
      %2159 = vmatprep.subr.mxu0 0.0
      %2160 = vmatpush1.msra.mxu0 0.0
      %2161 = vmatprep.subr.mxu0 0.0
      %2162 = vmatpush1.msra.mxu0 0.0
      %2163 = vmatprep.subr.mxu0 0.0
      %2164 = vmatpush1.msra.mxu0 0.0
      %2165 = vmatprep.subr.mxu0 0.0
      %2166 = vmatpush1.msra.mxu0 0.0
      %2167 = vmatprep.subr.mxu0 0.0
      %2168 = vmatpush1.msra.mxu0 0.0
      %2169 = vmatprep.subr.mxu0 0.0
      %2170 = vmatpush1.msra.mxu0 0.0
      %2171 = vmatprep.subr.mxu0 0.0
      %2172 = vmatpush1.msra.mxu0 0.0
      %2173 = vmatprep.mubr.f32.mxu0 0.0
      %2174 = vmatmul.mubr.f32.gmra.mrb[0].mxu0 %v1727
      %v2175 = vpop.f32.mrb[0].mxu0
      %v2176 = vadd.f32 0.0, %v2175
      %v2177 = vpop.f32.mrb[0].mxu0
      %2178 = vmatprep.mubr.f32.mxu0 0.0
      %2179 = vmatmul.mubr.f32.gmra.mrb[0].mxu0 %v1729
      %v2180 = vpop.f32.mrb[0].mxu0
      %v2181 = vadd.f32 0.0, %v2180
      %v2182 = vpop.f32.mrb[0].mxu0
      %2183 = vmatprep.mubr.f32.mxu0 0.0
      %2184 = vmatmul.mubr.f32.gmra.mrb[0].mxu0 %v1731
      %v2185 = vpop.f32.mrb[0].mxu0
      %v2186 = vadd.f32 0.0, %v2185
      %v2187 = vpop.f32.mrb[0].mxu0
      %2188 = vmatprep.mubr.f32.mxu0 0.0
      %2189 = vmatmul.mubr.f32.gmra.mrb[0].mxu0 %v1733
      %v2190 = vpop.f32.mrb[0].mxu0
      %v2191 = vadd.f32 0.0, %v2190
      %v2192 = vpop.f32.mrb[0].mxu0
      %2193 = vmatprep.mubr.f32.mxu0 0.0
      %2194 = vmatmul.mubr.f32.gmra.mrb[0].mxu0 %v1735
      %v2195 = vpop.f32.mrb[0].mxu0
      %v2196 = vadd.f32 0.0, %v2195
      %v2197 = vpop.f32.mrb[0].mxu0
      %2198 = vmatprep.mubr.f32.mxu0 0.0
      %2199 = vmatmul.mubr.f32.gmra.mrb[0].mxu0 %v1737
      %v2200 = vpop.f32.mrb[0].mxu0
      %v2201 = vadd.f32 0.0, %v2200
      %v2202 = vpop.f32.mrb[0].mxu0
      %2203 = vmatprep.mubr.f32.mxu0 0.0
      %2204 = vmatmul.mubr.f32.gmra.mrb[0].mxu0 %v1739
      %v2205 = vpop.f32.mrb[0].mxu0
      %v2206 = vadd.f32 0.0, %v2205
      %v2207 = vpop.f32.mrb[0].mxu0
      %2208 = vmatprep.mubr.f32.mxu0 0.0
      %2209 = vmatmul.mubr.f32.gmra.mrb[0].mxu0 %v2107
      %v2210 = vpop.f32.mrb[0].mxu0
      %v2211 = vadd.f32 0.0, %v2210
      %v2212 = vpop.f32.mrb[0].mxu0
      %2213 = vdwg.mxu0
      %v2214 = vadd.f32 %v2091, %v2176
      %v2215 = vadd.f32 %v2092, %v2181
      %v2216 = vadd.f32 %v2093, %v2186
      %v2217 = vadd.f32 %v2094, %v2191
      %v2218 = vadd.f32 %v2095, %v2196
      %v2219 = vadd.f32 %v2096, %v2201
      %v2220 = vadd.f32 %v2097, %v2206
      %v2221 = vadd.f32 %v2098, %v2211
      %s2222 = scalar_lea.vmem %s4, 192
      %v2223 = vld [vmem:[%s2222] sm:$0xff]
      %v2224 = vld [vmem:[%s2222 + $0x8] sm:$0xff]
      %v2225 = vld [vmem:[%s2222 + $0x10] sm:$0xff]
      %v2226 = vld [vmem:[%s2222 + $0x18] sm:$0xff]
      %2227 = vmatprep.subr.mxu0 0.0
      %2228 = vmatpush1.msra.mxu0 %v2223
      %2229 = vmatprep.subr.mxu0 0.0
      %2230 = vmatpush1.msra.mxu0 %v2224
      %2231 = vmatprep.subr.mxu0 0.0
      %2232 = vmatpush1.msra.mxu0 %v2225
      %2233 = vmatprep.subr.mxu0 0.0
      %2234 = vmatpush1.msra.mxu0 %v2226
      %2235 = vmatprep.subr.mxu0 0.0
      %2236 = vmatpush1.msra.mxu0 0.0
      %2237 = vmatprep.subr.mxu0 0.0
      %2238 = vmatpush1.msra.mxu0 0.0
      %2239 = vmatprep.subr.mxu0 0.0
      %2240 = vmatpush1.msra.mxu0 0.0
      %2241 = vmatprep.subr.mxu0 0.0
      %2242 = vmatpush1.msra.mxu0 0.0
      %2243 = vmatprep.subr.mxu0 0.0
      %2244 = vmatpush1.msra.mxu0 0.0
      %2245 = vmatprep.subr.mxu0 0.0
      %2246 = vmatpush1.msra.mxu0 0.0
      %2247 = vmatprep.subr.mxu0 0.0
      %2248 = vmatpush1.msra.mxu0 0.0
      %2249 = vmatprep.subr.mxu0 0.0
      %2250 = vmatpush1.msra.mxu0 0.0
      %2251 = vmatprep.subr.mxu0 0.0
      %2252 = vmatpush1.msra.mxu0 0.0
      %2253 = vmatprep.subr.mxu0 0.0
      %2254 = vmatpush1.msra.mxu0 0.0
      %2255 = vmatprep.subr.mxu0 0.0
      %2256 = vmatpush1.msra.mxu0 0.0
      %2257 = vmatprep.subr.mxu0 0.0
      %2258 = vmatpush1.msra.mxu0 0.0
      %2259 = vmatprep.subr.mxu0 0.0
      %2260 = vmatpush1.msra.mxu0 0.0
      %2261 = vmatprep.subr.mxu0 0.0
      %2262 = vmatpush1.msra.mxu0 0.0
      %2263 = vmatprep.subr.mxu0 0.0
      %2264 = vmatpush1.msra.mxu0 0.0
      %2265 = vmatprep.subr.mxu0 0.0
      %2266 = vmatpush1.msra.mxu0 0.0
      %2267 = vmatprep.subr.mxu0 0.0
      %2268 = vmatpush1.msra.mxu0 0.0
      %2269 = vmatprep.subr.mxu0 0.0
      %2270 = vmatpush1.msra.mxu0 0.0
      %2271 = vmatprep.subr.mxu0 0.0
      %2272 = vmatpush1.msra.mxu0 0.0
      %2273 = vmatprep.subr.mxu0 0.0
      %2274 = vmatpush1.msra.mxu0 0.0
      %2275 = vmatprep.subr.mxu0 0.0
      %2276 = vmatpush1.msra.mxu0 0.0
      %2277 = vmatprep.subr.mxu0 0.0
      %2278 = vmatpush1.msra.mxu0 0.0
      %2279 = vmatprep.subr.mxu0 0.0
      %2280 = vmatpush1.msra.mxu0 0.0
      %2281 = vmatprep.subr.mxu0 0.0
      %2282 = vmatpush1.msra.mxu0 0.0
      %2283 = vmatprep.subr.mxu0 0.0
      %2284 = vmatpush1.msra.mxu0 0.0
      %2285 = vmatprep.subr.mxu0 0.0
      %2286 = vmatpush1.msra.mxu0 0.0
      %2287 = vmatprep.subr.mxu0 0.0
      %2288 = vmatpush1.msra.mxu0 0.0
      %2289 = vmatprep.subr.mxu0 0.0
      %2290 = vmatpush1.msra.mxu0 0.0
      %2291 = vmatprep.mubr.f32.mxu0 0.0
      %2292 = vmatmul.mubr.f32.gmra.mrb[0].mxu0 %v1579
      %v2293 = vpop.f32.mrb[0].mxu0
      %v2294 = vadd.f32 0.0, %v2293
      %v2295 = vpop.f32.mrb[0].mxu0
      %2296 = vmatprep.mubr.f32.mxu0 0.0
      %2297 = vmatmul.mubr.f32.gmra.mrb[0].mxu0 %v1581
      %v2298 = vpop.f32.mrb[0].mxu0
      %v2299 = vadd.f32 0.0, %v2298
      %v2300 = vpop.f32.mrb[0].mxu0
      %2301 = vmatprep.mubr.f32.mxu0 0.0
      %2302 = vmatmul.mubr.f32.gmra.mrb[0].mxu0 %v1583
      %v2303 = vpop.f32.mrb[0].mxu0
      %v2304 = vadd.f32 0.0, %v2303
      %v2305 = vpop.f32.mrb[0].mxu0
      %2306 = vmatprep.mubr.f32.mxu0 0.0
      %2307 = vmatmul.mubr.f32.gmra.mrb[0].mxu0 %v1585
      %v2308 = vpop.f32.mrb[0].mxu0
      %v2309 = vadd.f32 0.0, %v2308
      %v2310 = vpop.f32.mrb[0].mxu0
      %2311 = vmatprep.mubr.f32.mxu0 0.0
      %2312 = vmatmul.mubr.f32.gmra.mrb[0].mxu0 %v1587
      %v2313 = vpop.f32.mrb[0].mxu0
      %v2314 = vadd.f32 0.0, %v2313
      %v2315 = vpop.f32.mrb[0].mxu0
      %2316 = vmatprep.mubr.f32.mxu0 0.0
      %2317 = vmatmul.mubr.f32.gmra.mrb[0].mxu0 %v1589
      %v2318 = vpop.f32.mrb[0].mxu0
      %v2319 = vadd.f32 0.0, %v2318
      %v2320 = vpop.f32.mrb[0].mxu0
      %2321 = vmatprep.mubr.f32.mxu0 0.0
      %2322 = vmatmul.mubr.f32.gmra.mrb[0].mxu0 %v1860
      %v2323 = vpop.f32.mrb[0].mxu0
      %v2324 = vadd.f32 0.0, %v2323
      %v2325 = vpop.f32.mrb[0].mxu0
      %2326 = vmatprep.mubr.f32.mxu0 0.0
      %2327 = vmatmul.mubr.f32.gmra.mrb[0].mxu0 %v1575
      %v2328 = vpop.f32.mrb[0].mxu0
      %v2329 = vadd.f32 0.0, %v2328
      %v2330 = vpop.f32.mrb[0].mxu0
      %2331 = vdwg.mxu0
      %v2332 = vadd.f32 %v2214, %v2294
      %v2333 = vadd.f32 %v2215, %v2299
      %v2334 = vadd.f32 %v2216, %v2304
      %v2335 = vadd.f32 %v2217, %v2309
      %v2336 = vadd.f32 %v2218, %v2314
      %v2337 = vadd.f32 %v2219, %v2319
      %v2338 = vadd.f32 %v2220, %v2324
      %v2339 = vadd.f32 %v2221, %v2329
      %s2340 = scalar_lea.vmem %s4, 224
      %v2341 = vld [vmem:[%s2340] sm:$0xff]
      %v2342 = vld [vmem:[%s2340 + $0x8] sm:$0xff]
      %v2343 = vld [vmem:[%s2340 + $0x10] sm:$0xff]
      %v2344 = vld [vmem:[%s2340 + $0x18] sm:$0xff]
      %2345 = vmatprep.subr.mxu0 0.0
      %2346 = vmatpush1.msra.mxu0 %v2341
      %2347 = vmatprep.subr.mxu0 0.0
      %2348 = vmatpush1.msra.mxu0 %v2342
      %2349 = vmatprep.subr.mxu0 0.0
      %2350 = vmatpush1.msra.mxu0 %v2343
      %2351 = vmatprep.subr.mxu0 0.0
      %2352 = vmatpush1.msra.mxu0 %v2344
      %2353 = vmatprep.subr.mxu0 0.0
      %2354 = vmatpush1.msra.mxu0 0.0
      %2355 = vmatprep.subr.mxu0 0.0
      %2356 = vmatpush1.msra.mxu0 0.0
      %2357 = vmatprep.subr.mxu0 0.0
      %2358 = vmatpush1.msra.mxu0 0.0
      %2359 = vmatprep.subr.mxu0 0.0
      %2360 = vmatpush1.msra.mxu0 0.0
      %2361 = vmatprep.subr.mxu0 0.0
      %2362 = vmatpush1.msra.mxu0 0.0
      %2363 = vmatprep.subr.mxu0 0.0
      %2364 = vmatpush1.msra.mxu0 0.0
      %2365 = vmatprep.subr.mxu0 0.0
      %2366 = vmatpush1.msra.mxu0 0.0
      %2367 = vmatprep.subr.mxu0 0.0
      %2368 = vmatpush1.msra.mxu0 0.0
      %2369 = vmatprep.subr.mxu0 0.0
      %2370 = vmatpush1.msra.mxu0 0.0
      %2371 = vmatprep.subr.mxu0 0.0
      %2372 = vmatpush1.msra.mxu0 0.0
      %2373 = vmatprep.subr.mxu0 0.0
      %2374 = vmatpush1.msra.mxu0 0.0
      %2375 = vmatprep.subr.mxu0 0.0
      %2376 = vmatpush1.msra.mxu0 0.0
      %2377 = vmatprep.subr.mxu0 0.0
      %2378 = vmatpush1.msra.mxu0 0.0
      %2379 = vmatprep.subr.mxu0 0.0
      %2380 = vmatpush1.msra.mxu0 0.0
      %2381 = vmatprep.subr.mxu0 0.0
      %2382 = vmatpush1.msra.mxu0 0.0
      %2383 = vmatprep.subr.mxu0 0.0
      %2384 = vmatpush1.msra.mxu0 0.0
      %2385 = vmatprep.subr.mxu0 0.0
      %2386 = vmatpush1.msra.mxu0 0.0
      %2387 = vmatprep.subr.mxu0 0.0
      %2388 = vmatpush1.msra.mxu0 0.0
      %2389 = vmatprep.subr.mxu0 0.0
      %2390 = vmatpush1.msra.mxu0 0.0
      %2391 = vmatprep.subr.mxu0 0.0
      %2392 = vmatpush1.msra.mxu0 0.0
      %2393 = vmatprep.subr.mxu0 0.0
      %2394 = vmatpush1.msra.mxu0 0.0
      %2395 = vmatprep.subr.mxu0 0.0
      %2396 = vmatpush1.msra.mxu0 0.0
      %2397 = vmatprep.subr.mxu0 0.0
      %2398 = vmatpush1.msra.mxu0 0.0
      %2399 = vmatprep.subr.mxu0 0.0
      %2400 = vmatpush1.msra.mxu0 0.0
      %2401 = vmatprep.subr.mxu0 0.0
      %2402 = vmatpush1.msra.mxu0 0.0
      %2403 = vmatprep.subr.mxu0 0.0
      %2404 = vmatpush1.msra.mxu0 0.0
      %2405 = vmatprep.subr.mxu0 0.0
      %2406 = vmatpush1.msra.mxu0 0.0
      %2407 = vmatprep.subr.mxu0 0.0
      %2408 = vmatpush1.msra.mxu0 0.0
      %2409 = vmatprep.mubr.f32.mxu0 0.0
      %2410 = vmatmul.mubr.f32.gmra.mrb[0].mxu0 %v1458
      %v2411 = vpop.f32.mrb[0].mxu0
      %v2412 = vadd.f32 0.0, %v2411
      %v2413 = vpop.f32.mrb[0].mxu0
      %2414 = vmatprep.mubr.f32.mxu0 0.0
      %2415 = vmatmul.mubr.f32.gmra.mrb[0].mxu0 %v1460
      %v2416 = vpop.f32.mrb[0].mxu0
      %v2417 = vadd.f32 0.0, %v2416
      %v2418 = vpop.f32.mrb[0].mxu0
      %2419 = vmatprep.mubr.f32.mxu0 0.0
      %2420 = vmatmul.mubr.f32.gmra.mrb[0].mxu0 %v1462
      %v2421 = vpop.f32.mrb[0].mxu0
      %v2422 = vadd.f32 0.0, %v2421
      %v2423 = vpop.f32.mrb[0].mxu0
      %2424 = vmatprep.mubr.f32.mxu0 0.0
      %2425 = vmatmul.mubr.f32.gmra.mrb[0].mxu0 %v1464
      %v2426 = vpop.f32.mrb[0].mxu0
      %v2427 = vadd.f32 0.0, %v2426
      %v2428 = vpop.f32.mrb[0].mxu0
      %2429 = vmatprep.mubr.f32.mxu0 0.0
      %2430 = vmatmul.mubr.f32.gmra.mrb[0].mxu0 %v1466
      %v2431 = vpop.f32.mrb[0].mxu0
      %v2432 = vadd.f32 0.0, %v2431
      %v2433 = vpop.f32.mrb[0].mxu0
      %2434 = vmatprep.mubr.f32.mxu0 0.0
      %2435 = vmatmul.mubr.f32.gmra.mrb[0].mxu0 %v1468
      %v2436 = vpop.f32.mrb[0].mxu0
      %v2437 = vadd.f32 0.0, %v2436
      %v2438 = vpop.f32.mrb[0].mxu0
      %2439 = vmatprep.mubr.f32.mxu0 0.0
      %2440 = vmatmul.mubr.f32.gmra.mrb[0].mxu0 %v1984
      %v2441 = vpop.f32.mrb[0].mxu0
      %v2442 = vadd.f32 0.0, %v2441
      %v2443 = vpop.f32.mrb[0].mxu0
      %2444 = vmatprep.mubr.f32.mxu0 0.0
      %2445 = vmatmul.mubr.f32.gmra.mrb[0].mxu0 %v1454
      %v2446 = vpop.f32.mrb[0].mxu0
      %v2447 = vadd.f32 0.0, %v2446
      %v2448 = vpop.f32.mrb[0].mxu0
      %2449 = vdwg.mxu0
      %v2450 = vadd.f32 %v2332, %v2412
      %v2451 = vadd.f32 %v2333, %v2417
      %v2452 = vadd.f32 %v2334, %v2422
      %v2453 = vadd.f32 %v2335, %v2427
      %v2454 = vadd.f32 %v2336, %v2432
      %v2455 = vadd.f32 %v2337, %v2437
      %v2456 = vadd.f32 %v2338, %v2442
      %v2457 = vadd.f32 %v2339, %v2447
      %s2458 = scalar_lea.vmem %s4, 256
      %v2459 = vld [vmem:[%s2458] sm:$0xff]
      %v2460 = vld [vmem:[%s2458 + $0x8] sm:$0xff]
      %v2461 = vld [vmem:[%s2458 + $0x10] sm:$0xff]
      %v2462 = vld [vmem:[%s2458 + $0x18] sm:$0xff]
      %2463 = vmatprep.subr.mxu0 0.0
      %2464 = vmatpush1.msra.mxu0 %v2459
      %2465 = vmatprep.subr.mxu0 0.0
      %2466 = vmatpush1.msra.mxu0 %v2460
      %2467 = vmatprep.subr.mxu0 0.0
      %2468 = vmatpush1.msra.mxu0 %v2461
      %2469 = vmatprep.subr.mxu0 0.0
      %2470 = vmatpush1.msra.mxu0 %v2462
      %2471 = vmatprep.subr.mxu0 0.0
      %2472 = vmatpush1.msra.mxu0 0.0
      %2473 = vmatprep.subr.mxu0 0.0
      %2474 = vmatpush1.msra.mxu0 0.0
      %2475 = vmatprep.subr.mxu0 0.0
      %2476 = vmatpush1.msra.mxu0 0.0
      %2477 = vmatprep.subr.mxu0 0.0
      %2478 = vmatpush1.msra.mxu0 0.0
      %2479 = vmatprep.subr.mxu0 0.0
      %2480 = vmatpush1.msra.mxu0 0.0
      %2481 = vmatprep.subr.mxu0 0.0
      %2482 = vmatpush1.msra.mxu0 0.0
      %2483 = vmatprep.subr.mxu0 0.0
      %2484 = vmatpush1.msra.mxu0 0.0
      %2485 = vmatprep.subr.mxu0 0.0
      %2486 = vmatpush1.msra.mxu0 0.0
      %2487 = vmatprep.subr.mxu0 0.0
      %2488 = vmatpush1.msra.mxu0 0.0
      %2489 = vmatprep.subr.mxu0 0.0
      %2490 = vmatpush1.msra.mxu0 0.0
      %2491 = vmatprep.subr.mxu0 0.0
      %2492 = vmatpush1.msra.mxu0 0.0
      %2493 = vmatprep.subr.mxu0 0.0
      %2494 = vmatpush1.msra.mxu0 0.0
      %2495 = vmatprep.subr.mxu0 0.0
      %2496 = vmatpush1.msra.mxu0 0.0
      %2497 = vmatprep.subr.mxu0 0.0
      %2498 = vmatpush1.msra.mxu0 0.0
      %2499 = vmatprep.subr.mxu0 0.0
      %2500 = vmatpush1.msra.mxu0 0.0
      %2501 = vmatprep.subr.mxu0 0.0
      %2502 = vmatpush1.msra.mxu0 0.0
      %2503 = vmatprep.subr.mxu0 0.0
      %2504 = vmatpush1.msra.mxu0 0.0
      %2505 = vmatprep.subr.mxu0 0.0
      %2506 = vmatpush1.msra.mxu0 0.0
      %2507 = vmatprep.subr.mxu0 0.0
      %2508 = vmatpush1.msra.mxu0 0.0
      %2509 = vmatprep.subr.mxu0 0.0
      %2510 = vmatpush1.msra.mxu0 0.0
      %2511 = vmatprep.subr.mxu0 0.0
      %2512 = vmatpush1.msra.mxu0 0.0
      %2513 = vmatprep.subr.mxu0 0.0
      %2514 = vmatpush1.msra.mxu0 0.0
      %2515 = vmatprep.subr.mxu0 0.0
      %2516 = vmatpush1.msra.mxu0 0.0
      %2517 = vmatprep.subr.mxu0 0.0
      %2518 = vmatpush1.msra.mxu0 0.0
      %2519 = vmatprep.subr.mxu0 0.0
      %2520 = vmatpush1.msra.mxu0 0.0
      %2521 = vmatprep.subr.mxu0 0.0
      %2522 = vmatpush1.msra.mxu0 0.0
      %2523 = vmatprep.subr.mxu0 0.0
      %2524 = vmatpush1.msra.mxu0 0.0
      %2525 = vmatprep.subr.mxu0 0.0
      %2526 = vmatpush1.msra.mxu0 0.0
      %2527 = vmatprep.mubr.f32.mxu0 0.0
      %2528 = vmatmul.mubr.f32.gmra.mrb[0].mxu0 %v1729
      %v2529 = vpop.f32.mrb[0].mxu0
      %v2530 = vadd.f32 0.0, %v2529
      %v2531 = vpop.f32.mrb[0].mxu0
      %2532 = vmatprep.mubr.f32.mxu0 0.0
      %2533 = vmatmul.mubr.f32.gmra.mrb[0].mxu0 %v1731
      %v2534 = vpop.f32.mrb[0].mxu0
      %v2535 = vadd.f32 0.0, %v2534
      %v2536 = vpop.f32.mrb[0].mxu0
      %2537 = vmatprep.mubr.f32.mxu0 0.0
      %2538 = vmatmul.mubr.f32.gmra.mrb[0].mxu0 %v1733
      %v2539 = vpop.f32.mrb[0].mxu0
      %v2540 = vadd.f32 0.0, %v2539
      %v2541 = vpop.f32.mrb[0].mxu0
      %2542 = vmatprep.mubr.f32.mxu0 0.0
      %2543 = vmatmul.mubr.f32.gmra.mrb[0].mxu0 %v1735
      %v2544 = vpop.f32.mrb[0].mxu0
      %v2545 = vadd.f32 0.0, %v2544
      %v2546 = vpop.f32.mrb[0].mxu0
      %2547 = vmatprep.mubr.f32.mxu0 0.0
      %2548 = vmatmul.mubr.f32.gmra.mrb[0].mxu0 %v1737
      %v2549 = vpop.f32.mrb[0].mxu0
      %v2550 = vadd.f32 0.0, %v2549
      %v2551 = vpop.f32.mrb[0].mxu0
      %2552 = vmatprep.mubr.f32.mxu0 0.0
      %2553 = vmatmul.mubr.f32.gmra.mrb[0].mxu0 %v1739
      %v2554 = vpop.f32.mrb[0].mxu0
      %v2555 = vadd.f32 0.0, %v2554
      %v2556 = vpop.f32.mrb[0].mxu0
      %2557 = vmatprep.mubr.f32.mxu0 0.0
      %2558 = vmatmul.mubr.f32.gmra.mrb[0].mxu0 %v2107
      %v2559 = vpop.f32.mrb[0].mxu0
      %v2560 = vadd.f32 0.0, %v2559
      %v2561 = vpop.f32.mrb[0].mxu0
      %2562 = vmatprep.mubr.f32.mxu0 0.0
      %2563 = vmatmul.mubr.f32.gmra.mrb[0].mxu0 %v1725
      %v2564 = vpop.f32.mrb[0].mxu0
      %v2565 = vadd.f32 0.0, %v2564
      %v2566 = vpop.f32.mrb[0].mxu0
      %2567 = vdwg.mxu0
      %v2568 = vadd.f32 %v2450, %v2530
      %v2569 = vadd.f32 %v2451, %v2535
      %v2570 = vadd.f32 %v2452, %v2540
      %v2571 = vadd.f32 %v2453, %v2545
      %v2572 = vadd.f32 %v2454, %v2550
      %v2573 = vadd.f32 %v2455, %v2555
      %v2574 = vadd.f32 %v2456, %v2560
      %v2575 = vadd.f32 %v2457, %v2565
      %v2576 = vld [vmem:[%s5] sm:$0x1]
      %v2578 = vlaneseq
      %v2579 = vshrl.u32 %v2578, 7
      %v2580 = vsub.s32 0, %v2579
      %v2581 = vrot.slane %v2576, %v2580
      %v2583 = vadd.f32 %v2568, %v2581
      %v2584 = vadd.f32 %v2569, %v2581
      %v2585 = vadd.f32 %v2570, %v2581
      %v2586 = vadd.f32 %v2571, %v2581
      %v2587 = vadd.f32 %v2572, %v2581
      %v2588 = vadd.f32 %v2573, %v2581
      %v2589 = vadd.f32 %v2574, %v2581
      %v2590 = vadd.f32 %v2575, %v2581
      %v2591 = vmax.f32 %v2583, 0.0
      %v2592 = vmax.f32 %v2584, 0.0
      %v2593 = vmax.f32 %v2585, 0.0
      %v2594 = vmax.f32 %v2586, 0.0
      %v2595 = vmax.f32 %v2587, 0.0
      %v2596 = vmax.f32 %v2588, 0.0
      %v2597 = vmax.f32 %v2589, 0.0
      %v2598 = vmax.f32 %v2590, 0.0
      %vm2599 = vcmask 523264
      %v2600 = vsel %vm2599, %v2591, -inf
      %v2601 = vsel %vm2599, %v2592, -inf
      %v2602 = vmax.f32 %v2600, %v2601
      %v2603 = vsel %vm2599, %v2593, -inf
      %v2604 = vsel %vm2599, %v2594, -inf
      %v2605 = vmax.f32 %v2603, %v2604
      %v2606 = vsel %vm2599, %v2595, -inf
      %v2607 = vsel %vm2599, %v2596, -inf
      %v2608 = vmax.f32 %v2606, %v2607
      %v2609 = vsel %vm2599, %v2597, -inf
      %v2610 = vsel %vm2599, %v2598, -inf
      %v2611 = vmax.f32 %v2609, %v2610
      %v2613 = vrot.slane %v2602, 1
      %v2615 = vmax.f32 %v2602, %v2613
      %v2617 = vrot.slane %v2605, 1
      %v2619 = vmax.f32 %v2605, %v2617
      %v2621 = vrot.slane %v2608, 1
      %v2623 = vmax.f32 %v2608, %v2621
      %v2625 = vrot.slane %v2611, 1
      %v2627 = vmax.f32 %v2611, %v2625
      %v2629 = vrot.slane %v2615, 2
      %2630 = vrot.lane.b32.xlu0 %v2629, 64
      %v2631 = vpop.permute.xlu0 %2630
      %v2633 = vrot.slane %v2615, 4
      %v2635 = vrot.slane %v2615, 6
      %2636 = vrot.lane.b32.xlu0 %v2635, 64
      %v2637 = vpop.permute.xlu0 %2636
      %v2640 = vrot.slane %v2619, 2
      %2641 = vrot.lane.b32.xlu0 %v2640, 64
      %v2642 = vpop.permute.xlu0 %2641
      %v2644 = vrot.slane %v2619, 4
      %v2646 = vrot.slane %v2619, 6
      %2647 = vrot.lane.b32.xlu0 %v2646, 64
      %v2648 = vpop.permute.xlu0 %2647
      %v2651 = vrot.slane %v2623, 2
      %2652 = vrot.lane.b32.xlu0 %v2651, 64
      %v2653 = vpop.permute.xlu0 %2652
      %v2655 = vrot.slane %v2623, 4
      %v2657 = vrot.slane %v2623, 6
      %2658 = vrot.lane.b32.xlu0 %v2657, 64
      %v2659 = vpop.permute.xlu0 %2658
      %v2662 = vrot.slane %v2627, 2
      %2663 = vrot.lane.b32.xlu0 %v2662, 64
      %v2664 = vpop.permute.xlu0 %2663
      %v2666 = vrot.slane %v2627, 4
      %v2668 = vrot.slane %v2627, 6
      %2669 = vrot.lane.b32.xlu0 %v2668, 64
      %v2670 = vpop.permute.xlu0 %2669
      %v2672 = vsel %vm2599, %v2615, %v2631
      %v2673 = vsel %vm2599, %v2633, %v2637
      %v2674 = vsel %vm2599, %v2619, %v2642
      %v2675 = vsel %vm2599, %v2644, %v2648
      %v2676 = vsel %vm2599, %v2623, %v2653
      %v2677 = vsel %vm2599, %v2655, %v2659
      %v2678 = vsel %vm2599, %v2627, %v2664
      %v2679 = vsel %vm2599, %v2666, %v2670
      %v2680 = vld [vmem:[%s447] sm:$0x1]
      %v2681 = vld [vmem:[%s6] sm:$0xff]
      %v2682 = vld [vmem:[%s7] sm:$0x1]
      %vm2683 = vcmask 64512
      %v2685 = vsel %vm2683, %v2680, 0
      %2687 = vmatprep.subr.mxu0 0.0
      %2688 = vmatpush1.msra.mxu0 %v2681
      %2689 = vmatprep.subr.mxu0 0.0
      %2690 = vmatpush1.msra.mxu0 0.0
      %2691 = vmatprep.subr.mxu0 0.0
      %2692 = vmatpush1.msra.mxu0 0.0
      %2693 = vmatprep.subr.mxu0 0.0
      %2694 = vmatpush1.msra.mxu0 0.0
      %2695 = vmatprep.subr.mxu0 0.0
      %2696 = vmatpush1.msra.mxu0 0.0
      %2697 = vmatprep.subr.mxu0 0.0
      %2698 = vmatpush1.msra.mxu0 0.0
      %2699 = vmatprep.subr.mxu0 0.0
      %2700 = vmatpush1.msra.mxu0 0.0
      %2701 = vmatprep.subr.mxu0 0.0
      %2702 = vmatpush1.msra.mxu0 0.0
      %2703 = vmatprep.subr.mxu0 0.0
      %2704 = vmatpush1.msra.mxu0 0.0
      %2705 = vmatprep.subr.mxu0 0.0
      %2706 = vmatpush1.msra.mxu0 0.0
      %2707 = vmatprep.subr.mxu0 0.0
      %2708 = vmatpush1.msra.mxu0 0.0
      %2709 = vmatprep.subr.mxu0 0.0
      %2710 = vmatpush1.msra.mxu0 0.0
      %2711 = vmatprep.subr.mxu0 0.0
      %2712 = vmatpush1.msra.mxu0 0.0
      %2713 = vmatprep.subr.mxu0 0.0
      %2714 = vmatpush1.msra.mxu0 0.0
      %2715 = vmatprep.subr.mxu0 0.0
      %2716 = vmatpush1.msra.mxu0 0.0
      %2717 = vmatprep.subr.mxu0 0.0
      %2718 = vmatpush1.msra.mxu0 0.0
      %2719 = vmatprep.subr.mxu0 0.0
      %2720 = vmatpush1.msra.mxu0 0.0
      %2721 = vmatprep.subr.mxu0 0.0
      %2722 = vmatpush1.msra.mxu0 0.0
      %2723 = vmatprep.subr.mxu0 0.0
      %2724 = vmatpush1.msra.mxu0 0.0
      %2725 = vmatprep.subr.mxu0 0.0
      %2726 = vmatpush1.msra.mxu0 0.0
      %2727 = vmatprep.subr.mxu0 0.0
      %2728 = vmatpush1.msra.mxu0 0.0
      %2729 = vmatprep.subr.mxu0 0.0
      %2730 = vmatpush1.msra.mxu0 0.0
      %2731 = vmatprep.subr.mxu0 0.0
      %2732 = vmatpush1.msra.mxu0 0.0
      %2733 = vmatprep.subr.mxu0 0.0
      %2734 = vmatpush1.msra.mxu0 0.0
      %2735 = vmatprep.subr.mxu0 0.0
      %2736 = vmatpush1.msra.mxu0 0.0
      %2737 = vmatprep.subr.mxu0 0.0
      %2738 = vmatpush1.msra.mxu0 0.0
      %2739 = vmatprep.subr.mxu0 0.0
      %2740 = vmatpush1.msra.mxu0 0.0
      %2741 = vmatprep.subr.mxu0 0.0
      %2742 = vmatpush1.msra.mxu0 0.0
      %2743 = vmatprep.subr.mxu0 0.0
      %2744 = vmatpush1.msra.mxu0 0.0
      %2745 = vmatprep.subr.mxu0 0.0
      %2746 = vmatpush1.msra.mxu0 0.0
      %2747 = vmatprep.subr.mxu0 0.0
      %2748 = vmatpush1.msra.mxu0 0.0
      %2749 = vmatprep.subr.mxu0 0.0
      %2750 = vmatpush1.msra.mxu0 0.0
      %2751 = vmatprep.mubr.f32.mxu0 0.0
      %2752 = vmatmul.mubr.f32.gmra.mrb[0].mxu0 %v2685
      %v2753 = vpop.f32.mrb[0].mxu0
      %v2754 = vadd.f32 %v2682, %v2753
      %v2755 = vpop.f32.mrb[0].mxu0
      %2756 = vdwg.mxu0
      %v2757 = vmax.f32 %v2754, 0.0
      %v2758 = vld [vmem:[%s8] sm:$0xff]
      %v2759 = vld [vmem:[%s8 + $0x8] sm:$0xff]
      %v2760 = vld [vmem:[%s8 + $0x10] sm:$0xff]
      %v2761 = vld [vmem:[%s8 + $0x18] sm:$0xff]
      %v2762 = vld [vmem:[%s8 + $0x20] sm:$0xff]
      %v2763 = vld [vmem:[%s8 + $0x28] sm:$0xff]
      %v2764 = vld [vmem:[%s8 + $0x30] sm:$0xff]
      %v2765 = vld [vmem:[%s8 + $0x38] sm:$0xff]
      %v2766 = vld [vmem:[%s8 + $0x40] sm:$0xff]
      %v2767 = vld [vmem:[%s8 + $0x48] sm:$0xff]
      %v2768 = vld [vmem:[%s8 + $0x50] sm:$0xff]
      %v2769 = vld [vmem:[%s8 + $0x58] sm:$0xff]
      %v2770 = vld [vmem:[%s8 + $0x60] sm:$0xff]
      %v2771 = vld [vmem:[%s8 + $0x68] sm:$0xff]
      %v2772 = vld [vmem:[%s8 + $0x70] sm:$0xff]
      %v2773 = vld [vmem:[%s8 + $0x78] sm:$0xff]
      %v2774 = vld [vmem:[%s8 + $0x80] sm:$0xff]
      %v2775 = vld [vmem:[%s8 + $0x88] sm:$0xff]
      %v2776 = vld [vmem:[%s8 + $0x90] sm:$0xff]
      %v2777 = vld [vmem:[%s8 + $0x98] sm:$0xff]
      %v2778 = vld [vmem:[%s8 + $0xa0] sm:$0xff]
      %v2779 = vld [vmem:[%s8 + $0xa8] sm:$0xff]
      %v2780 = vld [vmem:[%s8 + $0xb0] sm:$0xff]
      %v2781 = vld [vmem:[%s8 + $0xb8] sm:$0xff]
      %v2782 = vld [vmem:[%s8 + $0xc0] sm:$0xff]
      %v2783 = vld [vmem:[%s8 + $0xc8] sm:$0xff]
      %v2784 = vld [vmem:[%s8 + $0xd0] sm:$0xff]
      %v2785 = vld [vmem:[%s8 + $0xd8] sm:$0xff]
      %v2786 = vld [vmem:[%s8 + $0xe0] sm:$0xff]
      %v2787 = vld [vmem:[%s8 + $0xe8] sm:$0xff]
      %v2788 = vld [vmem:[%s8 + $0xf0] sm:$0xff]
      %v2789 = vld [vmem:[%s8 + $0xf8] sm:$0xff]
      %v2790 = vld [vmem:[%s8 + $0x100] sm:$0xff]
      %v2791 = vld [vmem:[%s8 + $0x108] sm:$0xff]
      %v2792 = vld [vmem:[%s8 + $0x110] sm:$0xff]
      %v2793 = vld [vmem:[%s8 + $0x118] sm:$0xff]
      %v2794 = vld [vmem:[%s8 + $0x120] sm:$0xff]
      %v2795 = vld [vmem:[%s8 + $0x128] sm:$0xff]
      %v2796 = vld [vmem:[%s8 + $0x130] sm:$0xff]
      %v2797 = vld [vmem:[%s8 + $0x138] sm:$0xff]
      %v2798 = vld [vmem:[%s8 + $0x140] sm:$0xff]
      %v2799 = vld [vmem:[%s8 + $0x148] sm:$0xff]
      %v2800 = vld [vmem:[%s8 + $0x150] sm:$0xff]
      %v2801 = vld [vmem:[%s8 + $0x158] sm:$0xff]
      %v2802 = vld [vmem:[%s8 + $0x160] sm:$0xff]
      %v2803 = vld [vmem:[%s8 + $0x168] sm:$0xff]
      %v2804 = vld [vmem:[%s8 + $0x170] sm:$0xff]
      %v2805 = vld [vmem:[%s8 + $0x178] sm:$0xff]
      %v2806 = vld [vmem:[%s8 + $0x180] sm:$0xff]
      %v2807 = vld [vmem:[%s8 + $0x188] sm:$0xff]
      %v2808 = vld [vmem:[%s8 + $0x190] sm:$0xff]
      %v2809 = vld [vmem:[%s8 + $0x198] sm:$0xff]
      %v2810 = vld [vmem:[%s8 + $0x1a0] sm:$0xff]
      %v2811 = vld [vmem:[%s8 + $0x1a8] sm:$0xff]
      %v2812 = vld [vmem:[%s8 + $0x1b0] sm:$0xff]
      %v2813 = vld [vmem:[%s8 + $0x1b8] sm:$0xff]
      %v2814 = vld [vmem:[%s8 + $0x1c0] sm:$0xff]
      %v2815 = vld [vmem:[%s8 + $0x1c8] sm:$0xff]
      %v2816 = vld [vmem:[%s8 + $0x1d0] sm:$0xff]
      %v2817 = vld [vmem:[%s8 + $0x1d8] sm:$0xff]
      %v2818 = vld [vmem:[%s8 + $0x1e0] sm:$0xff]
      %v2819 = vld [vmem:[%s8 + $0x1e8] sm:$0xff]
      %v2820 = vld [vmem:[%s8 + $0x1f0] sm:$0xff]
      %v2821 = vld [vmem:[%s8 + $0x1f8] sm:$0xff]
      %v2822 = vld [vmem:[%s8 + $0x200] sm:$0xff]
      %v2823 = vld [vmem:[%s8 + $0x208] sm:$0xff]
      %v2824 = vld [vmem:[%s8 + $0x210] sm:$0xff]
      %v2825 = vld [vmem:[%s8 + $0x218] sm:$0xff]
      %v2826 = vld [vmem:[%s8 + $0x220] sm:$0xff]
      %v2827 = vld [vmem:[%s8 + $0x228] sm:$0xff]
      %v2828 = vld [vmem:[%s8 + $0x230] sm:$0xff]
      %v2829 = vld [vmem:[%s8 + $0x238] sm:$0xff]
      %v2830 = vld [vmem:[%s8 + $0x240] sm:$0xff]
      %v2831 = vld [vmem:[%s8 + $0x248] sm:$0xff]
      %v2832 = vld [vmem:[%s8 + $0x250] sm:$0xff]
      %v2833 = vld [vmem:[%s8 + $0x258] sm:$0xff]
      %v2834 = vld [vmem:[%s8 + $0x260] sm:$0xff]
      %v2835 = vld [vmem:[%s8 + $0x268] sm:$0xff]
      %v2836 = vld [vmem:[%s8 + $0x270] sm:$0xff]
      %v2837 = vld [vmem:[%s8 + $0x278] sm:$0xff]
      %v2838 = vld [vmem:[%s8 + $0x280] sm:$0xff]
      %v2839 = vld [vmem:[%s8 + $0x288] sm:$0xff]
      %v2840 = vld [vmem:[%s8 + $0x290] sm:$0xff]
      %v2841 = vld [vmem:[%s8 + $0x298] sm:$0xff]
      %v2842 = vld [vmem:[%s8 + $0x2a0] sm:$0xff]
      %v2843 = vld [vmem:[%s8 + $0x2a8] sm:$0xff]
      %v2844 = vld [vmem:[%s8 + $0x2b0] sm:$0xff]
      %v2845 = vld [vmem:[%s8 + $0x2b8] sm:$0xff]
      %v2846 = vld [vmem:[%s8 + $0x2c0] sm:$0xff]
      %v2847 = vld [vmem:[%s8 + $0x2c8] sm:$0xff]
      %v2848 = vld [vmem:[%s8 + $0x2d0] sm:$0xff]
      %v2849 = vld [vmem:[%s8 + $0x2d8] sm:$0xff]
      %v2850 = vld [vmem:[%s8 + $0x2e0] sm:$0xff]
      %v2851 = vld [vmem:[%s8 + $0x2e8] sm:$0xff]
      %v2852 = vld [vmem:[%s8 + $0x2f0] sm:$0xff]
      %v2853 = vld [vmem:[%s8 + $0x2f8] sm:$0xff]
      %v2854 = vld [vmem:[%s8 + $0x300] sm:$0xff]
      %v2855 = vld [vmem:[%s8 + $0x308] sm:$0xff]
      %v2856 = vld [vmem:[%s8 + $0x310] sm:$0xff]
      %v2857 = vld [vmem:[%s8 + $0x318] sm:$0xff]
      %v2858 = vld [vmem:[%s8 + $0x320] sm:$0xff]
      %v2859 = vld [vmem:[%s8 + $0x328] sm:$0xff]
      %v2860 = vld [vmem:[%s8 + $0x330] sm:$0xff]
      %v2861 = vld [vmem:[%s8 + $0x338] sm:$0xff]
      %v2862 = vld [vmem:[%s8 + $0x340] sm:$0xff]
      %v2863 = vld [vmem:[%s8 + $0x348] sm:$0xff]
      %v2864 = vld [vmem:[%s8 + $0x350] sm:$0xff]
      %v2865 = vld [vmem:[%s8 + $0x358] sm:$0xff]
      %v2866 = vld [vmem:[%s8 + $0x360] sm:$0xff]
      %v2867 = vld [vmem:[%s8 + $0x368] sm:$0xff]
      %v2868 = vld [vmem:[%s8 + $0x370] sm:$0xff]
      %v2869 = vld [vmem:[%s8 + $0x378] sm:$0xff]
      %v2870 = vld [vmem:[%s8 + $0x380] sm:$0xff]
      %v2871 = vld [vmem:[%s8 + $0x388] sm:$0xff]
      %v2872 = vld [vmem:[%s8 + $0x390] sm:$0xff]
      %v2873 = vld [vmem:[%s8 + $0x398] sm:$0xff]
      %v2874 = vld [vmem:[%s8 + $0x3a0] sm:$0xff]
      %v2875 = vld [vmem:[%s8 + $0x3a8] sm:$0xff]
      %v2876 = vld [vmem:[%s8 + $0x3b0] sm:$0xff]
      %v2877 = vld [vmem:[%s8 + $0x3b8] sm:$0xff]
      %v2878 = vld [vmem:[%s8 + $0x3c0] sm:$0xff]
      %v2879 = vld [vmem:[%s8 + $0x3c8] sm:$0xff]
      %v2880 = vld [vmem:[%s8 + $0x3d0] sm:$0xff]
      %v2881 = vld [vmem:[%s8 + $0x3d8] sm:$0xff]
      %v2882 = vld [vmem:[%s8 + $0x3e0] sm:$0xff]
      %v2883 = vld [vmem:[%s8 + $0x3e8] sm:$0xff]
      %v2884 = vld [vmem:[%s8 + $0x3f0] sm:$0xff]
      %v2885 = vld [vmem:[%s8 + $0x3f8] sm:$0xff]
      %v2886 = vld [vmem:[%s9] sm:$0xff]
      %v2887 = vld [vmem:[%s9 + $0x8] sm:$0xff]
      %v2888 = vld [vmem:[%s9 + $0x10] sm:$0xff]
      %v2889 = vld [vmem:[%s9 + $0x18] sm:$0xff]
      %v2890 = vld [vmem:[%s9 + $0x20] sm:$0xff]
      %v2891 = vld [vmem:[%s9 + $0x28] sm:$0xff]
      %v2892 = vld [vmem:[%s9 + $0x30] sm:$0xff]
      %v2893 = vld [vmem:[%s9 + $0x38] sm:$0xff]
      %v2895 = vsel %vm2599, %v2757, 0
      %2897 = vmatprep.subr.mxu0 0.0
      %2898 = vmatpush1.msra.mxu0 %v2886
      %2899 = vmatprep.subr.mxu0 0.0
      %2900 = vmatpush1.msra.mxu0 %v2887
      %2901 = vmatprep.subr.mxu0 0.0
      %2902 = vmatpush1.msra.mxu0 %v2888
      %2903 = vmatprep.subr.mxu0 0.0
      %2904 = vmatpush1.msra.mxu0 %v2889
      %2905 = vmatprep.subr.mxu0 0.0
      %2906 = vmatpush1.msra.mxu0 %v2890
      %2907 = vmatprep.subr.mxu0 0.0
      %2908 = vmatpush1.msra.mxu0 %v2891
      %2909 = vmatprep.subr.mxu0 0.0
      %2910 = vmatpush1.msra.mxu0 %v2892
      %2911 = vmatprep.subr.mxu0 0.0
      %2912 = vmatpush1.msra.mxu0 %v2893
      %2913 = vmatprep.subr.mxu0 0.0
      %2914 = vmatpush1.msra.mxu0 0.0
      %2915 = vmatprep.subr.mxu0 0.0
      %2916 = vmatpush1.msra.mxu0 0.0
      %2917 = vmatprep.subr.mxu0 0.0
      %2918 = vmatpush1.msra.mxu0 0.0
      %2919 = vmatprep.subr.mxu0 0.0
      %2920 = vmatpush1.msra.mxu0 0.0
      %2921 = vmatprep.subr.mxu0 0.0
      %2922 = vmatpush1.msra.mxu0 0.0
      %2923 = vmatprep.subr.mxu0 0.0
      %2924 = vmatpush1.msra.mxu0 0.0
      %2925 = vmatprep.subr.mxu0 0.0
      %2926 = vmatpush1.msra.mxu0 0.0
      %2927 = vmatprep.subr.mxu0 0.0
      %2928 = vmatpush1.msra.mxu0 0.0
      %2929 = vmatprep.subr.mxu0 0.0
      %2930 = vmatpush1.msra.mxu0 0.0
      %2931 = vmatprep.subr.mxu0 0.0
      %2932 = vmatpush1.msra.mxu0 0.0
      %2933 = vmatprep.subr.mxu0 0.0
      %2934 = vmatpush1.msra.mxu0 0.0
      %2935 = vmatprep.subr.mxu0 0.0
      %2936 = vmatpush1.msra.mxu0 0.0
      %2937 = vmatprep.subr.mxu0 0.0
      %2938 = vmatpush1.msra.mxu0 0.0
      %2939 = vmatprep.subr.mxu0 0.0
      %2940 = vmatpush1.msra.mxu0 0.0
      %2941 = vmatprep.subr.mxu0 0.0
      %2942 = vmatpush1.msra.mxu0 0.0
      %2943 = vmatprep.subr.mxu0 0.0
      %2944 = vmatpush1.msra.mxu0 0.0
      %2945 = vmatprep.subr.mxu0 0.0
      %2946 = vmatpush1.msra.mxu0 0.0
      %2947 = vmatprep.subr.mxu0 0.0
      %2948 = vmatpush1.msra.mxu0 0.0
      %2949 = vmatprep.subr.mxu0 0.0
      %2950 = vmatpush1.msra.mxu0 0.0
      %2951 = vmatprep.subr.mxu0 0.0
      %2952 = vmatpush1.msra.mxu0 0.0
      %2953 = vmatprep.subr.mxu0 0.0
      %2954 = vmatpush1.msra.mxu0 0.0
      %2955 = vmatprep.subr.mxu0 0.0
      %2956 = vmatpush1.msra.mxu0 0.0
      %2957 = vmatprep.subr.mxu0 0.0
      %2958 = vmatpush1.msra.mxu0 0.0
      %2959 = vmatprep.subr.mxu0 0.0
      %2960 = vmatpush1.msra.mxu0 0.0
      %2961 = vmatprep.mubr.f32.mxu0 0.0
      %2962 = vmatmul.mubr.f32.gmra.mrb[0].mxu0 %v2895
      %v2963 = vpop.f32.mrb[0].mxu0
      %v2964 = vadd.f32 0.0, %v2963
      %v2965 = vpop.f32.mrb[0].mxu0
      %2966 = vdwg.mxu0
      %2967 = vmatprep.subr.mxu0 0.0
      %2968 = vmatpush1.msra.mxu0 %v2758
      %2969 = vmatprep.subr.mxu0 0.0
      %2970 = vmatpush1.msra.mxu0 %v2759
      %2971 = vmatprep.subr.mxu0 0.0
      %2972 = vmatpush1.msra.mxu0 %v2760
      %2973 = vmatprep.subr.mxu0 0.0
      %2974 = vmatpush1.msra.mxu0 %v2761
      %2975 = vmatprep.subr.mxu0 0.0
      %2976 = vmatpush1.msra.mxu0 %v2762
      %2977 = vmatprep.subr.mxu0 0.0
      %2978 = vmatpush1.msra.mxu0 %v2763
      %2979 = vmatprep.subr.mxu0 0.0
      %2980 = vmatpush1.msra.mxu0 %v2764
      %2981 = vmatprep.subr.mxu0 0.0
      %2982 = vmatpush1.msra.mxu0 %v2765
      %2983 = vmatprep.subr.mxu0 0.0
      %2984 = vmatpush1.msra.mxu0 %v2766
      %2985 = vmatprep.subr.mxu0 0.0
      %2986 = vmatpush1.msra.mxu0 %v2767
      %2987 = vmatprep.subr.mxu0 0.0
      %2988 = vmatpush1.msra.mxu0 %v2768
      %2989 = vmatprep.subr.mxu0 0.0
      %2990 = vmatpush1.msra.mxu0 %v2769
      %2991 = vmatprep.subr.mxu0 0.0
      %2992 = vmatpush1.msra.mxu0 %v2770
      %2993 = vmatprep.subr.mxu0 0.0
      %2994 = vmatpush1.msra.mxu0 %v2771
      %2995 = vmatprep.subr.mxu0 0.0
      %2996 = vmatpush1.msra.mxu0 %v2772
      %2997 = vmatprep.subr.mxu0 0.0
      %2998 = vmatpush1.msra.mxu0 %v2773
      %2999 = vmatprep.subr.mxu0 0.0
      %3000 = vmatpush1.msra.mxu0 %v2774
      %3001 = vmatprep.subr.mxu0 0.0
      %3002 = vmatpush1.msra.mxu0 %v2775
      %3003 = vmatprep.subr.mxu0 0.0
      %3004 = vmatpush1.msra.mxu0 %v2776
      %3005 = vmatprep.subr.mxu0 0.0
      %3006 = vmatpush1.msra.mxu0 %v2777
      %3007 = vmatprep.subr.mxu0 0.0
      %3008 = vmatpush1.msra.mxu0 %v2778
      %3009 = vmatprep.subr.mxu0 0.0
      %3010 = vmatpush1.msra.mxu0 %v2779
      %3011 = vmatprep.subr.mxu0 0.0
      %3012 = vmatpush1.msra.mxu0 %v2780
      %3013 = vmatprep.subr.mxu0 0.0
      %3014 = vmatpush1.msra.mxu0 %v2781
      %3015 = vmatprep.subr.mxu0 0.0
      %3016 = vmatpush1.msra.mxu0 %v2782
      %3017 = vmatprep.subr.mxu0 0.0
      %3018 = vmatpush1.msra.mxu0 %v2783
      %3019 = vmatprep.subr.mxu0 0.0
      %3020 = vmatpush1.msra.mxu0 %v2784
      %3021 = vmatprep.subr.mxu0 0.0
      %3022 = vmatpush1.msra.mxu0 %v2785
      %3023 = vmatprep.subr.mxu0 0.0
      %3024 = vmatpush1.msra.mxu0 %v2786
      %3025 = vmatprep.subr.mxu0 0.0
      %3026 = vmatpush1.msra.mxu0 %v2787
      %3027 = vmatprep.subr.mxu0 0.0
      %3028 = vmatpush1.msra.mxu0 %v2788
      %3029 = vmatprep.subr.mxu0 0.0
      %3030 = vmatpush1.msra.mxu0 %v2789
      %3031 = vmatprep.mubr.f32.mxu0 %v2673
      %3032 = vmatmul.mubr.f32.gmra.mrb[0].mxu0 %v2672
      %v3033 = vpop.f32.mrb[0].mxu0
      %v3034 = vadd.f32 %v2964, %v3033
      %v3035 = vpop.f32.mrb[0].mxu0
      %3036 = vdwg.mxu0
      %3037 = vmatprep.subr.mxu0 0.0
      %3038 = vmatpush1.msra.mxu0 %v2790
      %3039 = vmatprep.subr.mxu0 0.0
      %3040 = vmatpush1.msra.mxu0 %v2791
      %3041 = vmatprep.subr.mxu0 0.0
      %3042 = vmatpush1.msra.mxu0 %v2792
      %3043 = vmatprep.subr.mxu0 0.0
      %3044 = vmatpush1.msra.mxu0 %v2793
      %3045 = vmatprep.subr.mxu0 0.0
      %3046 = vmatpush1.msra.mxu0 %v2794
      %3047 = vmatprep.subr.mxu0 0.0
      %3048 = vmatpush1.msra.mxu0 %v2795
      %3049 = vmatprep.subr.mxu0 0.0
      %3050 = vmatpush1.msra.mxu0 %v2796
      %3051 = vmatprep.subr.mxu0 0.0
      %3052 = vmatpush1.msra.mxu0 %v2797
      %3053 = vmatprep.subr.mxu0 0.0
      %3054 = vmatpush1.msra.mxu0 %v2798
      %3055 = vmatprep.subr.mxu0 0.0
      %3056 = vmatpush1.msra.mxu0 %v2799
      %3057 = vmatprep.subr.mxu0 0.0
      %3058 = vmatpush1.msra.mxu0 %v2800
      %3059 = vmatprep.subr.mxu0 0.0
      %3060 = vmatpush1.msra.mxu0 %v2801
      %3061 = vmatprep.subr.mxu0 0.0
      %3062 = vmatpush1.msra.mxu0 %v2802
      %3063 = vmatprep.subr.mxu0 0.0
      %3064 = vmatpush1.msra.mxu0 %v2803
      %3065 = vmatprep.subr.mxu0 0.0
      %3066 = vmatpush1.msra.mxu0 %v2804
      %3067 = vmatprep.subr.mxu0 0.0
      %3068 = vmatpush1.msra.mxu0 %v2805
      %3069 = vmatprep.subr.mxu0 0.0
      %3070 = vmatpush1.msra.mxu0 %v2806
      %3071 = vmatprep.subr.mxu0 0.0
      %3072 = vmatpush1.msra.mxu0 %v2807
      %3073 = vmatprep.subr.mxu0 0.0
      %3074 = vmatpush1.msra.mxu0 %v2808
      %3075 = vmatprep.subr.mxu0 0.0
      %3076 = vmatpush1.msra.mxu0 %v2809
      %3077 = vmatprep.subr.mxu0 0.0
      %3078 = vmatpush1.msra.mxu0 %v2810
      %3079 = vmatprep.subr.mxu0 0.0
      %3080 = vmatpush1.msra.mxu0 %v2811
      %3081 = vmatprep.subr.mxu0 0.0
      %3082 = vmatpush1.msra.mxu0 %v2812
      %3083 = vmatprep.subr.mxu0 0.0
      %3084 = vmatpush1.msra.mxu0 %v2813
      %3085 = vmatprep.subr.mxu0 0.0
      %3086 = vmatpush1.msra.mxu0 %v2814
      %3087 = vmatprep.subr.mxu0 0.0
      %3088 = vmatpush1.msra.mxu0 %v2815
      %3089 = vmatprep.subr.mxu0 0.0
      %3090 = vmatpush1.msra.mxu0 %v2816
      %3091 = vmatprep.subr.mxu0 0.0
      %3092 = vmatpush1.msra.mxu0 %v2817
      %3093 = vmatprep.subr.mxu0 0.0
      %3094 = vmatpush1.msra.mxu0 %v2818
      %3095 = vmatprep.subr.mxu0 0.0
      %3096 = vmatpush1.msra.mxu0 %v2819
      %3097 = vmatprep.subr.mxu0 0.0
      %3098 = vmatpush1.msra.mxu0 %v2820
      %3099 = vmatprep.subr.mxu0 0.0
      %3100 = vmatpush1.msra.mxu0 %v2821
      %3101 = vmatprep.mubr.f32.mxu0 %v2675
      %3102 = vmatmul.mubr.f32.gmra.mrb[0].mxu0 %v2674
      %v3103 = vpop.f32.mrb[0].mxu0
      %v3104 = vadd.f32 %v3034, %v3103
      %v3105 = vpop.f32.mrb[0].mxu0
      %3106 = vdwg.mxu0
      %3107 = vmatprep.subr.mxu0 0.0
      %3108 = vmatpush1.msra.mxu0 %v2822
      %3109 = vmatprep.subr.mxu0 0.0
      %3110 = vmatpush1.msra.mxu0 %v2823
      %3111 = vmatprep.subr.mxu0 0.0
      %3112 = vmatpush1.msra.mxu0 %v2824
      %3113 = vmatprep.subr.mxu0 0.0
      %3114 = vmatpush1.msra.mxu0 %v2825
      %3115 = vmatprep.subr.mxu0 0.0
      %3116 = vmatpush1.msra.mxu0 %v2826
      %3117 = vmatprep.subr.mxu0 0.0
      %3118 = vmatpush1.msra.mxu0 %v2827
      %3119 = vmatprep.subr.mxu0 0.0
      %3120 = vmatpush1.msra.mxu0 %v2828
      %3121 = vmatprep.subr.mxu0 0.0
      %3122 = vmatpush1.msra.mxu0 %v2829
      %3123 = vmatprep.subr.mxu0 0.0
      %3124 = vmatpush1.msra.mxu0 %v2830
      %3125 = vmatprep.subr.mxu0 0.0
      %3126 = vmatpush1.msra.mxu0 %v2831
      %3127 = vmatprep.subr.mxu0 0.0
      %3128 = vmatpush1.msra.mxu0 %v2832
      %3129 = vmatprep.subr.mxu0 0.0
      %3130 = vmatpush1.msra.mxu0 %v2833
      %3131 = vmatprep.subr.mxu0 0.0
      %3132 = vmatpush1.msra.mxu0 %v2834
      %3133 = vmatprep.subr.mxu0 0.0
      %3134 = vmatpush1.msra.mxu0 %v2835
      %3135 = vmatprep.subr.mxu0 0.0
      %3136 = vmatpush1.msra.mxu0 %v2836
      %3137 = vmatprep.subr.mxu0 0.0
      %3138 = vmatpush1.msra.mxu0 %v2837
      %3139 = vmatprep.subr.mxu0 0.0
      %3140 = vmatpush1.msra.mxu0 %v2838
      %3141 = vmatprep.subr.mxu0 0.0
      %3142 = vmatpush1.msra.mxu0 %v2839
      %3143 = vmatprep.subr.mxu0 0.0
      %3144 = vmatpush1.msra.mxu0 %v2840
      %3145 = vmatprep.subr.mxu0 0.0
      %3146 = vmatpush1.msra.mxu0 %v2841
      %3147 = vmatprep.subr.mxu0 0.0
      %3148 = vmatpush1.msra.mxu0 %v2842
      %3149 = vmatprep.subr.mxu0 0.0
      %3150 = vmatpush1.msra.mxu0 %v2843
      %3151 = vmatprep.subr.mxu0 0.0
      %3152 = vmatpush1.msra.mxu0 %v2844
      %3153 = vmatprep.subr.mxu0 0.0
      %3154 = vmatpush1.msra.mxu0 %v2845
      %3155 = vmatprep.subr.mxu0 0.0
      %3156 = vmatpush1.msra.mxu0 %v2846
      %3157 = vmatprep.subr.mxu0 0.0
      %3158 = vmatpush1.msra.mxu0 %v2847
      %3159 = vmatprep.subr.mxu0 0.0
      %3160 = vmatpush1.msra.mxu0 %v2848
      %3161 = vmatprep.subr.mxu0 0.0
      %3162 = vmatpush1.msra.mxu0 %v2849
      %3163 = vmatprep.subr.mxu0 0.0
      %3164 = vmatpush1.msra.mxu0 %v2850
      %3165 = vmatprep.subr.mxu0 0.0
      %3166 = vmatpush1.msra.mxu0 %v2851
      %3167 = vmatprep.subr.mxu0 0.0
      %3168 = vmatpush1.msra.mxu0 %v2852
      %3169 = vmatprep.subr.mxu0 0.0
      %3170 = vmatpush1.msra.mxu0 %v2853
      %3171 = vmatprep.mubr.f32.mxu0 %v2677
      %3172 = vmatmul.mubr.f32.gmra.mrb[0].mxu0 %v2676
      %v3173 = vpop.f32.mrb[0].mxu0
      %v3174 = vadd.f32 %v3104, %v3173
      %v3175 = vpop.f32.mrb[0].mxu0
      %3176 = vdwg.mxu0
      %3177 = vmatprep.subr.mxu0 0.0
      %3178 = vmatpush1.msra.mxu0 %v2854
      %3179 = vmatprep.subr.mxu0 0.0
      %3180 = vmatpush1.msra.mxu0 %v2855
      %3181 = vmatprep.subr.mxu0 0.0
      %3182 = vmatpush1.msra.mxu0 %v2856
      %3183 = vmatprep.subr.mxu0 0.0
      %3184 = vmatpush1.msra.mxu0 %v2857
      %3185 = vmatprep.subr.mxu0 0.0
      %3186 = vmatpush1.msra.mxu0 %v2858
      %3187 = vmatprep.subr.mxu0 0.0
      %3188 = vmatpush1.msra.mxu0 %v2859
      %3189 = vmatprep.subr.mxu0 0.0
      %3190 = vmatpush1.msra.mxu0 %v2860
      %3191 = vmatprep.subr.mxu0 0.0
      %3192 = vmatpush1.msra.mxu0 %v2861
      %3193 = vmatprep.subr.mxu0 0.0
      %3194 = vmatpush1.msra.mxu0 %v2862
      %3195 = vmatprep.subr.mxu0 0.0
      %3196 = vmatpush1.msra.mxu0 %v2863
      %3197 = vmatprep.subr.mxu0 0.0
      %3198 = vmatpush1.msra.mxu0 %v2864
      %3199 = vmatprep.subr.mxu0 0.0
      %3200 = vmatpush1.msra.mxu0 %v2865
      %3201 = vmatprep.subr.mxu0 0.0
      %3202 = vmatpush1.msra.mxu0 %v2866
      %3203 = vmatprep.subr.mxu0 0.0
      %3204 = vmatpush1.msra.mxu0 %v2867
      %3205 = vmatprep.subr.mxu0 0.0
      %3206 = vmatpush1.msra.mxu0 %v2868
      %3207 = vmatprep.subr.mxu0 0.0
      %3208 = vmatpush1.msra.mxu0 %v2869
      %3209 = vmatprep.subr.mxu0 0.0
      %3210 = vmatpush1.msra.mxu0 %v2870
      %3211 = vmatprep.subr.mxu0 0.0
      %3212 = vmatpush1.msra.mxu0 %v2871
      %3213 = vmatprep.subr.mxu0 0.0
      %3214 = vmatpush1.msra.mxu0 %v2872
      %3215 = vmatprep.subr.mxu0 0.0
      %3216 = vmatpush1.msra.mxu0 %v2873
      %3217 = vmatprep.subr.mxu0 0.0
      %3218 = vmatpush1.msra.mxu0 %v2874
      %3219 = vmatprep.subr.mxu0 0.0
      %3220 = vmatpush1.msra.mxu0 %v2875
      %3221 = vmatprep.subr.mxu0 0.0
      %3222 = vmatpush1.msra.mxu0 %v2876
      %3223 = vmatprep.subr.mxu0 0.0
      %3224 = vmatpush1.msra.mxu0 %v2877
      %3225 = vmatprep.subr.mxu0 0.0
      %3226 = vmatpush1.msra.mxu0 %v2878
      %3227 = vmatprep.subr.mxu0 0.0
      %3228 = vmatpush1.msra.mxu0 %v2879
      %3229 = vmatprep.subr.mxu0 0.0
      %3230 = vmatpush1.msra.mxu0 %v2880
      %3231 = vmatprep.subr.mxu0 0.0
      %3232 = vmatpush1.msra.mxu0 %v2881
      %3233 = vmatprep.subr.mxu0 0.0
      %3234 = vmatpush1.msra.mxu0 %v2882
      %3235 = vmatprep.subr.mxu0 0.0
      %3236 = vmatpush1.msra.mxu0 %v2883
      %3237 = vmatprep.subr.mxu0 0.0
      %3238 = vmatpush1.msra.mxu0 %v2884
      %3239 = vmatprep.subr.mxu0 0.0
      %3240 = vmatpush1.msra.mxu0 %v2885
      %3241 = vmatprep.mubr.f32.mxu0 %v2679
      %3242 = vmatmul.mubr.f32.gmra.mrb[0].mxu0 %v2678
      %v3243 = vpop.f32.mrb[0].mxu0
      %v3244 = vadd.f32 %v3174, %v3243
      %v3245 = vpop.f32.mrb[0].mxu0
      %3246 = vdwg.mxu0
      %v3247 = vld [vmem:[%s10] sm:$0x1]
      %v3248 = vadd.f32 %v3244, %v3247
      %v3249 = vmax.f32 %v3248, 0.0
      %v3250 = vld [vmem:[%s11] sm:$0xff]
      %v3251 = vld [vmem:[%s11 + $0x8] sm:$0xff]
      %v3252 = vld [vmem:[%s11 + $0x10] sm:$0xff]
      %v3253 = vld [vmem:[%s11 + $0x18] sm:$0xff]
      %v3254 = vld [vmem:[%s12] sm:$0x1]
      %v3256 = vsel %vm1308, %v3249, 0
      %3258 = vmatprep.subr.mxu0 0.0
      %3259 = vmatpush1.msra.mxu0 %v3250
      %3260 = vmatprep.subr.mxu0 0.0
      %3261 = vmatpush1.msra.mxu0 %v3251
      %3262 = vmatprep.subr.mxu0 0.0
      %3263 = vmatpush1.msra.mxu0 %v3252
      %3264 = vmatprep.subr.mxu0 0.0
      %3265 = vmatpush1.msra.mxu0 %v3253
      %3266 = vmatprep.subr.mxu0 0.0
      %3267 = vmatpush1.msra.mxu0 0.0
      %3268 = vmatprep.subr.mxu0 0.0
      %3269 = vmatpush1.msra.mxu0 0.0
      %3270 = vmatprep.subr.mxu0 0.0
      %3271 = vmatpush1.msra.mxu0 0.0
      %3272 = vmatprep.subr.mxu0 0.0
      %3273 = vmatpush1.msra.mxu0 0.0
      %3274 = vmatprep.subr.mxu0 0.0
      %3275 = vmatpush1.msra.mxu0 0.0
      %3276 = vmatprep.subr.mxu0 0.0
      %3277 = vmatpush1.msra.mxu0 0.0
      %3278 = vmatprep.subr.mxu0 0.0
      %3279 = vmatpush1.msra.mxu0 0.0
      %3280 = vmatprep.subr.mxu0 0.0
      %3281 = vmatpush1.msra.mxu0 0.0
      %3282 = vmatprep.subr.mxu0 0.0
      %3283 = vmatpush1.msra.mxu0 0.0
      %3284 = vmatprep.subr.mxu0 0.0
      %3285 = vmatpush1.msra.mxu0 0.0
      %3286 = vmatprep.subr.mxu0 0.0
      %3287 = vmatpush1.msra.mxu0 0.0
      %3288 = vmatprep.subr.mxu0 0.0
      %3289 = vmatpush1.msra.mxu0 0.0
      %3290 = vmatprep.subr.mxu0 0.0
      %3291 = vmatpush1.msra.mxu0 0.0
      %3292 = vmatprep.subr.mxu0 0.0
      %3293 = vmatpush1.msra.mxu0 0.0
      %3294 = vmatprep.subr.mxu0 0.0
      %3295 = vmatpush1.msra.mxu0 0.0
      %3296 = vmatprep.subr.mxu0 0.0
      %3297 = vmatpush1.msra.mxu0 0.0
      %3298 = vmatprep.subr.mxu0 0.0
      %3299 = vmatpush1.msra.mxu0 0.0
      %3300 = vmatprep.subr.mxu0 0.0
      %3301 = vmatpush1.msra.mxu0 0.0
      %3302 = vmatprep.subr.mxu0 0.0
      %3303 = vmatpush1.msra.mxu0 0.0
      %3304 = vmatprep.subr.mxu0 0.0
      %3305 = vmatpush1.msra.mxu0 0.0
      %3306 = vmatprep.subr.mxu0 0.0
      %3307 = vmatpush1.msra.mxu0 0.0
      %3308 = vmatprep.subr.mxu0 0.0
      %3309 = vmatpush1.msra.mxu0 0.0
      %3310 = vmatprep.subr.mxu0 0.0
      %3311 = vmatpush1.msra.mxu0 0.0
      %3312 = vmatprep.subr.mxu0 0.0
      %3313 = vmatpush1.msra.mxu0 0.0
      %3314 = vmatprep.subr.mxu0 0.0
      %3315 = vmatpush1.msra.mxu0 0.0
      %3316 = vmatprep.subr.mxu0 0.0
      %3317 = vmatpush1.msra.mxu0 0.0
      %3318 = vmatprep.subr.mxu0 0.0
      %3319 = vmatpush1.msra.mxu0 0.0
      %3320 = vmatprep.subr.mxu0 0.0
      %3321 = vmatpush1.msra.mxu0 0.0
      %3322 = vmatprep.mubr.f32.mxu0 0.0
      %3323 = vmatmul.mubr.f32.gmra.mrb[0].mxu0 %v3256
      %v3324 = vpop.f32.mrb[0].mxu0
      %v3325 = vadd.f32 %v3254, %v3324
      %v3326 = vpop.f32.mrb[0].mxu0
      %3327 = vdwg.mxu0
      %v3328 = vlaneseq
      %v3329 = vand.u32 %v3328, 127
      %vm3330 = vcmp.lt.s32.totalorder %v3329, 6
      %v3331 = vsel %vm3330, %v3325, -inf
      %v3332 = vsel %vm1389, %v3331, -inf
      %3333 = vmax.xlane.f32.xlu0 %v3332
      %v3334 = vpop.xlane.xlu0 %3333
      %v3335 = vsub.f32 %v3331, %v3334
      %v3336 = vmul.f32 %v3335, 1.442695
      %v3337 = vpow.pop %v3336
      %v3338 = vsel %vm1389, %v3337, 0.0
      %3339 = vadd.xlane.f32.xlu0 %v3338
      %v3340 = vpop.xlane.xlu0 %3339
      %v3341 = vrcp.pop %v3340
      %v3342 = vmul.f32 %v3340, %v3341
      %v3343 = vsub.f32 2.0, %v3342
      %v3344 = vmul.f32 %v3341, %v3343
      %v3345 = vmul.f32 %v3337, %v3344
      %v3346 = vsel %vm3330, %v3345, %v3325
      %3347 = vst [vmem:[%s450] sm:$0x1] %v3346
      %p3348 = scmp.lt.s32.totalorder %s24, 1
      %s3349 = scalar_select %p3348, %s24, 1
      %s3350 = scalar_lea.vmem %s13, %s3349
      // Predicated region
      $region73: #{actor_critic_forward.1} parent=71 // pred_check
        %p3351 = pneg %p325
      $region74: #{actor_critic_forward.1} parent=71 // pred_check_branch
        %3353 = sbr.rel (%p3351) target = $region76
      $region75: #{actor_critic_forward.1} parent=71 // pred_region
        _
      $region76: #{actor_critic_forward.1} parent=71 // pred_fallthru
        _
    $region72: #{actor_critic_forward.1} parent=5 // pred_fallthru
      _
    %p3354 = scmp.le.s32.totalorder 2, %s19
    // Predicated region
    $region77: #{actor_critic_forward.1} parent=5 // pred_check
      %p3355 = pneg %p3354
    $region78: #{actor_critic_forward.1} parent=5 // pred_check_branch
      %3357 = sbr.rel (%p3355) target = $region80
    $region79: #{actor_critic_forward.1} parent=5 // pred_region
      %s3358 = ssub.s32 %s19, 2
      // Predicated region
      $region81: #{actor_critic_forward.1} parent=79 // pred_check
        %p3359 = pneg %p331
      $region82: #{actor_critic_forward.1} parent=79 // pred_check_branch
        %3361 = sbr.rel (%p3359) target = $region84
      $region83: #{actor_critic_forward.1} parent=79 // pred_region
        %p3362 = scmp.lt.s32.totalorder %s25, 1
        %s3363 = scalar_select %p3362, %s25, 1
        %s3364 = scalar_lea.vmem %s13, %s3363
      $region84: #{actor_critic_forward.1} parent=79 // pred_fallthru
        _
    $region80: #{actor_critic_forward.1} parent=5 // pred_fallthru
      _
  $region6: #{actor_critic_forward.1} parent=0 // loop_footer
    %s23 = sadd.s32 1, %s19
  $region7: #{actor_critic_forward.1} parent=0 // loop_footer_branch
    %18 = sbr.rel target = $region3
  $region8: #{actor_critic_forward.1} parent=0 // loop_exit
    _

</llo_original>
